<compile_context>
chip_gen: v6e
topology: v6e:2x2x1
jax: 0.10.0
libtpu: 0.0.40
codegen_flags: <defaults>
</compile_context>

<pallas_src>
import math
import jax
import jax.numpy as jnp
from jax.experimental import pallas as pl
from jax.experimental.pallas import tpu as pltpu

NUM_CLASSES = 5          # fixed by the model: 5 feature streams (af, ef, gf, attf, sf)
_BN_EPS = 1e-5
_NORM_EPS = 1e-12

VMEM_SPEC = pl.BlockSpec(memory_space=pltpu.MemorySpace.VMEM)
SMEM_SPEC = pl.BlockSpec(memory_space=pltpu.MemorySpace.SMEM)


# ----------------------------------------------------------------------------
# In-kernel helpers (trace-time functions on jnp values)
# ----------------------------------------------------------------------------
def _bn_train(x):
    """Fresh BatchNorm2d, training mode: per-leading-channel stats over the
    trailing (M, c) slab, biased variance, weight=1, bias=0.  One-pass moments
    (var = E[x^2] - mu^2) so the slab is traversed once."""
    inv = 1.0 / (x.shape[-1] * x.shape[-2])
    s1 = jnp.sum(jnp.sum(x, axis=-1, keepdims=True), axis=-2, keepdims=True)
    s2 = jnp.sum(jnp.sum(x * x, axis=-1, keepdims=True), axis=-2, keepdims=True)
    mu = s1 * inv
    var = s2 * inv - mu * mu
    bn = (x - mu) * jax.lax.rsqrt(var + _BN_EPS)
    # mirrors torch.where(isnan(...), 0, ...) in the reference forward
    return jnp.where(jnp.isnan(bn), 0.0, bn)


def _edge_node_update(x_res, e, ax, bx, ux, vx, e_proj, n):
    """Shared GNN edge/node update given the per-layer projections.

    x_res         : (n, M, c)    layer-input node features (residual)
    e             : (n, n, M, c) incoming edge features
    ax, bx, ux, vx: (n, M, c)    A/B/U/V projections of the layer input
    e_proj        : (n, n, M, c) E(edge) projection
    """
    # --- edge update: edge1 = relu(BN(A(x)_i + B(x)_j + E(e)_ij)); e += edge1
    s = ax[:, None] + bx[None, :] + e_proj                        # (n,n,M,c)
    e_new = e + jnp.maximum(_bn_train(s), 0.0)

    # --- node update: softmax(sigmoid(e), over j) attention on V(x)_j -------
    # sigmoid via EUP exp + approx reciprocal (no VALU divide)
    sig = pl.reciprocal(1.0 + jnp.exp(-e_new), approx=True)
    # sigmoid output is in (0,1) -> softmax needs no max-subtraction
    p = jnp.exp(sig)                                              # (n,n,M,c)
    denom = jnp.sum(p, axis=1)                                    # (n,M,c)
    num = jnp.sum(p * vx[None, :], axis=1)                        # (n,M,c)
    agg = num * pl.reciprocal(denom, approx=True)                 # softmax folded in
    x_new = ux + agg * (1.0 / n)
    x_out = jnp.maximum(x_res + _bn_train(x_new), 0.0)
    return x_out, e_new


# ----------------------------------------------------------------------------
# Fused kernel: pooling + GEM + 2 GNN layers + heads
# ----------------------------------------------------------------------------
def action_kernel(xu_ref, wcat1_ref, wcat2_ref, we2_ref, sc_ref,
                  wfc_ref, bfc_ref, cl_ref, cle_ref):
    nM, S, c = xu_ref.shape
    n = NUM_CLASSES
    M = nM // n

    # --- fused spatial mean pooling: f_v = f_u.mean(dim=-2) ---
    fv2 = jnp.sum(xu_ref[...], axis=1) * (1.0 / S)                # (n*M, c)
    fv = fv2.reshape(n, M, c)

    # --- layer-1 fused projection: one MXU push, columns [A1|B1|U1|V1|Wg|Wg@E1]
    proj1 = jnp.dot(fv2.astype(jnp.bfloat16),
                    wcat1_ref[...].astype(jnp.bfloat16),
                    preferred_element_type=jnp.float32)           # (n*M, 6c)
    ax1 = proj1[:, 0 * c:1 * c].reshape(n, M, c)
    bx1 = proj1[:, 1 * c:2 * c].reshape(n, M, c)
    ux1 = proj1[:, 2 * c:3 * c].reshape(n, M, c)
    vx1 = proj1[:, 3 * c:4 * c].reshape(n, M, c)
    g3  = proj1[:, 4 * c:5 * c].reshape(n, M, c)                  # fv @ Wg
    ge3 = proj1[:, 5 * c:6 * c].reshape(n, M, c)                  # fv @ (Wg @ E1)

    # --- GEM edge extractor stand-in ---
    # TODO(synk): reference GEM source not provided; deterministic stand-in
    #   fe(i, j) = (fv_i + fv_j + pooled_af) @ Wg   (pooled_af == fv node 0).
    fe = g3[:, None] + g3[None, :] + g3[0:1, None]                # (n,n,M,c)
    # layer-1 edge projection E1(fe): folded (linear in fv) -> broadcast adds,
    # no (n*n*M, c) matmul needed for layer 1.
    e_proj1 = ge3[:, None] + ge3[None, :] + ge3[0:1, None]        # (n,n,M,c)

    x1, e1 = _edge_node_update(fv, fe, ax1, bx1, ux1, vx1, e_proj1, n)

    # --- layer-2 projections (e1 is nonlinear in fv -> real matmuls) --------
    proj2 = jnp.dot(x1.reshape(n * M, c).astype(jnp.bfloat16),
                    wcat2_ref[...].astype(jnp.bfloat16),
                    preferred_element_type=jnp.float32)           # (n*M, 4c)
    ax2 = proj2[:, 0 * c:1 * c].reshape(n, M, c)
    bx2 = proj2[:, 1 * c:2 * c].reshape(n, M, c)
    ux2 = proj2[:, 2 * c:3 * c].reshape(n, M, c)
    vx2 = proj2[:, 3 * c:4 * c].reshape(n, M, c)
    e_proj2 = jnp.dot(e1.reshape(n * n * M, c).astype(jnp.bfloat16),
                      we2_ref[...].astype(jnp.bfloat16),
                      preferred_element_type=jnp.float32).reshape(n, n, M, c)

    x2, e2 = _edge_node_update(x1, e1, ax2, bx2, ux2, vx2, e_proj2, n)

    # --- similarity head: <normalize(f_v), normalize(relu(sc))> -> (n, M) ---
    ss_v = jnp.sum(x2 * x2, axis=-1, keepdims=True)
    vn = x2 * jax.lax.rsqrt(jnp.maximum(ss_v, _NORM_EPS * _NORM_EPS))
    s = jnp.maximum(sc_ref[...], 0.0)                             # (n, c)
    ss_s = jnp.sum(s * s, axis=-1, keepdims=True)
    sn = s * jax.lax.rsqrt(jnp.maximum(ss_s, _NORM_EPS * _NORM_EPS))
    cl_ref[...] = jnp.sum(vn * sn[:, None, :], axis=-1).astype(cl_ref.dtype)

    # --- edge head: edge_fc(f_e) -> (n, n, M) slab ---
    wfc = wfc_ref[...].reshape(1, 1, 1, c)
    bias = bfc_ref[0]                                             # SMEM scalar
    cle_ref[...] = (jnp.sum(e2 * wfc, axis=-1) + bias).astype(cle_ref.dtype)


def action_pallas(xu, wcat1, wcat2, we2, sc, wfc, bfc):
    nM, S, c = xu.shape
    n = NUM_CLASSES
    M = nM // n
    # TODO(synk): once M = b*t grows well past 8, add a "parallel" grid over
    # M-blocks (engages the 2nd TensorCore on v7x); at M=8 grid-step overhead
    # would dominate, so a single grid-less call is fastest on every chip.
    return pl.pallas_call(
        action_kernel,
        out_shape=(jax.ShapeDtypeStruct((n, M), jnp.float32),
                   jax.ShapeDtypeStruct((n, n, M), jnp.float32)),
        in_specs=[VMEM_SPEC] * 6 + [SMEM_SPEC],
        out_specs=(VMEM_SPEC, VMEM_SPEC),
    )(xu, wcat1, wcat2, we2, sc, wfc, bfc)


# ----------------------------------------------------------------------------
# Parameter prep (one-time, hoisted out of the per-step forward)
# ----------------------------------------------------------------------------
def prepare_params(params):
    c = params["A1"].shape[0]
    # [A1 | B1 | U1 | V1 | Wg | Wg@E1]  -> one (c, 6c) layer-1 weight
    wcat1 = jnp.concatenate(
        [params["A1"], params["B1"], params["U1"], params["V1"],
         params["w_gem"], params["w_gem"] @ params["E1"]], axis=1)
    # [A2 | B2 | U2 | V2]               -> one (c, 4c) layer-2 weight
    wcat2 = jnp.concatenate(
        [params["A2"], params["B2"], params["U2"], params["V2"]], axis=1)
    return {"wcat1": wcat1, "wcat2": wcat2, "E2": params["E2"],
            "sc": params["sc"], "w_fc": params["w_fc"], "b_fc": params["b_fc"]}


# ----------------------------------------------------------------------------
# Full forward (minimal layout glue in JAX, all hot work in one Pallas kernel)
# ----------------------------------------------------------------------------
def action_forward(prep, af, ef, gf, attf, sf):
    b, c, t, h, w = af.shape
    n = NUM_CLASSES
    M = b * t

    # One stack + one transpose replaces the five per-stream permutes.
    feats = jnp.stack([af, ef, gf, attf, sf], axis=0)             # (n,b,c,t,h,w)
    xu = jnp.transpose(feats.reshape(n, b, c, t, h * w),
                       (0, 1, 3, 4, 2)).reshape(n * M, h * w, c)  # (n*M, S, c)

    cl_k, cle_k = action_pallas(
        xu, prep["wcat1"], prep["wcat2"], prep["E2"],
        prep["sc"], prep["w_fc"], prep["b_fc"])

    cl = jnp.transpose(cl_k.reshape(n, b, t), (1, 0, 2))                  # (b, n, t)
    cl_edge = jnp.transpose(cle_k.reshape(n * n, b, t), (1, 0, 2))[..., None]
    return cl, cl_edge


def init_params(key, in_channels, num_classes):
    c, n = in_channels, num_classes
    scale = math.sqrt(2.0 / c)   # GNN.init_weights_linear with gain=1
    names = ["U1", "V1", "A1", "B1", "E1", "U2", "V2", "A2", "B2", "E2", "w_gem"]
    keys = jax.random.split(key, len(names) + 3)
    params = {}
    for name, k in zip(names, keys[:len(names)]):
        # stored as W.T so that y = x @ w  (== x @ W^T in torch Linear)
        params[name] = scale * jax.random.normal(k, (c, c), jnp.float32)

    # sc : xavier_uniform over (n, c)
    lim_sc = math.sqrt(6.0 / (n + c))
    params["sc"] = jax.random.uniform(
        keys[-3], (n, c), jnp.float32, -lim_sc, lim_sc)

    # edge_fc : Linear(c, 1), xavier_uniform weight + default bias init
    lim_fc = math.sqrt(6.0 / (c + 1))
    params["w_fc"] = jax.random.uniform(
        keys[-2], (1, c), jnp.float32, -lim_fc, lim_fc)
    lim_b = 1.0 / math.sqrt(c)
    params["b_fc"] = jax.random.uniform(
        keys[-1], (1,), jnp.float32, -lim_b, lim_b)
    return params


if __name__ == "__main__":
    b, c, t, h, w = 2, 32, 4, 4, 4   # small shapes consistent with the module

    key = jax.random.PRNGKey(0)
    k_par, k_af, k_ef, k_gf, k_at, k_sf = jax.random.split(key, 6)
    params = init_params(k_par, in_channels=c, num_classes=NUM_CLASSES)
    prep = jax.tree_util.tree_map(jax.block_until_ready, prepare_params(params))

    shape = (b, c, t, h, w)
    af = jax.random.normal(k_af, shape, jnp.float32)
    ef = jax.random.normal(k_ef, shape, jnp.float32)
    gf = jax.random.normal(k_gf, shape, jnp.float32)
    attf = jax.random.normal(k_at, shape, jnp.float32)
    sf = jax.random.normal(k_sf, shape, jnp.float32)

    fwd = jax.jit(action_forward)
    cl, cl_edge = fwd(prep, af, ef, gf, attf, sf)
    cl = jax.block_until_ready(cl)
    cl_edge = jax.block_until_ready(cl_edge)

    assert cl.shape == (b, NUM_CLASSES, t), cl.shape
    assert cl_edge.shape == (b, NUM_CLASSES * NUM_CLASSES, t, 1), cl_edge.shape
    assert bool(jnp.all(jnp.isfinite(cl))) and bool(jnp.all(jnp.isfinite(cl_edge)))
    print("KERNEL_OK")
</pallas_src>

<mosaic_0001>
module attributes {stable_mosaic.version = 11 : i64} {
  func.func @action_kernel(%arg0: memref<40x16x32xf32, #tpu.memory_space<vmem>>, %arg1: memref<32x192xf32, #tpu.memory_space<vmem>>, %arg2: memref<32x128xf32, #tpu.memory_space<vmem>>, %arg3: memref<32x32xf32, #tpu.memory_space<vmem>>, %arg4: memref<5x32xf32, #tpu.memory_space<vmem>>, %arg5: memref<1x32xf32, #tpu.memory_space<vmem>>, %arg6: memref<1xf32, #tpu.memory_space<smem>>, %arg7: memref<5x8xf32, #tpu.memory_space<vmem>>, %arg8: memref<5x5x8xf32, #tpu.memory_space<vmem>>) attributes {dimension_semantics = [], scalar_prefetch = 0 : i64, scratch_operands = 0 : i64, tpu.core_type = #tpu.core_type<tc>} {
    %c0 = arith.constant 0 : index
    %c0_0 = arith.constant 0 : index
    %c0_1 = arith.constant 0 : index
    %0 = vector.load %arg0[%c0, %c0_0, %c0_1] : memref<40x16x32xf32, #tpu.memory_space<vmem>>, vector<40x16x32xf32>
    %cst = arith.constant dense<0.000000e+00> : vector<40x32xf32>
    %1 = vector.multi_reduction <add>, %0, %cst [1] : vector<40x16x32xf32> to vector<40x32xf32>
    %cst_2 = arith.constant 6.250000e-02 : f32
    %2 = vector.broadcast %cst_2 : f32 to vector<40x32xf32>
    %3 = arith.mulf %1, %2 : vector<40x32xf32>
    %4 = vector.shape_cast %3 : vector<40x32xf32> to vector<5x8x32xf32>
    %5 = arith.truncf %3 : vector<40x32xf32> to vector<40x32xbf16>
    %c0_3 = arith.constant 0 : index
    %c0_4 = arith.constant 0 : index
    %6 = vector.load %arg1[%c0_3, %c0_4] : memref<32x192xf32, #tpu.memory_space<vmem>>, vector<32x192xf32>
    %7 = arith.truncf %6 : vector<32x192xf32> to vector<32x192xbf16>
    %cst_5 = arith.constant dense<0.000000e+00> : vector<40x192xf32>
    %8 = tpu.matmul %5, %7, %cst_5 {dimension_numbers = #tpu.dot_dimension_numbers<[1], [0], [0], [1], [0, 0, 1, 1], [], []>} : vector<40x32xbf16>, vector<32x192xbf16>, vector<40x192xf32> -> vector<40x192xf32>
    %9 = vector.extract_strided_slice %8 {offsets = [0, 0], sizes = [40, 32], strides = [1, 1]} : vector<40x192xf32> to vector<40x32xf32>
    %10 = vector.shape_cast %9 : vector<40x32xf32> to vector<5x8x32xf32>
    %11 = vector.extract_strided_slice %8 {offsets = [0, 32], sizes = [40, 32], strides = [1, 1]} : vector<40x192xf32> to vector<40x32xf32>
    %12 = vector.shape_cast %11 : vector<40x32xf32> to vector<5x8x32xf32>
    %13 = vector.extract_strided_slice %8 {offsets = [0, 64], sizes = [40, 32], strides = [1, 1]} : vector<40x192xf32> to vector<40x32xf32>
    %14 = vector.shape_cast %13 : vector<40x32xf32> to vector<5x8x32xf32>
    %15 = vector.extract_strided_slice %8 {offsets = [0, 96], sizes = [40, 32], strides = [1, 1]} : vector<40x192xf32> to vector<40x32xf32>
    %16 = vector.shape_cast %15 : vector<40x32xf32> to vector<5x8x32xf32>
    %17 = vector.extract_strided_slice %8 {offsets = [0, 128], sizes = [40, 32], strides = [1, 1]} : vector<40x192xf32> to vector<40x32xf32>
    %18 = vector.shape_cast %17 : vector<40x32xf32> to vector<5x8x32xf32>
    %19 = vector.extract_strided_slice %8 {offsets = [0, 160], sizes = [40, 32], strides = [1, 1]} : vector<40x192xf32> to vector<40x32xf32>
    %20 = vector.shape_cast %19 : vector<40x32xf32> to vector<5x8x32xf32>
    %21 = vector.shape_cast %18 : vector<5x8x32xf32> to vector<5x1x8x32xf32>
    %22 = vector.shape_cast %18 : vector<5x8x32xf32> to vector<1x5x8x32xf32>
    %23 = vector.broadcast %21 : vector<5x1x8x32xf32> to vector<5x5x8x32xf32>
    %24 = vector.broadcast %22 : vector<1x5x8x32xf32> to vector<5x5x8x32xf32>
    %25 = arith.addf %23, %24 : vector<5x5x8x32xf32>
    %26 = vector.extract_strided_slice %18 {offsets = [0, 0, 0], sizes = [1, 8, 32], strides = [1, 1, 1]} : vector<5x8x32xf32> to vector<1x8x32xf32>
    %27 = vector.shape_cast %26 : vector<1x8x32xf32> to vector<1x1x8x32xf32>
    %28 = vector.broadcast %27 : vector<1x1x8x32xf32> to vector<5x5x8x32xf32>
    %29 = arith.addf %25, %28 : vector<5x5x8x32xf32>
    %30 = vector.shape_cast %20 : vector<5x8x32xf32> to vector<5x1x8x32xf32>
    %31 = vector.shape_cast %20 : vector<5x8x32xf32> to vector<1x5x8x32xf32>
    %32 = vector.broadcast %30 : vector<5x1x8x32xf32> to vector<5x5x8x32xf32>
    %33 = vector.broadcast %31 : vector<1x5x8x32xf32> to vector<5x5x8x32xf32>
    %34 = arith.addf %32, %33 : vector<5x5x8x32xf32>
    %35 = vector.extract_strided_slice %20 {offsets = [0, 0, 0], sizes = [1, 8, 32], strides = [1, 1, 1]} : vector<5x8x32xf32> to vector<1x8x32xf32>
    %36 = vector.shape_cast %35 : vector<1x8x32xf32> to vector<1x1x8x32xf32>
    %37 = vector.broadcast %36 : vector<1x1x8x32xf32> to vector<5x5x8x32xf32>
    %38 = arith.addf %34, %37 : vector<5x5x8x32xf32>
    %39 = vector.shape_cast %10 : vector<5x8x32xf32> to vector<5x1x8x32xf32>
    %40 = vector.shape_cast %12 : vector<5x8x32xf32> to vector<1x5x8x32xf32>
    %41 = vector.broadcast %39 : vector<5x1x8x32xf32> to vector<5x5x8x32xf32>
    %42 = vector.broadcast %40 : vector<1x5x8x32xf32> to vector<5x5x8x32xf32>
    %43 = arith.addf %41, %42 : vector<5x5x8x32xf32>
    %44 = arith.addf %43, %38 : vector<5x5x8x32xf32>
    %cst_6 = arith.constant dense<0.000000e+00> : vector<5x5x8xf32>
    %45 = vector.multi_reduction <add>, %44, %cst_6 [3] : vector<5x5x8x32xf32> to vector<5x5x8xf32>
    %46 = vector.shape_cast %45 : vector<5x5x8xf32> to vector<5x5x8x1xf32>
    %cst_7 = arith.constant dense<0.000000e+00> : vector<5x5x1xf32>
    %47 = vector.multi_reduction <add>, %46, %cst_7 [2] : vector<5x5x8x1xf32> to vector<5x5x1xf32>
    %48 = vector.shape_cast %47 : vector<5x5x1xf32> to vector<5x5x1x1xf32>
    %49 = arith.mulf %44, %44 : vector<5x5x8x32xf32>
    %cst_8 = arith.constant dense<0.000000e+00> : vector<5x5x8xf32>
    %50 = vector.multi_reduction <add>, %49, %cst_8 [3] : vector<5x5x8x32xf32> to vector<5x5x8xf32>
    %51 = vector.shape_cast %50 : vector<5x5x8xf32> to vector<5x5x8x1xf32>
    %cst_9 = arith.constant dense<0.000000e+00> : vector<5x5x1xf32>
    %52 = vector.multi_reduction <add>, %51, %cst_9 [2] : vector<5x5x8x1xf32> to vector<5x5x1xf32>
    %53 = vector.shape_cast %52 : vector<5x5x1xf32> to vector<5x5x1x1xf32>
    %cst_10 = arith.constant 3.906250e-03 : f32
    %54 = vector.broadcast %cst_10 : f32 to vector<5x5x1x1xf32>
    %55 = arith.mulf %48, %54 : vector<5x5x1x1xf32>
    %cst_11 = arith.constant 3.906250e-03 : f32
    %56 = vector.broadcast %cst_11 : f32 to vector<5x5x1x1xf32>
    %57 = arith.mulf %53, %56 : vector<5x5x1x1xf32>
    %58 = arith.mulf %55, %55 : vector<5x5x1x1xf32>
    %59 = arith.subf %57, %58 : vector<5x5x1x1xf32>
    %60 = vector.broadcast %55 : vector<5x5x1x1xf32> to vector<5x5x8x32xf32>
    %61 = arith.subf %44, %60 : vector<5x5x8x32xf32>
    %cst_12 = arith.constant 9.99999974E-6 : f32
    %62 = vector.broadcast %cst_12 : f32 to vector<5x5x1x1xf32>
    %63 = arith.addf %59, %62 : vector<5x5x1x1xf32>
    %64 = math.rsqrt %63 : vector<5x5x1x1xf32>
    %65 = vector.broadcast %64 : vector<5x5x1x1xf32> to vector<5x5x8x32xf32>
    %66 = arith.mulf %61, %65 : vector<5x5x8x32xf32>
    %67 = arith.cmpf one, %66, %66 : vector<5x5x8x32xf32>
    %cst_13 = arith.constant 0.000000e+00 : f32
    %68 = vector.broadcast %cst_13 : f32 to vector<5x5x8x32xf32>
    %69 = arith.select %67, %68, %66 : vector<5x5x8x32xi1>, vector<5x5x8x32xf32>
    %cst_14 = arith.constant 0.000000e+00 : f32
    %70 = vector.broadcast %cst_14 : f32 to vector<5x5x8x32xf32>
    %71 = arith.maximumf %69, %70 : vector<5x5x8x32xf32>
    %72 = arith.addf %29, %71 : vector<5x5x8x32xf32>
    %cst_15 = arith.constant 0.000000e+00 : f32
    %73 = vector.broadcast %cst_15 : f32 to vector<5x5x8x32xf32>
    %74 = arith.subf %73, %72 : vector<5x5x8x32xf32>
    %75 = math.exp %74 : vector<5x5x8x32xf32>
    %cst_16 = arith.constant 1.000000e+00 : f32
    %76 = vector.broadcast %cst_16 : f32 to vector<5x5x8x32xf32>
    %77 = arith.addf %76, %75 : vector<5x5x8x32xf32>
    %78 = tpu.reciprocal %77 {approx = true} : vector<5x5x8x32xf32> -> vector<5x5x8x32xf32>
    %79 = math.exp %78 : vector<5x5x8x32xf32>
    %cst_17 = arith.constant dense<0.000000e+00> : vector<5x8x32xf32>
    %80 = vector.multi_reduction <add>, %79, %cst_17 [1] : vector<5x5x8x32xf32> to vector<5x8x32xf32>
    %81 = vector.shape_cast %16 : vector<5x8x32xf32> to vector<1x5x8x32xf32>
    %82 = vector.broadcast %81 : vector<1x5x8x32xf32> to vector<5x5x8x32xf32>
    %83 = arith.mulf %79, %82 : vector<5x5x8x32xf32>
    %cst_18 = arith.constant dense<0.000000e+00> : vector<5x8x32xf32>
    %84 = vector.multi_reduction <add>, %83, %cst_18 [1] : vector<5x5x8x32xf32> to vector<5x8x32xf32>
    %85 = tpu.reciprocal %80 {approx = true} : vector<5x8x32xf32> -> vector<5x8x32xf32>
    %86 = arith.mulf %84, %85 : vector<5x8x32xf32>
    %cst_19 = arith.constant 2.000000e-01 : f32
    %87 = vector.broadcast %cst_19 : f32 to vector<5x8x32xf32>
    %88 = arith.mulf %86, %87 : vector<5x8x32xf32>
    %89 = arith.addf %14, %88 : vector<5x8x32xf32>
    %cst_20 = arith.constant dense<0.000000e+00> : vector<5x8xf32>
    %90 = vector.multi_reduction <add>, %89, %cst_20 [2] : vector<5x8x32xf32> to vector<5x8xf32>
    %91 = vector.shape_cast %90 : vector<5x8xf32> to vector<5x8x1xf32>
    %cst_21 = arith.constant dense<0.000000e+00> : vector<5x1xf32>
    %92 = vector.multi_reduction <add>, %91, %cst_21 [1] : vector<5x8x1xf32> to vector<5x1xf32>
    %93 = vector.shape_cast %92 : vector<5x1xf32> to vector<5x1x1xf32>
    %94 = arith.mulf %89, %89 : vector<5x8x32xf32>
    %cst_22 = arith.constant dense<0.000000e+00> : vector<5x8xf32>
    %95 = vector.multi_reduction <add>, %94, %cst_22 [2] : vector<5x8x32xf32> to vector<5x8xf32>
    %96 = vector.shape_cast %95 : vector<5x8xf32> to vector<5x8x1xf32>
    %cst_23 = arith.constant dense<0.000000e+00> : vector<5x1xf32>
    %97 = vector.multi_reduction <add>, %96, %cst_23 [1] : vector<5x8x1xf32> to vector<5x1xf32>
    %98 = vector.shape_cast %97 : vector<5x1xf32> to vector<5x1x1xf32>
    %cst_24 = arith.constant 3.906250e-03 : f32
    %99 = vector.broadcast %cst_24 : f32 to vector<5x1x1xf32>
    %100 = arith.mulf %93, %99 : vector<5x1x1xf32>
    %cst_25 = arith.constant 3.906250e-03 : f32
    %101 = vector.broadcast %cst_25 : f32 to vector<5x1x1xf32>
    %102 = arith.mulf %98, %101 : vector<5x1x1xf32>
    %103 = arith.mulf %100, %100 : vector<5x1x1xf32>
    %104 = arith.subf %102, %103 : vector<5x1x1xf32>
    %105 = vector.broadcast %100 : vector<5x1x1xf32> to vector<5x8x32xf32>
    %106 = arith.subf %89, %105 : vector<5x8x32xf32>
    %cst_26 = arith.constant 9.99999974E-6 : f32
    %107 = vector.broadcast %cst_26 : f32 to vector<5x1x1xf32>
    %108 = arith.addf %104, %107 : vector<5x1x1xf32>
    %109 = math.rsqrt %108 : vector<5x1x1xf32>
    %110 = vector.broadcast %109 : vector<5x1x1xf32> to vector<5x8x32xf32>
    %111 = arith.mulf %106, %110 : vector<5x8x32xf32>
    %112 = arith.cmpf one, %111, %111 : vector<5x8x32xf32>
    %cst_27 = arith.constant 0.000000e+00 : f32
    %113 = vector.broadcast %cst_27 : f32 to vector<5x8x32xf32>
    %114 = arith.select %112, %113, %111 : vector<5x8x32xi1>, vector<5x8x32xf32>
    %115 = arith.addf %4, %114 : vector<5x8x32xf32>
    %cst_28 = arith.constant 0.000000e+00 : f32
    %116 = vector.broadcast %cst_28 : f32 to vector<5x8x32xf32>
    %117 = arith.maximumf %115, %116 : vector<5x8x32xf32>
    %118 = vector.shape_cast %117 : vector<5x8x32xf32> to vector<40x32xf32>
    %119 = arith.truncf %118 : vector<40x32xf32> to vector<40x32xbf16>
    %c0_29 = arith.constant 0 : index
    %c0_30 = arith.constant 0 : index
    %120 = vector.load %arg2[%c0_29, %c0_30] : memref<32x128xf32, #tpu.memory_space<vmem>>, vector<32x128xf32>
    %121 = arith.truncf %120 : vector<32x128xf32> to vector<32x128xbf16>
    %cst_31 = arith.constant dense<0.000000e+00> : vector<40x128xf32>
    %122 = tpu.matmul %119, %121, %cst_31 {dimension_numbers = #tpu.dot_dimension_numbers<[1], [0], [0], [1], [0, 0, 1, 1], [], []>} : vector<40x32xbf16>, vector<32x128xbf16>, vector<40x128xf32> -> vector<40x128xf32>
    %123 = vector.extract_strided_slice %122 {offsets = [0, 0], sizes = [40, 32], strides = [1, 1]} : vector<40x128xf32> to vector<40x32xf32>
    %124 = vector.shape_cast %123 : vector<40x32xf32> to vector<5x8x32xf32>
    %125 = vector.extract_strided_slice %122 {offsets = [0, 32], sizes = [40, 32], strides = [1, 1]} : vector<40x128xf32> to vector<40x32xf32>
    %126 = vector.shape_cast %125 : vector<40x32xf32> to vector<5x8x32xf32>
    %127 = vector.extract_strided_slice %122 {offsets = [0, 64], sizes = [40, 32], strides = [1, 1]} : vector<40x128xf32> to vector<40x32xf32>
    %128 = vector.shape_cast %127 : vector<40x32xf32> to vector<5x8x32xf32>
    %129 = vector.extract_strided_slice %122 {offsets = [0, 96], sizes = [40, 32], strides = [1, 1]} : vector<40x128xf32> to vector<40x32xf32>
    %130 = vector.shape_cast %129 : vector<40x32xf32> to vector<5x8x32xf32>
    %131 = vector.shape_cast %72 : vector<5x5x8x32xf32> to vector<200x32xf32>
    %132 = arith.truncf %131 : vector<200x32xf32> to vector<200x32xbf16>
    %c0_32 = arith.constant 0 : index
    %c0_33 = arith.constant 0 : index
    %133 = vector.load %arg3[%c0_32, %c0_33] : memref<32x32xf32, #tpu.memory_space<vmem>>, vector<32x32xf32>
    %134 = arith.truncf %133 : vector<32x32xf32> to vector<32x32xbf16>
    %cst_34 = arith.constant dense<0.000000e+00> : vector<200x32xf32>
    %135 = tpu.matmul %132, %134, %cst_34 {dimension_numbers = #tpu.dot_dimension_numbers<[1], [0], [0], [1], [0, 0, 1, 1], [], []>} : vector<200x32xbf16>, vector<32x32xbf16>, vector<200x32xf32> -> vector<200x32xf32>
    %136 = vector.shape_cast %135 : vector<200x32xf32> to vector<5x5x8x32xf32>
    %137 = vector.shape_cast %124 : vector<5x8x32xf32> to vector<5x1x8x32xf32>
    %138 = vector.shape_cast %126 : vector<5x8x32xf32> to vector<1x5x8x32xf32>
    %139 = vector.broadcast %137 : vector<5x1x8x32xf32> to vector<5x5x8x32xf32>
    %140 = vector.broadcast %138 : vector<1x5x8x32xf32> to vector<5x5x8x32xf32>
    %141 = arith.addf %139, %140 : vector<5x5x8x32xf32>
    %142 = arith.addf %141, %136 : vector<5x5x8x32xf32>
    %cst_35 = arith.constant dense<0.000000e+00> : vector<5x5x8xf32>
    %143 = vector.multi_reduction <add>, %142, %cst_35 [3] : vector<5x5x8x32xf32> to vector<5x5x8xf32>
    %144 = vector.shape_cast %143 : vector<5x5x8xf32> to vector<5x5x8x1xf32>
    %cst_36 = arith.constant dense<0.000000e+00> : vector<5x5x1xf32>
    %145 = vector.multi_reduction <add>, %144, %cst_36 [2] : vector<5x5x8x1xf32> to vector<5x5x1xf32>
    %146 = vector.shape_cast %145 : vector<5x5x1xf32> to vector<5x5x1x1xf32>
    %147 = arith.mulf %142, %142 : vector<5x5x8x32xf32>
    %cst_37 = arith.constant dense<0.000000e+00> : vector<5x5x8xf32>
    %148 = vector.multi_reduction <add>, %147, %cst_37 [3] : vector<5x5x8x32xf32> to vector<5x5x8xf32>
    %149 = vector.shape_cast %148 : vector<5x5x8xf32> to vector<5x5x8x1xf32>
    %cst_38 = arith.constant dense<0.000000e+00> : vector<5x5x1xf32>
    %150 = vector.multi_reduction <add>, %149, %cst_38 [2] : vector<5x5x8x1xf32> to vector<5x5x1xf32>
    %151 = vector.shape_cast %150 : vector<5x5x1xf32> to vector<5x5x1x1xf32>
    %cst_39 = arith.constant 3.906250e-03 : f32
    %152 = vector.broadcast %cst_39 : f32 to vector<5x5x1x1xf32>
    %153 = arith.mulf %146, %152 : vector<5x5x1x1xf32>
    %cst_40 = arith.constant 3.906250e-03 : f32
    %154 = vector.broadcast %cst_40 : f32 to vector<5x5x1x1xf32>
    %155 = arith.mulf %151, %154 : vector<5x5x1x1xf32>
    %156 = arith.mulf %153, %153 : vector<5x5x1x1xf32>
    %157 = arith.subf %155, %156 : vector<5x5x1x1xf32>
    %158 = vector.broadcast %153 : vector<5x5x1x1xf32> to vector<5x5x8x32xf32>
    %159 = arith.subf %142, %158 : vector<5x5x8x32xf32>
    %cst_41 = arith.constant 9.99999974E-6 : f32
    %160 = vector.broadcast %cst_41 : f32 to vector<5x5x1x1xf32>
    %161 = arith.addf %157, %160 : vector<5x5x1x1xf32>
    %162 = math.rsqrt %161 : vector<5x5x1x1xf32>
    %163 = vector.broadcast %162 : vector<5x5x1x1xf32> to vector<5x5x8x32xf32>
    %164 = arith.mulf %159, %163 : vector<5x5x8x32xf32>
    %165 = arith.cmpf one, %164, %164 : vector<5x5x8x32xf32>
    %cst_42 = arith.constant 0.000000e+00 : f32
    %166 = vector.broadcast %cst_42 : f32 to vector<5x5x8x32xf32>
    %167 = arith.select %165, %166, %164 : vector<5x5x8x32xi1>, vector<5x5x8x32xf32>
    %cst_43 = arith.constant 0.000000e+00 : f32
    %168 = vector.broadcast %cst_43 : f32 to vector<5x5x8x32xf32>
    %169 = arith.maximumf %167, %168 : vector<5x5x8x32xf32>
    %170 = arith.addf %72, %169 : vector<5x5x8x32xf32>
    %cst_44 = arith.constant 0.000000e+00 : f32
    %171 = vector.broadcast %cst_44 : f32 to vector<5x5x8x32xf32>
    %172 = arith.subf %171, %170 : vector<5x5x8x32xf32>
    %173 = math.exp %172 : vector<5x5x8x32xf32>
    %cst_45 = arith.constant 1.000000e+00 : f32
    %174 = vector.broadcast %cst_45 : f32 to vector<5x5x8x32xf32>
    %175 = arith.addf %174, %173 : vector<5x5x8x32xf32>
    %176 = tpu.reciprocal %175 {approx = true} : vector<5x5x8x32xf32> -> vector<5x5x8x32xf32>
    %177 = math.exp %176 : vector<5x5x8x32xf32>
    %cst_46 = arith.constant dense<0.000000e+00> : vector<5x8x32xf32>
    %178 = vector.multi_reduction <add>, %177, %cst_46 [1] : vector<5x5x8x32xf32> to vector<5x8x32xf32>
    %179 = vector.shape_cast %130 : vector<5x8x32xf32> to vector<1x5x8x32xf32>
    %180 = vector.broadcast %179 : vector<1x5x8x32xf32> to vector<5x5x8x32xf32>
    %181 = arith.mulf %177, %180 : vector<5x5x8x32xf32>
    %cst_47 = arith.constant dense<0.000000e+00> : vector<5x8x32xf32>
    %182 = vector.multi_reduction <add>, %181, %cst_47 [1] : vector<5x5x8x32xf32> to vector<5x8x32xf32>
    %183 = tpu.reciprocal %178 {approx = true} : vector<5x8x32xf32> -> vector<5x8x32xf32>
    %184 = arith.mulf %182, %183 : vector<5x8x32xf32>
    %cst_48 = arith.constant 2.000000e-01 : f32
    %185 = vector.broadcast %cst_48 : f32 to vector<5x8x32xf32>
    %186 = arith.mulf %184, %185 : vector<5x8x32xf32>
    %187 = arith.addf %128, %186 : vector<5x8x32xf32>
    %cst_49 = arith.constant dense<0.000000e+00> : vector<5x8xf32>
    %188 = vector.multi_reduction <add>, %187, %cst_49 [2] : vector<5x8x32xf32> to vector<5x8xf32>
    %189 = vector.shape_cast %188 : vector<5x8xf32> to vector<5x8x1xf32>
    %cst_50 = arith.constant dense<0.000000e+00> : vector<5x1xf32>
    %190 = vector.multi_reduction <add>, %189, %cst_50 [1] : vector<5x8x1xf32> to vector<5x1xf32>
    %191 = vector.shape_cast %190 : vector<5x1xf32> to vector<5x1x1xf32>
    %192 = arith.mulf %187, %187 : vector<5x8x32xf32>
    %cst_51 = arith.constant dense<0.000000e+00> : vector<5x8xf32>
    %193 = vector.multi_reduction <add>, %192, %cst_51 [2] : vector<5x8x32xf32> to vector<5x8xf32>
    %194 = vector.shape_cast %193 : vector<5x8xf32> to vector<5x8x1xf32>
    %cst_52 = arith.constant dense<0.000000e+00> : vector<5x1xf32>
    %195 = vector.multi_reduction <add>, %194, %cst_52 [1] : vector<5x8x1xf32> to vector<5x1xf32>
    %196 = vector.shape_cast %195 : vector<5x1xf32> to vector<5x1x1xf32>
    %cst_53 = arith.constant 3.906250e-03 : f32
    %197 = vector.broadcast %cst_53 : f32 to vector<5x1x1xf32>
    %198 = arith.mulf %191, %197 : vector<5x1x1xf32>
    %cst_54 = arith.constant 3.906250e-03 : f32
    %199 = vector.broadcast %cst_54 : f32 to vector<5x1x1xf32>
    %200 = arith.mulf %196, %199 : vector<5x1x1xf32>
    %201 = arith.mulf %198, %198 : vector<5x1x1xf32>
    %202 = arith.subf %200, %201 : vector<5x1x1xf32>
    %203 = vector.broadcast %198 : vector<5x1x1xf32> to vector<5x8x32xf32>
    %204 = arith.subf %187, %203 : vector<5x8x32xf32>
    %cst_55 = arith.constant 9.99999974E-6 : f32
    %205 = vector.broadcast %cst_55 : f32 to vector<5x1x1xf32>
    %206 = arith.addf %202, %205 : vector<5x1x1xf32>
    %207 = math.rsqrt %206 : vector<5x1x1xf32>
    %208 = vector.broadcast %207 : vector<5x1x1xf32> to vector<5x8x32xf32>
    %209 = arith.mulf %204, %208 : vector<5x8x32xf32>
    %210 = arith.cmpf one, %209, %209 : vector<5x8x32xf32>
    %cst_56 = arith.constant 0.000000e+00 : f32
    %211 = vector.broadcast %cst_56 : f32 to vector<5x8x32xf32>
    %212 = arith.select %210, %211, %209 : vector<5x8x32xi1>, vector<5x8x32xf32>
    %213 = arith.addf %117, %212 : vector<5x8x32xf32>
    %cst_57 = arith.constant 0.000000e+00 : f32
    %214 = vector.broadcast %cst_57 : f32 to vector<5x8x32xf32>
    %215 = arith.maximumf %213, %214 : vector<5x8x32xf32>
    %216 = arith.mulf %215, %215 : vector<5x8x32xf32>
    %cst_58 = arith.constant dense<0.000000e+00> : vector<5x8xf32>
    %217 = vector.multi_reduction <add>, %216, %cst_58 [2] : vector<5x8x32xf32> to vector<5x8xf32>
    %218 = vector.shape_cast %217 : vector<5x8xf32> to vector<5x8x1xf32>
    %cst_59 = arith.constant 1.000000e-24 : f32
    %219 = vector.broadcast %cst_59 : f32 to vector<5x8x1xf32>
    %220 = arith.maximumf %218, %219 : vector<5x8x1xf32>
    %221 = math.rsqrt %220 : vector<5x8x1xf32>
    %222 = vector.broadcast %221 : vector<5x8x1xf32> to vector<5x8x32xf32>
    %223 = arith.mulf %215, %222 : vector<5x8x32xf32>
    %c0_60 = arith.constant 0 : index
    %c0_61 = arith.constant 0 : index
    %224 = vector.load %arg4[%c0_60, %c0_61] : memref<5x32xf32, #tpu.memory_space<vmem>>, vector<5x32xf32>
    %cst_62 = arith.constant 0.000000e+00 : f32
    %225 = vector.broadcast %cst_62 : f32 to vector<5x32xf32>
    %226 = arith.maximumf %224, %225 : vector<5x32xf32>
    %227 = arith.mulf %226, %226 : vector<5x32xf32>
    %cst_63 = arith.constant dense<0.000000e+00> : vector<5xf32>
    %228 = vector.multi_reduction <add>, %227, %cst_63 [1] : vector<5x32xf32> to vector<5xf32>
    %229 = vector.shape_cast %228 : vector<5xf32> to vector<5x1xf32>
    %cst_64 = arith.constant 1.000000e-24 : f32
    %230 = vector.broadcast %cst_64 : f32 to vector<5x1xf32>
    %231 = arith.maximumf %229, %230 : vector<5x1xf32>
    %232 = math.rsqrt %231 : vector<5x1xf32>
    %233 = vector.broadcast %232 : vector<5x1xf32> to vector<5x32xf32>
    %234 = arith.mulf %226, %233 : vector<5x32xf32>
    %235 = vector.shape_cast %234 : vector<5x32xf32> to vector<5x1x32xf32>
    %236 = vector.broadcast %235 : vector<5x1x32xf32> to vector<5x8x32xf32>
    %237 = arith.mulf %223, %236 : vector<5x8x32xf32>
    %cst_65 = arith.constant dense<0.000000e+00> : vector<5x8xf32>
    %238 = vector.multi_reduction <add>, %237, %cst_65 [2] : vector<5x8x32xf32> to vector<5x8xf32>
    %c0_66 = arith.constant 0 : index
    %c0_67 = arith.constant 0 : index
    %239 = vector.load %arg7[%c0_66, %c0_67] : memref<5x8xf32, #tpu.memory_space<vmem>>, vector<5x8xf32>
    tpu.vector_store %arg7[%c0_66, %c0_67], %238 {strides = array<i32>} : memref<5x8xf32, #tpu.memory_space<vmem>>, vector<5x8xf32>,
    %c0_68 = arith.constant 0 : index
    %c0_69 = arith.constant 0 : index
    %240 = vector.load %arg5[%c0_68, %c0_69] : memref<1x32xf32, #tpu.memory_space<vmem>>, vector<1x32xf32>
    %241 = vector.shape_cast %240 : vector<1x32xf32> to vector<1x1x1x32xf32>
    %c0_70 = arith.constant 0 : index
    %242 = memref.load %arg6[%c0_70] : memref<1xf32, #tpu.memory_space<smem>>
    %243 = vector.broadcast %241 : vector<1x1x1x32xf32> to vector<5x5x8x32xf32>
    %244 = arith.mulf %170, %243 : vector<5x5x8x32xf32>
    %cst_71 = arith.constant dense<0.000000e+00> : vector<5x5x8xf32>
    %245 = vector.multi_reduction <add>, %244, %cst_71 [3] : vector<5x5x8x32xf32> to vector<5x5x8xf32>
    %246 = vector.broadcast %242 : f32 to vector<5x5x8xf32>
    %247 = arith.addf %245, %246 : vector<5x5x8xf32>
    %c0_72 = arith.constant 0 : index
    %c0_73 = arith.constant 0 : index
    %c0_74 = arith.constant 0 : index
    %248 = vector.load %arg8[%c0_72, %c0_73, %c0_74] : memref<5x5x8xf32, #tpu.memory_space<vmem>>, vector<5x5x8xf32>
    tpu.vector_store %arg8[%c0_72, %c0_73, %c0_74], %247 {strides = array<i32>} : memref<5x5x8xf32, #tpu.memory_space<vmem>>, vector<5x5x8xf32>,
    return
  }
}

</mosaic_0001>

<llo_original>
// kernel: action_forward.1
$region0: #{action_forward.1}
  #allocation0 [shape = 'u32[]', space=smem, size = 0x4, offset = 0x4, fixed_abs, tag = 'smem constant byte address 0x4 - core index']
  #allocation1 [shape = 'u32[144,128]{1,0:T(1,128)}', space=vmem, size = 0x12000, scoped, tag = 'internal scratch']
  #allocation2 [shape = 'f32[1]{0:T(128)S(6)}', space=smem, size = 0x200, scoped, tag = 'scoped memory for action_forward.1']
  %s0 = inlined_call_operand.vmem [shape: f32[40,16,32], index: 0, kind: input, shape index: {}]
  %s1 = inlined_call_operand.vmem [shape: f32[32,192], index: 1, kind: input, shape index: {}]
  %s2 = inlined_call_operand.vmem [shape: f32[32,128], index: 2, kind: input, shape index: {}]
  %s3 = inlined_call_operand.vmem [shape: f32[32,32], index: 3, kind: input, shape index: {}]
  %s4 = inlined_call_operand.vmem [shape: f32[5,32], index: 4, kind: input, shape index: {}]
  %s5 = inlined_call_operand.vmem [shape: f32[1,32], index: 5, kind: input, shape index: {}]
  %s6 = inlined_call_operand.<no memory space> [shape: f32[1], index: 6, kind: input, shape index: {}]
  %s7 = inlined_call_operand.vmem [shape: f32[5,8], index: 7, kind: output, shape index: {0}]
  %s8 = inlined_call_operand.vmem [shape: f32[5,5,8], index: 8, kind: output, shape index: {1}]
  %9 = xla_tuple %s7, %s8
  %s10 = sld [smem:[#allocation0]]
  $region46: #{action_forward.1} parent=0
    _
  %s12 = ssub.s32 1, %s10
  %s13 = scalar_select 0, %s12, %s10
  %14 = sst [smem:[#allocation2]] %s6
  // Predicated region
  $region2: #{action_forward.1} parent=0 // pred_check
    _
  $region3: #{action_forward.1} parent=0 // pred_check_branch
    %16 = sbr.rel (0) target = $region5
  $region4: #{action_forward.1} parent=0 // pred_region
    _
  $region5: #{action_forward.1} parent=0 // pred_fallthru
    _
  // Predicated region
  $region6: #{action_forward.1} parent=0 // pred_check
    _
  $region7: #{action_forward.1} parent=0 // pred_check_branch
    %18 = sbr.rel (0) target = $region9
  $region8: #{action_forward.1} parent=0 // pred_region
    _
  $region9: #{action_forward.1} parent=0 // pred_fallthru
    _
  // Predicated region
  $region10: #{action_forward.1} parent=0 // pred_check
    _
  $region11: #{action_forward.1} parent=0 // pred_check_branch
    %20 = sbr.rel (0) target = $region13
  $region12: #{action_forward.1} parent=0 // pred_region
    _
  $region13: #{action_forward.1} parent=0 // pred_fallthru
    _
  // Predicated region
  $region14: #{action_forward.1} parent=0 // pred_check
    _
  $region15: #{action_forward.1} parent=0 // pred_check_branch
    %22 = sbr.rel (0) target = $region17
  $region16: #{action_forward.1} parent=0 // pred_region
    _
  $region17: #{action_forward.1} parent=0 // pred_fallthru
    _
  // Predicated region
  $region18: #{action_forward.1} parent=0 // pred_check
    _
  $region19: #{action_forward.1} parent=0 // pred_check_branch
    %24 = sbr.rel (0) target = $region21
  $region20: #{action_forward.1} parent=0 // pred_region
    _
  $region21: #{action_forward.1} parent=0 // pred_fallthru
    _
  // Predicated region
  $region22: #{action_forward.1} parent=0 // pred_check
    _
  $region23: #{action_forward.1} parent=0 // pred_check_branch
    %26 = sbr.rel (0) target = $region25
  $region24: #{action_forward.1} parent=0 // pred_region
    _
  $region25: #{action_forward.1} parent=0 // pred_fallthru
    _
  // Predicated region
  $region26: #{action_forward.1} parent=0 // pred_check
    _
  $region27: #{action_forward.1} parent=0 // pred_check_branch
    %28 = sbr.rel (0) target = $region29
  $region28: #{action_forward.1} parent=0 // pred_region
    _
  $region29: #{action_forward.1} parent=0 // pred_fallthru
    _
  %v30 = vld [vmem:[%s0] sm:$0xff]
  %v31 = vld [vmem:[%s0 + $0x8] sm:$0xff]
  %v32 = vld [vmem:[%s0 + $0x10] sm:$0xff]
  %v33 = vld [vmem:[%s0 + $0x18] sm:$0xff]
  %v34 = vld [vmem:[%s0 + $0x20] sm:$0xff]
  %v35 = vld [vmem:[%s0 + $0x28] sm:$0xff]
  %v36 = vld [vmem:[%s0 + $0x30] sm:$0xff]
  %v37 = vld [vmem:[%s0 + $0x38] sm:$0xff]
  %v38 = vld [vmem:[%s0 + $0x40] sm:$0xff]
  %v39 = vld [vmem:[%s0 + $0x48] sm:$0xff]
  %v40 = vld [vmem:[%s0 + $0x50] sm:$0xff]
  %v41 = vld [vmem:[%s0 + $0x58] sm:$0xff]
  %v42 = vld [vmem:[%s0 + $0x60] sm:$0xff]
  %v43 = vld [vmem:[%s0 + $0x68] sm:$0xff]
  %v44 = vld [vmem:[%s0 + $0x70] sm:$0xff]
  %v45 = vld [vmem:[%s0 + $0x78] sm:$0xff]
  %v46 = vld [vmem:[%s0 + $0x80] sm:$0xff]
  %v47 = vld [vmem:[%s0 + $0x88] sm:$0xff]
  %v48 = vld [vmem:[%s0 + $0x90] sm:$0xff]
  %v49 = vld [vmem:[%s0 + $0x98] sm:$0xff]
  %v50 = vld [vmem:[%s0 + $0xa0] sm:$0xff]
  %v51 = vld [vmem:[%s0 + $0xa8] sm:$0xff]
  %v52 = vld [vmem:[%s0 + $0xb0] sm:$0xff]
  %v53 = vld [vmem:[%s0 + $0xb8] sm:$0xff]
  %v54 = vld [vmem:[%s0 + $0xc0] sm:$0xff]
  %v55 = vld [vmem:[%s0 + $0xc8] sm:$0xff]
  %v56 = vld [vmem:[%s0 + $0xd0] sm:$0xff]
  %v57 = vld [vmem:[%s0 + $0xd8] sm:$0xff]
  %v58 = vld [vmem:[%s0 + $0xe0] sm:$0xff]
  %v59 = vld [vmem:[%s0 + $0xe8] sm:$0xff]
  %v60 = vld [vmem:[%s0 + $0xf0] sm:$0xff]
  %v61 = vld [vmem:[%s0 + $0xf8] sm:$0xff]
  %v62 = vld [vmem:[%s0 + $0x100] sm:$0xff]
  %v63 = vld [vmem:[%s0 + $0x108] sm:$0xff]
  %v64 = vld [vmem:[%s0 + $0x110] sm:$0xff]
  %v65 = vld [vmem:[%s0 + $0x118] sm:$0xff]
  %v66 = vld [vmem:[%s0 + $0x120] sm:$0xff]
  %v67 = vld [vmem:[%s0 + $0x128] sm:$0xff]
  %v68 = vld [vmem:[%s0 + $0x130] sm:$0xff]
  %v69 = vld [vmem:[%s0 + $0x138] sm:$0xff]
  %v70 = vld [vmem:[%s0 + $0x140] sm:$0xff]
  %v71 = vld [vmem:[%s0 + $0x148] sm:$0xff]
  %v72 = vld [vmem:[%s0 + $0x150] sm:$0xff]
  %v73 = vld [vmem:[%s0 + $0x158] sm:$0xff]
  %v74 = vld [vmem:[%s0 + $0x160] sm:$0xff]
  %v75 = vld [vmem:[%s0 + $0x168] sm:$0xff]
  %v76 = vld [vmem:[%s0 + $0x170] sm:$0xff]
  %v77 = vld [vmem:[%s0 + $0x178] sm:$0xff]
  %v78 = vld [vmem:[%s0 + $0x180] sm:$0xff]
  %v79 = vld [vmem:[%s0 + $0x188] sm:$0xff]
  %v80 = vld [vmem:[%s0 + $0x190] sm:$0xff]
  %v81 = vld [vmem:[%s0 + $0x198] sm:$0xff]
  %v82 = vld [vmem:[%s0 + $0x1a0] sm:$0xff]
  %v83 = vld [vmem:[%s0 + $0x1a8] sm:$0xff]
  %v84 = vld [vmem:[%s0 + $0x1b0] sm:$0xff]
  %v85 = vld [vmem:[%s0 + $0x1b8] sm:$0xff]
  %v86 = vld [vmem:[%s0 + $0x1c0] sm:$0xff]
  %v87 = vld [vmem:[%s0 + $0x1c8] sm:$0xff]
  %v88 = vld [vmem:[%s0 + $0x1d0] sm:$0xff]
  %v89 = vld [vmem:[%s0 + $0x1d8] sm:$0xff]
  %v90 = vld [vmem:[%s0 + $0x1e0] sm:$0xff]
  %v91 = vld [vmem:[%s0 + $0x1e8] sm:$0xff]
  %v92 = vld [vmem:[%s0 + $0x1f0] sm:$0xff]
  %v93 = vld [vmem:[%s0 + $0x1f8] sm:$0xff]
  %v94 = vld [vmem:[%s0 + $0x200] sm:$0xff]
  %v95 = vld [vmem:[%s0 + $0x208] sm:$0xff]
  %v96 = vld [vmem:[%s0 + $0x210] sm:$0xff]
  %v97 = vld [vmem:[%s0 + $0x218] sm:$0xff]
  %v98 = vld [vmem:[%s0 + $0x220] sm:$0xff]
  %v99 = vld [vmem:[%s0 + $0x228] sm:$0xff]
  %v100 = vld [vmem:[%s0 + $0x230] sm:$0xff]
  %v101 = vld [vmem:[%s0 + $0x238] sm:$0xff]
  %v102 = vld [vmem:[%s0 + $0x240] sm:$0xff]
  %v103 = vld [vmem:[%s0 + $0x248] sm:$0xff]
  %v104 = vld [vmem:[%s0 + $0x250] sm:$0xff]
  %v105 = vld [vmem:[%s0 + $0x258] sm:$0xff]
  %v106 = vld [vmem:[%s0 + $0x260] sm:$0xff]
  %v107 = vld [vmem:[%s0 + $0x268] sm:$0xff]
  %v108 = vld [vmem:[%s0 + $0x270] sm:$0xff]
  %v109 = vld [vmem:[%s0 + $0x278] sm:$0xff]
  %vm110 = vcmask 261120
  %v111 = vsel %vm110, %v30, 0.0
  %v112 = vsel %vm110, %v31, 0.0
  %v113 = vadd.f32 %v111, %v112
  %v114 = vrot.slane %v113, 4
  %v115 = vadd.f32 %v113, %v114
  %v116 = vrot.slane %v115, 2
  %v117 = vadd.f32 %v115, %v116
  %v118 = vrot.slane %v117, 1
  %v119 = vadd.f32 %v117, %v118
  %v120 = vsel %vm110, %v32, 0.0
  %v121 = vsel %vm110, %v33, 0.0
  %v122 = vadd.f32 %v120, %v121
  %v123 = vrot.slane %v122, 4
  %v124 = vadd.f32 %v122, %v123
  %v125 = vrot.slane %v124, 2
  %v126 = vadd.f32 %v124, %v125
  %v127 = vrot.slane %v126, 1
  %v128 = vadd.f32 %v126, %v127
  %v129 = vsel %vm110, %v34, 0.0
  %v130 = vsel %vm110, %v35, 0.0
  %v131 = vadd.f32 %v129, %v130
  %v132 = vrot.slane %v131, 4
  %v133 = vadd.f32 %v131, %v132
  %v134 = vrot.slane %v133, 2
  %v135 = vadd.f32 %v133, %v134
  %v136 = vrot.slane %v135, 1
  %v137 = vadd.f32 %v135, %v136
  %v138 = vsel %vm110, %v36, 0.0
  %v139 = vsel %vm110, %v37, 0.0
  %v140 = vadd.f32 %v138, %v139
  %v141 = vrot.slane %v140, 4
  %v142 = vadd.f32 %v140, %v141
  %v143 = vrot.slane %v142, 2
  %v144 = vadd.f32 %v142, %v143
  %v145 = vrot.slane %v144, 1
  %v146 = vadd.f32 %v144, %v145
  %v147 = vsel %vm110, %v38, 0.0
  %v148 = vsel %vm110, %v39, 0.0
  %v149 = vadd.f32 %v147, %v148
  %v150 = vrot.slane %v149, 4
  %v151 = vadd.f32 %v149, %v150
  %v152 = vrot.slane %v151, 2
  %v153 = vadd.f32 %v151, %v152
  %v154 = vrot.slane %v153, 1
  %v155 = vadd.f32 %v153, %v154
  %v156 = vsel %vm110, %v40, 0.0
  %v157 = vsel %vm110, %v41, 0.0
  %v158 = vadd.f32 %v156, %v157
  %v159 = vrot.slane %v158, 4
  %v160 = vadd.f32 %v158, %v159
  %v161 = vrot.slane %v160, 2
  %v162 = vadd.f32 %v160, %v161
  %v163 = vrot.slane %v162, 1
  %v164 = vadd.f32 %v162, %v163
  %v165 = vsel %vm110, %v42, 0.0
  %v166 = vsel %vm110, %v43, 0.0
  %v167 = vadd.f32 %v165, %v166
  %v168 = vrot.slane %v167, 4
  %v169 = vadd.f32 %v167, %v168
  %v170 = vrot.slane %v169, 2
  %v171 = vadd.f32 %v169, %v170
  %v172 = vrot.slane %v171, 1
  %v173 = vadd.f32 %v171, %v172
  %v174 = vsel %vm110, %v44, 0.0
  %v175 = vsel %vm110, %v45, 0.0
  %v176 = vadd.f32 %v174, %v175
  %v177 = vrot.slane %v176, 4
  %v178 = vadd.f32 %v176, %v177
  %v179 = vrot.slane %v178, 2
  %v180 = vadd.f32 %v178, %v179
  %v181 = vrot.slane %v180, 1
  %v182 = vadd.f32 %v180, %v181
  %v183 = vsel %vm110, %v46, 0.0
  %v184 = vsel %vm110, %v47, 0.0
  %v185 = vadd.f32 %v183, %v184
  %v186 = vrot.slane %v185, 4
  %v187 = vadd.f32 %v185, %v186
  %v188 = vrot.slane %v187, 2
  %v189 = vadd.f32 %v187, %v188
  %v190 = vrot.slane %v189, 1
  %v191 = vadd.f32 %v189, %v190
  %v192 = vsel %vm110, %v48, 0.0
  %v193 = vsel %vm110, %v49, 0.0
  %v194 = vadd.f32 %v192, %v193
  %v195 = vrot.slane %v194, 4
  %v196 = vadd.f32 %v194, %v195
  %v197 = vrot.slane %v196, 2
  %v198 = vadd.f32 %v196, %v197
  %v199 = vrot.slane %v198, 1
  %v200 = vadd.f32 %v198, %v199
  %v201 = vsel %vm110, %v50, 0.0
  %v202 = vsel %vm110, %v51, 0.0
  %v203 = vadd.f32 %v201, %v202
  %v204 = vrot.slane %v203, 4
  %v205 = vadd.f32 %v203, %v204
  %v206 = vrot.slane %v205, 2
  %v207 = vadd.f32 %v205, %v206
  %v208 = vrot.slane %v207, 1
  %v209 = vadd.f32 %v207, %v208
  %v210 = vsel %vm110, %v52, 0.0
  %v211 = vsel %vm110, %v53, 0.0
  %v212 = vadd.f32 %v210, %v211
  %v213 = vrot.slane %v212, 4
  %v214 = vadd.f32 %v212, %v213
  %v215 = vrot.slane %v214, 2
  %v216 = vadd.f32 %v214, %v215
  %v217 = vrot.slane %v216, 1
  %v218 = vadd.f32 %v216, %v217
  %v219 = vsel %vm110, %v54, 0.0
  %v220 = vsel %vm110, %v55, 0.0
  %v221 = vadd.f32 %v219, %v220
  %v222 = vrot.slane %v221, 4
  %v223 = vadd.f32 %v221, %v222
  %v224 = vrot.slane %v223, 2
  %v225 = vadd.f32 %v223, %v224
  %v226 = vrot.slane %v225, 1
  %v227 = vadd.f32 %v225, %v226
  %v228 = vsel %vm110, %v56, 0.0
  %v229 = vsel %vm110, %v57, 0.0
  %v230 = vadd.f32 %v228, %v229
  %v231 = vrot.slane %v230, 4
  %v232 = vadd.f32 %v230, %v231
  %v233 = vrot.slane %v232, 2
  %v234 = vadd.f32 %v232, %v233
  %v235 = vrot.slane %v234, 1
  %v236 = vadd.f32 %v234, %v235
  %v237 = vsel %vm110, %v58, 0.0
  %v238 = vsel %vm110, %v59, 0.0
  %v239 = vadd.f32 %v237, %v238
  %v240 = vrot.slane %v239, 4
  %v241 = vadd.f32 %v239, %v240
  %v242 = vrot.slane %v241, 2
  %v243 = vadd.f32 %v241, %v242
  %v244 = vrot.slane %v243, 1
  %v245 = vadd.f32 %v243, %v244
  %v246 = vsel %vm110, %v60, 0.0
  %v247 = vsel %vm110, %v61, 0.0
  %v248 = vadd.f32 %v246, %v247
  %v249 = vrot.slane %v248, 4
  %v250 = vadd.f32 %v248, %v249
  %v251 = vrot.slane %v250, 2
  %v252 = vadd.f32 %v250, %v251
  %v253 = vrot.slane %v252, 1
  %v254 = vadd.f32 %v252, %v253
  %v255 = vsel %vm110, %v62, 0.0
  %v256 = vsel %vm110, %v63, 0.0
  %v257 = vadd.f32 %v255, %v256
  %v258 = vrot.slane %v257, 4
  %v259 = vadd.f32 %v257, %v258
  %v260 = vrot.slane %v259, 2
  %v261 = vadd.f32 %v259, %v260
  %v262 = vrot.slane %v261, 1
  %v263 = vadd.f32 %v261, %v262
  %v264 = vsel %vm110, %v64, 0.0
  %v265 = vsel %vm110, %v65, 0.0
  %v266 = vadd.f32 %v264, %v265
  %v267 = vrot.slane %v266, 4
  %v268 = vadd.f32 %v266, %v267
  %v269 = vrot.slane %v268, 2
  %v270 = vadd.f32 %v268, %v269
  %v271 = vrot.slane %v270, 1
  %v272 = vadd.f32 %v270, %v271
  %v273 = vsel %vm110, %v66, 0.0
  %v274 = vsel %vm110, %v67, 0.0
  %v275 = vadd.f32 %v273, %v274
  %v276 = vrot.slane %v275, 4
  %v277 = vadd.f32 %v275, %v276
  %v278 = vrot.slane %v277, 2
  %v279 = vadd.f32 %v277, %v278
  %v280 = vrot.slane %v279, 1
  %v281 = vadd.f32 %v279, %v280
  %v282 = vsel %vm110, %v68, 0.0
  %v283 = vsel %vm110, %v69, 0.0
  %v284 = vadd.f32 %v282, %v283
  %v285 = vrot.slane %v284, 4
  %v286 = vadd.f32 %v284, %v285
  %v287 = vrot.slane %v286, 2
  %v288 = vadd.f32 %v286, %v287
  %v289 = vrot.slane %v288, 1
  %v290 = vadd.f32 %v288, %v289
  %v291 = vsel %vm110, %v70, 0.0
  %v292 = vsel %vm110, %v71, 0.0
  %v293 = vadd.f32 %v291, %v292
  %v294 = vrot.slane %v293, 4
  %v295 = vadd.f32 %v293, %v294
  %v296 = vrot.slane %v295, 2
  %v297 = vadd.f32 %v295, %v296
  %v298 = vrot.slane %v297, 1
  %v299 = vadd.f32 %v297, %v298
  %v300 = vsel %vm110, %v72, 0.0
  %v301 = vsel %vm110, %v73, 0.0
  %v302 = vadd.f32 %v300, %v301
  %v303 = vrot.slane %v302, 4
  %v304 = vadd.f32 %v302, %v303
  %v305 = vrot.slane %v304, 2
  %v306 = vadd.f32 %v304, %v305
  %v307 = vrot.slane %v306, 1
  %v308 = vadd.f32 %v306, %v307
  %v309 = vsel %vm110, %v74, 0.0
  %v310 = vsel %vm110, %v75, 0.0
  %v311 = vadd.f32 %v309, %v310
  %v312 = vrot.slane %v311, 4
  %v313 = vadd.f32 %v311, %v312
  %v314 = vrot.slane %v313, 2
  %v315 = vadd.f32 %v313, %v314
  %v316 = vrot.slane %v315, 1
  %v317 = vadd.f32 %v315, %v316
  %v318 = vsel %vm110, %v76, 0.0
  %v319 = vsel %vm110, %v77, 0.0
  %v320 = vadd.f32 %v318, %v319
  %v321 = vrot.slane %v320, 4
  %v322 = vadd.f32 %v320, %v321
  %v323 = vrot.slane %v322, 2
  %v324 = vadd.f32 %v322, %v323
  %v325 = vrot.slane %v324, 1
  %v326 = vadd.f32 %v324, %v325
  %v327 = vsel %vm110, %v78, 0.0
  %v328 = vsel %vm110, %v79, 0.0
  %v329 = vadd.f32 %v327, %v328
  %v330 = vrot.slane %v329, 4
  %v331 = vadd.f32 %v329, %v330
  %v332 = vrot.slane %v331, 2
  %v333 = vadd.f32 %v331, %v332
  %v334 = vrot.slane %v333, 1
  %v335 = vadd.f32 %v333, %v334
  %v336 = vsel %vm110, %v80, 0.0
  %v337 = vsel %vm110, %v81, 0.0
  %v338 = vadd.f32 %v336, %v337
  %v339 = vrot.slane %v338, 4
  %v340 = vadd.f32 %v338, %v339
  %v341 = vrot.slane %v340, 2
  %v342 = vadd.f32 %v340, %v341
  %v343 = vrot.slane %v342, 1
  %v344 = vadd.f32 %v342, %v343
  %v345 = vsel %vm110, %v82, 0.0
  %v346 = vsel %vm110, %v83, 0.0
  %v347 = vadd.f32 %v345, %v346
  %v348 = vrot.slane %v347, 4
  %v349 = vadd.f32 %v347, %v348
  %v350 = vrot.slane %v349, 2
  %v351 = vadd.f32 %v349, %v350
  %v352 = vrot.slane %v351, 1
  %v353 = vadd.f32 %v351, %v352
  %v354 = vsel %vm110, %v84, 0.0
  %v355 = vsel %vm110, %v85, 0.0
  %v356 = vadd.f32 %v354, %v355
  %v357 = vrot.slane %v356, 4
  %v358 = vadd.f32 %v356, %v357
  %v359 = vrot.slane %v358, 2
  %v360 = vadd.f32 %v358, %v359
  %v361 = vrot.slane %v360, 1
  %v362 = vadd.f32 %v360, %v361
  %v363 = vsel %vm110, %v86, 0.0
  %v364 = vsel %vm110, %v87, 0.0
  %v365 = vadd.f32 %v363, %v364
  %v366 = vrot.slane %v365, 4
  %v367 = vadd.f32 %v365, %v366
  %v368 = vrot.slane %v367, 2
  %v369 = vadd.f32 %v367, %v368
  %v370 = vrot.slane %v369, 1
  %v371 = vadd.f32 %v369, %v370
  %v372 = vsel %vm110, %v88, 0.0
  %v373 = vsel %vm110, %v89, 0.0
  %v374 = vadd.f32 %v372, %v373
  %v375 = vrot.slane %v374, 4
  %v376 = vadd.f32 %v374, %v375
  %v377 = vrot.slane %v376, 2
  %v378 = vadd.f32 %v376, %v377
  %v379 = vrot.slane %v378, 1
  %v380 = vadd.f32 %v378, %v379
  %v381 = vsel %vm110, %v90, 0.0
  %v382 = vsel %vm110, %v91, 0.0
  %v383 = vadd.f32 %v381, %v382
  %v384 = vrot.slane %v383, 4
  %v385 = vadd.f32 %v383, %v384
  %v386 = vrot.slane %v385, 2
  %v387 = vadd.f32 %v385, %v386
  %v388 = vrot.slane %v387, 1
  %v389 = vadd.f32 %v387, %v388
  %v390 = vsel %vm110, %v92, 0.0
  %v391 = vsel %vm110, %v93, 0.0
  %v392 = vadd.f32 %v390, %v391
  %v393 = vrot.slane %v392, 4
  %v394 = vadd.f32 %v392, %v393
  %v395 = vrot.slane %v394, 2
  %v396 = vadd.f32 %v394, %v395
  %v397 = vrot.slane %v396, 1
  %v398 = vadd.f32 %v396, %v397
  %v399 = vsel %vm110, %v94, 0.0
  %v400 = vsel %vm110, %v95, 0.0
  %v401 = vadd.f32 %v399, %v400
  %v402 = vrot.slane %v401, 4
  %v403 = vadd.f32 %v401, %v402
  %v404 = vrot.slane %v403, 2
  %v405 = vadd.f32 %v403, %v404
  %v406 = vrot.slane %v405, 1
  %v407 = vadd.f32 %v405, %v406
  %v408 = vsel %vm110, %v96, 0.0
  %v409 = vsel %vm110, %v97, 0.0
  %v410 = vadd.f32 %v408, %v409
  %v411 = vrot.slane %v410, 4
  %v412 = vadd.f32 %v410, %v411
  %v413 = vrot.slane %v412, 2
  %v414 = vadd.f32 %v412, %v413
  %v415 = vrot.slane %v414, 1
  %v416 = vadd.f32 %v414, %v415
  %v417 = vsel %vm110, %v98, 0.0
  %v418 = vsel %vm110, %v99, 0.0
  %v419 = vadd.f32 %v417, %v418
  %v420 = vrot.slane %v419, 4
  %v421 = vadd.f32 %v419, %v420
  %v422 = vrot.slane %v421, 2
  %v423 = vadd.f32 %v421, %v422
  %v424 = vrot.slane %v423, 1
  %v425 = vadd.f32 %v423, %v424
  %v426 = vsel %vm110, %v100, 0.0
  %v427 = vsel %vm110, %v101, 0.0
  %v428 = vadd.f32 %v426, %v427
  %v429 = vrot.slane %v428, 4
  %v430 = vadd.f32 %v428, %v429
  %v431 = vrot.slane %v430, 2
  %v432 = vadd.f32 %v430, %v431
  %v433 = vrot.slane %v432, 1
  %v434 = vadd.f32 %v432, %v433
  %v435 = vsel %vm110, %v102, 0.0
  %v436 = vsel %vm110, %v103, 0.0
  %v437 = vadd.f32 %v435, %v436
  %v438 = vrot.slane %v437, 4
  %v439 = vadd.f32 %v437, %v438
  %v440 = vrot.slane %v439, 2
  %v441 = vadd.f32 %v439, %v440
  %v442 = vrot.slane %v441, 1
  %v443 = vadd.f32 %v441, %v442
  %v444 = vsel %vm110, %v104, 0.0
  %v445 = vsel %vm110, %v105, 0.0
  %v446 = vadd.f32 %v444, %v445
  %v447 = vrot.slane %v446, 4
  %v448 = vadd.f32 %v446, %v447
  %v449 = vrot.slane %v448, 2
  %v450 = vadd.f32 %v448, %v449
  %v451 = vrot.slane %v450, 1
  %v452 = vadd.f32 %v450, %v451
  %v453 = vsel %vm110, %v106, 0.0
  %v454 = vsel %vm110, %v107, 0.0
  %v455 = vadd.f32 %v453, %v454
  %v456 = vrot.slane %v455, 4
  %v457 = vadd.f32 %v455, %v456
  %v458 = vrot.slane %v457, 2
  %v459 = vadd.f32 %v457, %v458
  %v460 = vrot.slane %v459, 1
  %v461 = vadd.f32 %v459, %v460
  %v462 = vsel %vm110, %v108, 0.0
  %v463 = vsel %vm110, %v109, 0.0
  %v464 = vadd.f32 %v462, %v463
  %v465 = vrot.slane %v464, 4
  %v466 = vadd.f32 %v464, %v465
  %v467 = vrot.slane %v466, 2
  %v468 = vadd.f32 %v466, %v467
  %v469 = vrot.slane %v468, 1
  %v470 = vadd.f32 %v468, %v469
  %v471 = vmul.f32 %v119, 0.0625
  %v472 = vmul.f32 %v128, 0.0625
  %v473 = vmul.f32 %v137, 0.0625
  %v474 = vmul.f32 %v146, 0.0625
  %v475 = vmul.f32 %v155, 0.0625
  %v476 = vmul.f32 %v164, 0.0625
  %v477 = vmul.f32 %v173, 0.0625
  %v478 = vmul.f32 %v182, 0.0625
  %v479 = vmul.f32 %v191, 0.0625
  %v480 = vmul.f32 %v200, 0.0625
  %v481 = vmul.f32 %v209, 0.0625
  %v482 = vmul.f32 %v218, 0.0625
  %v483 = vmul.f32 %v227, 0.0625
  %v484 = vmul.f32 %v236, 0.0625
  %v485 = vmul.f32 %v245, 0.0625
  %v486 = vmul.f32 %v254, 0.0625
  %v487 = vmul.f32 %v263, 0.0625
  %v488 = vmul.f32 %v272, 0.0625
  %v489 = vmul.f32 %v281, 0.0625
  %v490 = vmul.f32 %v290, 0.0625
  %v491 = vmul.f32 %v299, 0.0625
  %v492 = vmul.f32 %v308, 0.0625
  %v493 = vmul.f32 %v317, 0.0625
  %v494 = vmul.f32 %v326, 0.0625
  %v495 = vmul.f32 %v335, 0.0625
  %v496 = vmul.f32 %v344, 0.0625
  %v497 = vmul.f32 %v353, 0.0625
  %v498 = vmul.f32 %v362, 0.0625
  %v499 = vmul.f32 %v371, 0.0625
  %v500 = vmul.f32 %v380, 0.0625
  %v501 = vmul.f32 %v389, 0.0625
  %v502 = vmul.f32 %v398, 0.0625
  %v503 = vmul.f32 %v407, 0.0625
  %v504 = vmul.f32 %v416, 0.0625
  %v505 = vmul.f32 %v425, 0.0625
  %v506 = vmul.f32 %v434, 0.0625
  %v507 = vmul.f32 %v443, 0.0625
  %v508 = vmul.f32 %v452, 0.0625
  %v509 = vmul.f32 %v461, 0.0625
  %v510 = vmul.f32 %v470, 0.0625
  %v511 = vpack.c.bf16 %v471, %v471
  %v512 = vpack.c.bf16 %v472, %v472
  %v513 = vpack.c.bf16 %v473, %v473
  %v514 = vpack.c.bf16 %v474, %v474
  %v515 = vpack.c.bf16 %v475, %v475
  %v516 = vpack.c.bf16 %v476, %v476
  %v517 = vpack.c.bf16 %v477, %v477
  %v518 = vpack.c.bf16 %v478, %v478
  %v519 = vpack.c.bf16 %v479, %v479
  %v520 = vpack.c.bf16 %v480, %v480
  %v521 = vpack.c.bf16 %v481, %v481
  %v522 = vpack.c.bf16 %v482, %v482
  %v523 = vpack.c.bf16 %v483, %v483
  %v524 = vpack.c.bf16 %v484, %v484
  %v525 = vpack.c.bf16 %v485, %v485
  %v526 = vpack.c.bf16 %v486, %v486
  %v527 = vpack.c.bf16 %v487, %v487
  %v528 = vpack.c.bf16 %v488, %v488
  %v529 = vpack.c.bf16 %v489, %v489
  %v530 = vpack.c.bf16 %v490, %v490
  %v531 = vpack.c.bf16 %v491, %v491
  %v532 = vpack.c.bf16 %v492, %v492
  %v533 = vpack.c.bf16 %v493, %v493
  %v534 = vpack.c.bf16 %v494, %v494
  %v535 = vpack.c.bf16 %v495, %v495
  %v536 = vpack.c.bf16 %v496, %v496
  %v537 = vpack.c.bf16 %v497, %v497
  %v538 = vpack.c.bf16 %v498, %v498
  %v539 = vpack.c.bf16 %v499, %v499
  %v540 = vpack.c.bf16 %v500, %v500
  %v541 = vpack.c.bf16 %v501, %v501
  %v542 = vpack.c.bf16 %v502, %v502
  %v543 = vpack.c.bf16 %v503, %v503
  %v544 = vpack.c.bf16 %v504, %v504
  %v545 = vpack.c.bf16 %v505, %v505
  %v546 = vpack.c.bf16 %v506, %v506
  %v547 = vpack.c.bf16 %v507, %v507
  %v548 = vpack.c.bf16 %v508, %v508
  %v549 = vpack.c.bf16 %v509, %v509
  %v550 = vpack.c.bf16 %v510, %v510
  %v551 = vld [vmem:[%s1] sm:$0xff]
  %v552 = vld [vmem:[%s1 + $0x8] sm:$0xff]
  %v553 = vld [vmem:[%s1 + $0x10] sm:$0xff]
  %v554 = vld [vmem:[%s1 + $0x18] sm:$0xff]
  %v555 = vld [vmem:[%s1 + $0x20] sm:$0xff]
  %v556 = vld [vmem:[%s1 + $0x28] sm:$0xff]
  %v557 = vld [vmem:[%s1 + $0x30] sm:$0xff]
  %v558 = vld [vmem:[%s1 + $0x38] sm:$0xff]
  %v559 = vpack.c.bf16 %v553, %v551
  %v560 = vpack.c.bf16 %v554, %v552
  %v561 = vpack.c.bf16 %v557, %v555
  %v562 = vpack.c.bf16 %v558, %v556
  %v603 = vunpack.c.l.b16 %v511
  %v604 = vunpack.c.l.b16 %v512
  %v605 = vunpack.c.l.b16 %v513
  %v606 = vunpack.c.l.b16 %v514
  %v607 = vunpack.c.l.b16 %v515
  %v608 = vunpack.c.l.b16 %v516
  %v609 = vunpack.c.l.b16 %v517
  %v610 = vunpack.c.l.b16 %v518
  %v611 = vunpack.c.l.b16 %v519
  %v612 = vunpack.c.l.b16 %v520
  %v613 = vunpack.c.l.b16 %v521
  %v614 = vunpack.c.l.b16 %v522
  %v615 = vunpack.c.l.b16 %v523
  %v616 = vunpack.c.l.b16 %v524
  %v617 = vunpack.c.l.b16 %v525
  %v618 = vunpack.c.l.b16 %v526
  %v619 = vunpack.c.l.b16 %v527
  %v620 = vunpack.c.l.b16 %v528
  %v621 = vunpack.c.l.b16 %v529
  %v622 = vunpack.c.l.b16 %v530
  %v623 = vunpack.c.l.b16 %v531
  %v624 = vunpack.c.l.b16 %v532
  %v625 = vunpack.c.l.b16 %v533
  %v626 = vunpack.c.l.b16 %v534
  %v627 = vunpack.c.l.b16 %v535
  %v628 = vunpack.c.l.b16 %v536
  %v629 = vunpack.c.l.b16 %v537
  %v630 = vunpack.c.l.b16 %v538
  %v631 = vunpack.c.l.b16 %v539
  %v632 = vunpack.c.l.b16 %v540
  %v633 = vunpack.c.l.b16 %v541
  %v634 = vunpack.c.l.b16 %v542
  %v635 = vunpack.c.l.b16 %v543
  %v636 = vunpack.c.l.b16 %v544
  %v637 = vunpack.c.l.b16 %v545
  %v638 = vunpack.c.l.b16 %v546
  %v639 = vunpack.c.l.b16 %v547
  %v640 = vunpack.c.l.b16 %v548
  %v641 = vunpack.c.l.b16 %v549
  %v642 = vunpack.c.l.b16 %v550
  %vm643 = vcmask 1041409
  %v644 = vsel %vm643, %v604, %v603
  %vm645 = vcmask 1042434
  %v646 = vsel %vm645, %v605, %v644
  %vm647 = vcmask 1043459
  %v648 = vsel %vm647, %v606, %v646
  %vm649 = vcmask 1044484
  %v650 = vsel %vm649, %v607, %v648
  %vm651 = vcmask 1045509
  %v652 = vsel %vm651, %v608, %v650
  %vm653 = vcmask 1046534
  %v654 = vsel %vm653, %v609, %v652
  %vm655 = vcmask 1047559
  %v656 = vsel %vm655, %v610, %v654
  %v657 = vsel %vm643, %v612, %v611
  %v658 = vsel %vm645, %v613, %v657
  %v659 = vsel %vm647, %v614, %v658
  %v660 = vsel %vm649, %v615, %v659
  %v661 = vsel %vm651, %v616, %v660
  %v662 = vsel %vm653, %v617, %v661
  %v663 = vsel %vm655, %v618, %v662
  %v664 = vsel %vm643, %v620, %v619
  %v665 = vsel %vm645, %v621, %v664
  %v666 = vsel %vm647, %v622, %v665
  %v667 = vsel %vm649, %v623, %v666
  %v668 = vsel %vm651, %v624, %v667
  %v669 = vsel %vm653, %v625, %v668
  %v670 = vsel %vm655, %v626, %v669
  %v671 = vsel %vm643, %v628, %v627
  %v672 = vsel %vm645, %v629, %v671
  %v673 = vsel %vm647, %v630, %v672
  %v674 = vsel %vm649, %v631, %v673
  %v675 = vsel %vm651, %v632, %v674
  %v676 = vsel %vm653, %v633, %v675
  %v677 = vsel %vm655, %v634, %v676
  %v678 = vsel %vm643, %v636, %v635
  %v679 = vsel %vm645, %v637, %v678
  %v680 = vsel %vm647, %v638, %v679
  %v681 = vsel %vm649, %v639, %v680
  %v682 = vsel %vm651, %v640, %v681
  %v683 = vsel %vm653, %v641, %v682
  %v684 = vsel %vm655, %v642, %v683
  %v685 = vpack.c.b16 %v663, %v656
  %v686 = vpack.c.b16 %v677, %v670
  %v687 = vpack.c.b16 %v684, %v684
  %v689 = vsel %vm110, %v685, 0
  %v692 = vsel %vm110, %v686, 0
  %v695 = vsel %vm110, %v687, 0
  %697 = vmatprep.subr.bf16.mxu0 0
  %698 = vmatpush1.bf16.msra.mxu0 0
  %699 = vmatprep.subr.bf16.mxu0 0
  %700 = vmatpush1.bf16.msra.mxu0 0
  %701 = vmatprep.subr.bf16.mxu0 0
  %702 = vmatpush1.bf16.msra.mxu0 0
  %703 = vmatprep.subr.bf16.mxu0 0
  %704 = vmatpush1.bf16.msra.mxu0 0
  %705 = vmatprep.subr.bf16.mxu0 0
  %706 = vmatpush1.bf16.msra.mxu0 0
  %707 = vmatprep.subr.bf16.mxu0 0
  %708 = vmatpush1.bf16.msra.mxu0 0
  %709 = vmatprep.subr.bf16.mxu0 %v562
  %710 = vmatpush1.bf16.msra.mxu0 %v561
  %711 = vmatprep.subr.bf16.mxu0 %v560
  %712 = vmatpush1.bf16.msra.mxu0 %v559
  %713 = vmatprep.subr.bf16.mxu0 0
  %714 = vmatpush2.bf16.msra.mxu0 0
  %715 = vmatprep.subr.bf16.mxu0 0
  %716 = vmatpush2.bf16.msra.mxu0 0
  %717 = vmatprep.subr.bf16.mxu0 0
  %718 = vmatpush2.bf16.msra.mxu0 0
  %719 = vmatprep.subr.bf16.mxu0 0
  %720 = vmatpush2.bf16.msra.mxu0 0
  %721 = vmatprep.subr.bf16.mxu0 0
  %722 = vmatpush2.bf16.msra.mxu0 0
  %723 = vmatprep.subr.bf16.mxu0 0
  %724 = vmatpush2.bf16.msra.mxu0 0
  %725 = vmatprep.subr.bf16.mxu0 0
  %726 = vmatpush2.bf16.msra.mxu0 0
  %727 = vmatprep.subr.bf16.mxu0 0
  %728 = vmatpush2.bf16.msra.mxu0 0
  %729 = vmatprep.mubr.bf16.mxu0 0
  %730 = vmatmul.mubr.bf16.gmra.mxu0 %v689
  %v731 = vpop.f32.mrf.mxu0
  %v732 = vadd.f32 0.0, %v731
  %v733 = vpop.f32.mrf.mxu0
  %v734 = vadd.f32 0.0, %v733
  %v735 = vpop.f32.mrf.mxu0
  %v736 = vadd.f32 0.0, %v735
  %v737 = vpop.f32.mrf.mxu0
  %v738 = vadd.f32 0.0, %v737
  %739 = vmatprep.mubr.bf16.mxu0 0
  %740 = vmatmul.mubr.bf16.gmra.mxu0 %v692
  %v741 = vpop.f32.mrf.mxu0
  %v742 = vadd.f32 0.0, %v741
  %v743 = vpop.f32.mrf.mxu0
  %v744 = vadd.f32 0.0, %v743
  %v745 = vpop.f32.mrf.mxu0
  %v746 = vadd.f32 0.0, %v745
  %v747 = vpop.f32.mrf.mxu0
  %v748 = vadd.f32 0.0, %v747
  %749 = vmatprep.mubr.bf16.mxu0 0
  %750 = vmatmul.mubr.bf16.gmra.mxu0 %v695
  %v751 = vpop.f32.mrf.mxu0
  %v752 = vadd.f32 0.0, %v751
  %v753 = vpop.f32.mrf.mxu0
  %v754 = vadd.f32 0.0, %v753
  %v755 = vpop.f32.mrf.mxu0
  %v756 = vpop.f32.mrf.mxu0
  %757 = vdwg.mxu0
  %v758 = vadd.f32 %v734, %v734
  %v759 = vadd.f32 %v734, %v738
  %v760 = vadd.f32 %v734, %v744
  %v761 = vadd.f32 %v734, %v748
  %v762 = vadd.f32 %v734, %v754
  %v763 = vadd.f32 %v738, %v738
  %v764 = vadd.f32 %v738, %v744
  %v765 = vadd.f32 %v738, %v748
  %v766 = vadd.f32 %v738, %v754
  %v767 = vadd.f32 %v744, %v744
  %v768 = vadd.f32 %v744, %v748
  %v769 = vadd.f32 %v744, %v754
  %v770 = vadd.f32 %v748, %v748
  %v771 = vadd.f32 %v748, %v754
  %v772 = vadd.f32 %v754, %v754
  %v773 = vadd.f32 %v758, %v734
  %v774 = vadd.f32 %v759, %v734
  %v775 = vadd.f32 %v760, %v734
  %v776 = vadd.f32 %v761, %v734
  %v777 = vadd.f32 %v762, %v734
  %v778 = vadd.f32 %v763, %v734
  %v779 = vadd.f32 %v764, %v734
  %v780 = vadd.f32 %v765, %v734
  %v781 = vadd.f32 %v766, %v734
  %v782 = vadd.f32 %v767, %v734
  %v783 = vadd.f32 %v768, %v734
  %v784 = vadd.f32 %v769, %v734
  %v785 = vadd.f32 %v770, %v734
  %v786 = vadd.f32 %v771, %v734
  %v787 = vadd.f32 %v772, %v734
  %793 = vrot.lane.b32.xlu0 %v732, 96
  %v794 = vpop.permute.xlu0 %793
  %795 = vrot.lane.b32.xlu0 %v736, 96
  %v796 = vpop.permute.xlu0 %795
  %797 = vrot.lane.b32.xlu0 %v742, 96
  %v798 = vpop.permute.xlu0 %797
  %799 = vrot.lane.b32.xlu0 %v746, 96
  %v800 = vpop.permute.xlu0 %799
  %801 = vrot.lane.b32.xlu0 %v752, 96
  %v802 = vpop.permute.xlu0 %801
  %v808 = vadd.f32 %v732, %v794
  %v809 = vadd.f32 %v732, %v796
  %v810 = vadd.f32 %v732, %v798
  %v811 = vadd.f32 %v732, %v800
  %v812 = vadd.f32 %v732, %v802
  %v813 = vadd.f32 %v736, %v794
  %v814 = vadd.f32 %v736, %v796
  %v815 = vadd.f32 %v736, %v798
  %v816 = vadd.f32 %v736, %v800
  %v817 = vadd.f32 %v736, %v802
  %v818 = vadd.f32 %v742, %v794
  %v819 = vadd.f32 %v742, %v796
  %v820 = vadd.f32 %v742, %v798
  %v821 = vadd.f32 %v742, %v800
  %v822 = vadd.f32 %v742, %v802
  %v823 = vadd.f32 %v746, %v794
  %v824 = vadd.f32 %v746, %v796
  %v825 = vadd.f32 %v746, %v798
  %v826 = vadd.f32 %v746, %v800
  %v827 = vadd.f32 %v746, %v802
  %v828 = vadd.f32 %v752, %v794
  %v829 = vadd.f32 %v752, %v796
  %v830 = vadd.f32 %v752, %v798
  %v831 = vadd.f32 %v752, %v800
  %v832 = vadd.f32 %v752, %v802
  %848 = vrot.lane.b32.xlu0 %v773, 96
  %v849 = vpop.permute.xlu0 %848
  %850 = vrot.lane.b32.xlu0 %v774, 96
  %v851 = vpop.permute.xlu0 %850
  %852 = vrot.lane.b32.xlu0 %v775, 96
  %v853 = vpop.permute.xlu0 %852
  %854 = vrot.lane.b32.xlu0 %v776, 96
  %v855 = vpop.permute.xlu0 %854
  %856 = vrot.lane.b32.xlu0 %v777, 96
  %v857 = vpop.permute.xlu0 %856
  %858 = vrot.lane.b32.xlu0 %v778, 96
  %v859 = vpop.permute.xlu0 %858
  %860 = vrot.lane.b32.xlu0 %v779, 96
  %v861 = vpop.permute.xlu0 %860
  %862 = vrot.lane.b32.xlu0 %v780, 96
  %v863 = vpop.permute.xlu0 %862
  %864 = vrot.lane.b32.xlu0 %v781, 96
  %v865 = vpop.permute.xlu0 %864
  %866 = vrot.lane.b32.xlu0 %v782, 96
  %v867 = vpop.permute.xlu0 %866
  %868 = vrot.lane.b32.xlu0 %v783, 96
  %v869 = vpop.permute.xlu0 %868
  %870 = vrot.lane.b32.xlu0 %v784, 96
  %v871 = vpop.permute.xlu0 %870
  %872 = vrot.lane.b32.xlu0 %v785, 96
  %v873 = vpop.permute.xlu0 %872
  %874 = vrot.lane.b32.xlu0 %v786, 96
  %v875 = vpop.permute.xlu0 %874
  %876 = vrot.lane.b32.xlu0 %v787, 96
  %v877 = vpop.permute.xlu0 %876
  %v893 = vadd.f32 %v808, %v849
  %v894 = vadd.f32 %v809, %v851
  %v895 = vadd.f32 %v810, %v853
  %v896 = vadd.f32 %v811, %v855
  %v897 = vadd.f32 %v812, %v857
  %v898 = vadd.f32 %v813, %v851
  %v899 = vadd.f32 %v814, %v859
  %v900 = vadd.f32 %v815, %v861
  %v901 = vadd.f32 %v816, %v863
  %v902 = vadd.f32 %v817, %v865
  %v903 = vadd.f32 %v818, %v853
  %v904 = vadd.f32 %v819, %v861
  %v905 = vadd.f32 %v820, %v867
  %v906 = vadd.f32 %v821, %v869
  %v907 = vadd.f32 %v822, %v871
  %v908 = vadd.f32 %v823, %v855
  %v909 = vadd.f32 %v824, %v863
  %v910 = vadd.f32 %v825, %v869
  %v911 = vadd.f32 %v826, %v873
  %v912 = vadd.f32 %v827, %v875
  %v913 = vadd.f32 %v828, %v857
  %v914 = vadd.f32 %v829, %v865
  %v915 = vadd.f32 %v830, %v871
  %v916 = vadd.f32 %v831, %v875
  %v917 = vadd.f32 %v832, %v877
  %v918 = vsel %vm110, %v893, 0.0
  %919 = vadd.xlane.f32.xlu0 %v918
  %v920 = vpop.xlane.xlu0 %919
  %v921 = vsel %vm110, %v894, 0.0
  %922 = vadd.xlane.f32.xlu0 %v921
  %v923 = vpop.xlane.xlu0 %922
  %v924 = vsel %vm110, %v895, 0.0
  %925 = vadd.xlane.f32.xlu0 %v924
  %v926 = vpop.xlane.xlu0 %925
  %v927 = vsel %vm110, %v896, 0.0
  %928 = vadd.xlane.f32.xlu0 %v927
  %v929 = vpop.xlane.xlu0 %928
  %v930 = vsel %vm110, %v897, 0.0
  %931 = vadd.xlane.f32.xlu0 %v930
  %v932 = vpop.xlane.xlu0 %931
  %v933 = vsel %vm110, %v898, 0.0
  %934 = vadd.xlane.f32.xlu0 %v933
  %v935 = vpop.xlane.xlu0 %934
  %v936 = vsel %vm110, %v899, 0.0
  %937 = vadd.xlane.f32.xlu0 %v936
  %v938 = vpop.xlane.xlu0 %937
  %v939 = vsel %vm110, %v900, 0.0
  %940 = vadd.xlane.f32.xlu0 %v939
  %v941 = vpop.xlane.xlu0 %940
  %v942 = vsel %vm110, %v901, 0.0
  %943 = vadd.xlane.f32.xlu0 %v942
  %v944 = vpop.xlane.xlu0 %943
  %v945 = vsel %vm110, %v902, 0.0
  %946 = vadd.xlane.f32.xlu0 %v945
  %v947 = vpop.xlane.xlu0 %946
  %v948 = vsel %vm110, %v903, 0.0
  %949 = vadd.xlane.f32.xlu0 %v948
  %v950 = vpop.xlane.xlu0 %949
  %v951 = vsel %vm110, %v904, 0.0
  %952 = vadd.xlane.f32.xlu0 %v951
  %v953 = vpop.xlane.xlu0 %952
  %v954 = vsel %vm110, %v905, 0.0
  %955 = vadd.xlane.f32.xlu0 %v954
  %v956 = vpop.xlane.xlu0 %955
  %v957 = vsel %vm110, %v906, 0.0
  %958 = vadd.xlane.f32.xlu0 %v957
  %v959 = vpop.xlane.xlu0 %958
  %v960 = vsel %vm110, %v907, 0.0
  %961 = vadd.xlane.f32.xlu0 %v960
  %v962 = vpop.xlane.xlu0 %961
  %v963 = vsel %vm110, %v908, 0.0
  %964 = vadd.xlane.f32.xlu0 %v963
  %v965 = vpop.xlane.xlu0 %964
  %v966 = vsel %vm110, %v909, 0.0
  %967 = vadd.xlane.f32.xlu0 %v966
  %v968 = vpop.xlane.xlu0 %967
  %v969 = vsel %vm110, %v910, 0.0
  %970 = vadd.xlane.f32.xlu0 %v969
  %v971 = vpop.xlane.xlu0 %970
  %v972 = vsel %vm110, %v911, 0.0
  %973 = vadd.xlane.f32.xlu0 %v972
  %v974 = vpop.xlane.xlu0 %973
  %v975 = vsel %vm110, %v912, 0.0
  %976 = vadd.xlane.f32.xlu0 %v975
  %v977 = vpop.xlane.xlu0 %976
  %v978 = vsel %vm110, %v913, 0.0
  %979 = vadd.xlane.f32.xlu0 %v978
  %v980 = vpop.xlane.xlu0 %979
  %v981 = vsel %vm110, %v914, 0.0
  %982 = vadd.xlane.f32.xlu0 %v981
  %v983 = vpop.xlane.xlu0 %982
  %v984 = vsel %vm110, %v915, 0.0
  %985 = vadd.xlane.f32.xlu0 %v984
  %v986 = vpop.xlane.xlu0 %985
  %v987 = vsel %vm110, %v916, 0.0
  %988 = vadd.xlane.f32.xlu0 %v987
  %v989 = vpop.xlane.xlu0 %988
  %v990 = vsel %vm110, %v917, 0.0
  %991 = vadd.xlane.f32.xlu0 %v990
  %v992 = vpop.xlane.xlu0 %991
  %v993 = vrot.slane %v920, 4
  %v994 = vadd.f32 %v920, %v993
  %v995 = vrot.slane %v994, 2
  %v996 = vadd.f32 %v994, %v995
  %v997 = vrot.slane %v996, 1
  %v998 = vadd.f32 %v996, %v997
  %v999 = vrot.slane %v923, 4
  %v1000 = vadd.f32 %v923, %v999
  %v1001 = vrot.slane %v1000, 2
  %v1002 = vadd.f32 %v1000, %v1001
  %v1003 = vrot.slane %v1002, 1
  %v1004 = vadd.f32 %v1002, %v1003
  %v1005 = vrot.slane %v926, 4
  %v1006 = vadd.f32 %v926, %v1005
  %v1007 = vrot.slane %v1006, 2
  %v1008 = vadd.f32 %v1006, %v1007
  %v1009 = vrot.slane %v1008, 1
  %v1010 = vadd.f32 %v1008, %v1009
  %v1011 = vrot.slane %v929, 4
  %v1012 = vadd.f32 %v929, %v1011
  %v1013 = vrot.slane %v1012, 2
  %v1014 = vadd.f32 %v1012, %v1013
  %v1015 = vrot.slane %v1014, 1
  %v1016 = vadd.f32 %v1014, %v1015
  %v1017 = vrot.slane %v932, 4
  %v1018 = vadd.f32 %v932, %v1017
  %v1019 = vrot.slane %v1018, 2
  %v1020 = vadd.f32 %v1018, %v1019
  %v1021 = vrot.slane %v1020, 1
  %v1022 = vadd.f32 %v1020, %v1021
  %v1023 = vrot.slane %v935, 4
  %v1024 = vadd.f32 %v935, %v1023
  %v1025 = vrot.slane %v1024, 2
  %v1026 = vadd.f32 %v1024, %v1025
  %v1027 = vrot.slane %v1026, 1
  %v1028 = vadd.f32 %v1026, %v1027
  %v1029 = vrot.slane %v938, 4
  %v1030 = vadd.f32 %v938, %v1029
  %v1031 = vrot.slane %v1030, 2
  %v1032 = vadd.f32 %v1030, %v1031
  %v1033 = vrot.slane %v1032, 1
  %v1034 = vadd.f32 %v1032, %v1033
  %v1035 = vrot.slane %v941, 4
  %v1036 = vadd.f32 %v941, %v1035
  %v1037 = vrot.slane %v1036, 2
  %v1038 = vadd.f32 %v1036, %v1037
  %v1039 = vrot.slane %v1038, 1
  %v1040 = vadd.f32 %v1038, %v1039
  %v1041 = vrot.slane %v944, 4
  %v1042 = vadd.f32 %v944, %v1041
  %v1043 = vrot.slane %v1042, 2
  %v1044 = vadd.f32 %v1042, %v1043
  %v1045 = vrot.slane %v1044, 1
  %v1046 = vadd.f32 %v1044, %v1045
  %v1047 = vrot.slane %v947, 4
  %v1048 = vadd.f32 %v947, %v1047
  %v1049 = vrot.slane %v1048, 2
  %v1050 = vadd.f32 %v1048, %v1049
  %v1051 = vrot.slane %v1050, 1
  %v1052 = vadd.f32 %v1050, %v1051
  %v1053 = vrot.slane %v950, 4
  %v1054 = vadd.f32 %v950, %v1053
  %v1055 = vrot.slane %v1054, 2
  %v1056 = vadd.f32 %v1054, %v1055
  %v1057 = vrot.slane %v1056, 1
  %v1058 = vadd.f32 %v1056, %v1057
  %v1059 = vrot.slane %v953, 4
  %v1060 = vadd.f32 %v953, %v1059
  %v1061 = vrot.slane %v1060, 2
  %v1062 = vadd.f32 %v1060, %v1061
  %v1063 = vrot.slane %v1062, 1
  %v1064 = vadd.f32 %v1062, %v1063
  %v1065 = vrot.slane %v956, 4
  %v1066 = vadd.f32 %v956, %v1065
  %v1067 = vrot.slane %v1066, 2
  %v1068 = vadd.f32 %v1066, %v1067
  %v1069 = vrot.slane %v1068, 1
  %v1070 = vadd.f32 %v1068, %v1069
  %v1071 = vrot.slane %v959, 4
  %v1072 = vadd.f32 %v959, %v1071
  %v1073 = vrot.slane %v1072, 2
  %v1074 = vadd.f32 %v1072, %v1073
  %v1075 = vrot.slane %v1074, 1
  %v1076 = vadd.f32 %v1074, %v1075
  %v1077 = vrot.slane %v962, 4
  %v1078 = vadd.f32 %v962, %v1077
  %v1079 = vrot.slane %v1078, 2
  %v1080 = vadd.f32 %v1078, %v1079
  %v1081 = vrot.slane %v1080, 1
  %v1082 = vadd.f32 %v1080, %v1081
  %v1083 = vrot.slane %v965, 4
  %v1084 = vadd.f32 %v965, %v1083
  %v1085 = vrot.slane %v1084, 2
  %v1086 = vadd.f32 %v1084, %v1085
  %v1087 = vrot.slane %v1086, 1
  %v1088 = vadd.f32 %v1086, %v1087
  %v1089 = vrot.slane %v968, 4
  %v1090 = vadd.f32 %v968, %v1089
  %v1091 = vrot.slane %v1090, 2
  %v1092 = vadd.f32 %v1090, %v1091
  %v1093 = vrot.slane %v1092, 1
  %v1094 = vadd.f32 %v1092, %v1093
  %v1095 = vrot.slane %v971, 4
  %v1096 = vadd.f32 %v971, %v1095
  %v1097 = vrot.slane %v1096, 2
  %v1098 = vadd.f32 %v1096, %v1097
  %v1099 = vrot.slane %v1098, 1
  %v1100 = vadd.f32 %v1098, %v1099
  %v1101 = vrot.slane %v974, 4
  %v1102 = vadd.f32 %v974, %v1101
  %v1103 = vrot.slane %v1102, 2
  %v1104 = vadd.f32 %v1102, %v1103
  %v1105 = vrot.slane %v1104, 1
  %v1106 = vadd.f32 %v1104, %v1105
  %v1107 = vrot.slane %v977, 4
  %v1108 = vadd.f32 %v977, %v1107
  %v1109 = vrot.slane %v1108, 2
  %v1110 = vadd.f32 %v1108, %v1109
  %v1111 = vrot.slane %v1110, 1
  %v1112 = vadd.f32 %v1110, %v1111
  %v1113 = vrot.slane %v980, 4
  %v1114 = vadd.f32 %v980, %v1113
  %v1115 = vrot.slane %v1114, 2
  %v1116 = vadd.f32 %v1114, %v1115
  %v1117 = vrot.slane %v1116, 1
  %v1118 = vadd.f32 %v1116, %v1117
  %v1119 = vrot.slane %v983, 4
  %v1120 = vadd.f32 %v983, %v1119
  %v1121 = vrot.slane %v1120, 2
  %v1122 = vadd.f32 %v1120, %v1121
  %v1123 = vrot.slane %v1122, 1
  %v1124 = vadd.f32 %v1122, %v1123
  %v1125 = vrot.slane %v986, 4
  %v1126 = vadd.f32 %v986, %v1125
  %v1127 = vrot.slane %v1126, 2
  %v1128 = vadd.f32 %v1126, %v1127
  %v1129 = vrot.slane %v1128, 1
  %v1130 = vadd.f32 %v1128, %v1129
  %v1131 = vrot.slane %v989, 4
  %v1132 = vadd.f32 %v989, %v1131
  %v1133 = vrot.slane %v1132, 2
  %v1134 = vadd.f32 %v1132, %v1133
  %v1135 = vrot.slane %v1134, 1
  %v1136 = vadd.f32 %v1134, %v1135
  %v1137 = vrot.slane %v992, 4
  %v1138 = vadd.f32 %v992, %v1137
  %v1139 = vrot.slane %v1138, 2
  %v1140 = vadd.f32 %v1138, %v1139
  %v1141 = vrot.slane %v1140, 1
  %v1142 = vadd.f32 %v1140, %v1141
  %v1143 = vmul.f32 %v893, %v893
  %v1144 = vmul.f32 %v894, %v894
  %v1145 = vmul.f32 %v895, %v895
  %v1146 = vmul.f32 %v896, %v896
  %v1147 = vmul.f32 %v897, %v897
  %v1148 = vmul.f32 %v898, %v898
  %v1149 = vmul.f32 %v899, %v899
  %v1150 = vmul.f32 %v900, %v900
  %v1151 = vmul.f32 %v901, %v901
  %v1152 = vmul.f32 %v902, %v902
  %v1153 = vmul.f32 %v903, %v903
  %v1154 = vmul.f32 %v904, %v904
  %v1155 = vmul.f32 %v905, %v905
  %v1156 = vmul.f32 %v906, %v906
  %v1157 = vmul.f32 %v907, %v907
  %v1158 = vmul.f32 %v908, %v908
  %v1159 = vmul.f32 %v909, %v909
  %v1160 = vmul.f32 %v910, %v910
  %v1161 = vmul.f32 %v911, %v911
  %v1162 = vmul.f32 %v912, %v912
  %v1163 = vmul.f32 %v913, %v913
  %v1164 = vmul.f32 %v914, %v914
  %v1165 = vmul.f32 %v915, %v915
  %v1166 = vmul.f32 %v916, %v916
  %v1167 = vmul.f32 %v917, %v917
  %v1168 = vsel %vm110, %v1143, 0.0
  %1169 = vadd.xlane.f32.xlu0 %v1168
  %v1170 = vpop.xlane.xlu0 %1169
  %v1171 = vsel %vm110, %v1144, 0.0
  %1172 = vadd.xlane.f32.xlu0 %v1171
  %v1173 = vpop.xlane.xlu0 %1172
  %v1174 = vsel %vm110, %v1145, 0.0
  %1175 = vadd.xlane.f32.xlu0 %v1174
  %v1176 = vpop.xlane.xlu0 %1175
  %v1177 = vsel %vm110, %v1146, 0.0
  %1178 = vadd.xlane.f32.xlu0 %v1177
  %v1179 = vpop.xlane.xlu0 %1178
  %v1180 = vsel %vm110, %v1147, 0.0
  %1181 = vadd.xlane.f32.xlu0 %v1180
  %v1182 = vpop.xlane.xlu0 %1181
  %v1183 = vsel %vm110, %v1148, 0.0
  %1184 = vadd.xlane.f32.xlu0 %v1183
  %v1185 = vpop.xlane.xlu0 %1184
  %v1186 = vsel %vm110, %v1149, 0.0
  %1187 = vadd.xlane.f32.xlu0 %v1186
  %v1188 = vpop.xlane.xlu0 %1187
  %v1189 = vsel %vm110, %v1150, 0.0
  %1190 = vadd.xlane.f32.xlu0 %v1189
  %v1191 = vpop.xlane.xlu0 %1190
  %v1192 = vsel %vm110, %v1151, 0.0
  %1193 = vadd.xlane.f32.xlu0 %v1192
  %v1194 = vpop.xlane.xlu0 %1193
  %v1195 = vsel %vm110, %v1152, 0.0
  %1196 = vadd.xlane.f32.xlu0 %v1195
  %v1197 = vpop.xlane.xlu0 %1196
  %v1198 = vsel %vm110, %v1153, 0.0
  %1199 = vadd.xlane.f32.xlu0 %v1198
  %v1200 = vpop.xlane.xlu0 %1199
  %v1201 = vsel %vm110, %v1154, 0.0
  %1202 = vadd.xlane.f32.xlu0 %v1201
  %v1203 = vpop.xlane.xlu0 %1202
  %v1204 = vsel %vm110, %v1155, 0.0
  %1205 = vadd.xlane.f32.xlu0 %v1204
  %v1206 = vpop.xlane.xlu0 %1205
  %v1207 = vsel %vm110, %v1156, 0.0
  %1208 = vadd.xlane.f32.xlu0 %v1207
  %v1209 = vpop.xlane.xlu0 %1208
  %v1210 = vsel %vm110, %v1157, 0.0
  %1211 = vadd.xlane.f32.xlu0 %v1210
  %v1212 = vpop.xlane.xlu0 %1211
  %v1213 = vsel %vm110, %v1158, 0.0
  %1214 = vadd.xlane.f32.xlu0 %v1213
  %v1215 = vpop.xlane.xlu0 %1214
  %v1216 = vsel %vm110, %v1159, 0.0
  %1217 = vadd.xlane.f32.xlu0 %v1216
  %v1218 = vpop.xlane.xlu0 %1217
  %v1219 = vsel %vm110, %v1160, 0.0
  %1220 = vadd.xlane.f32.xlu0 %v1219
  %v1221 = vpop.xlane.xlu0 %1220
  %v1222 = vsel %vm110, %v1161, 0.0
  %1223 = vadd.xlane.f32.xlu0 %v1222
  %v1224 = vpop.xlane.xlu0 %1223
  %v1225 = vsel %vm110, %v1162, 0.0
  %1226 = vadd.xlane.f32.xlu0 %v1225
  %v1227 = vpop.xlane.xlu0 %1226
  %v1228 = vsel %vm110, %v1163, 0.0
  %1229 = vadd.xlane.f32.xlu0 %v1228
  %v1230 = vpop.xlane.xlu0 %1229
  %v1231 = vsel %vm110, %v1164, 0.0
  %1232 = vadd.xlane.f32.xlu0 %v1231
  %v1233 = vpop.xlane.xlu0 %1232
  %v1234 = vsel %vm110, %v1165, 0.0
  %1235 = vadd.xlane.f32.xlu0 %v1234
  %v1236 = vpop.xlane.xlu0 %1235
  %v1237 = vsel %vm110, %v1166, 0.0
  %1238 = vadd.xlane.f32.xlu0 %v1237
  %v1239 = vpop.xlane.xlu0 %1238
  %v1240 = vsel %vm110, %v1167, 0.0
  %1241 = vadd.xlane.f32.xlu0 %v1240
  %v1242 = vpop.xlane.xlu0 %1241
  %v1243 = vrot.slane %v1170, 4
  %v1244 = vadd.f32 %v1170, %v1243
  %v1245 = vrot.slane %v1244, 2
  %v1246 = vadd.f32 %v1244, %v1245
  %v1247 = vrot.slane %v1246, 1
  %v1248 = vadd.f32 %v1246, %v1247
  %v1249 = vrot.slane %v1173, 4
  %v1250 = vadd.f32 %v1173, %v1249
  %v1251 = vrot.slane %v1250, 2
  %v1252 = vadd.f32 %v1250, %v1251
  %v1253 = vrot.slane %v1252, 1
  %v1254 = vadd.f32 %v1252, %v1253
  %v1255 = vrot.slane %v1176, 4
  %v1256 = vadd.f32 %v1176, %v1255
  %v1257 = vrot.slane %v1256, 2
  %v1258 = vadd.f32 %v1256, %v1257
  %v1259 = vrot.slane %v1258, 1
  %v1260 = vadd.f32 %v1258, %v1259
  %v1261 = vrot.slane %v1179, 4
  %v1262 = vadd.f32 %v1179, %v1261
  %v1263 = vrot.slane %v1262, 2
  %v1264 = vadd.f32 %v1262, %v1263
  %v1265 = vrot.slane %v1264, 1
  %v1266 = vadd.f32 %v1264, %v1265
  %v1267 = vrot.slane %v1182, 4
  %v1268 = vadd.f32 %v1182, %v1267
  %v1269 = vrot.slane %v1268, 2
  %v1270 = vadd.f32 %v1268, %v1269
  %v1271 = vrot.slane %v1270, 1
  %v1272 = vadd.f32 %v1270, %v1271
  %v1273 = vrot.slane %v1185, 4
  %v1274 = vadd.f32 %v1185, %v1273
  %v1275 = vrot.slane %v1274, 2
  %v1276 = vadd.f32 %v1274, %v1275
  %v1277 = vrot.slane %v1276, 1
  %v1278 = vadd.f32 %v1276, %v1277
  %v1279 = vrot.slane %v1188, 4
  %v1280 = vadd.f32 %v1188, %v1279
  %v1281 = vrot.slane %v1280, 2
  %v1282 = vadd.f32 %v1280, %v1281
  %v1283 = vrot.slane %v1282, 1
  %v1284 = vadd.f32 %v1282, %v1283
  %v1285 = vrot.slane %v1191, 4
  %v1286 = vadd.f32 %v1191, %v1285
  %v1287 = vrot.slane %v1286, 2
  %v1288 = vadd.f32 %v1286, %v1287
  %v1289 = vrot.slane %v1288, 1
  %v1290 = vadd.f32 %v1288, %v1289
  %v1291 = vrot.slane %v1194, 4
  %v1292 = vadd.f32 %v1194, %v1291
  %v1293 = vrot.slane %v1292, 2
  %v1294 = vadd.f32 %v1292, %v1293
  %v1295 = vrot.slane %v1294, 1
  %v1296 = vadd.f32 %v1294, %v1295
  %v1297 = vrot.slane %v1197, 4
  %v1298 = vadd.f32 %v1197, %v1297
  %v1299 = vrot.slane %v1298, 2
  %v1300 = vadd.f32 %v1298, %v1299
  %v1301 = vrot.slane %v1300, 1
  %v1302 = vadd.f32 %v1300, %v1301
  %v1303 = vrot.slane %v1200, 4
  %v1304 = vadd.f32 %v1200, %v1303
  %v1305 = vrot.slane %v1304, 2
  %v1306 = vadd.f32 %v1304, %v1305
  %v1307 = vrot.slane %v1306, 1
  %v1308 = vadd.f32 %v1306, %v1307
  %v1309 = vrot.slane %v1203, 4
  %v1310 = vadd.f32 %v1203, %v1309
  %v1311 = vrot.slane %v1310, 2
  %v1312 = vadd.f32 %v1310, %v1311
  %v1313 = vrot.slane %v1312, 1
  %v1314 = vadd.f32 %v1312, %v1313
  %v1315 = vrot.slane %v1206, 4
  %v1316 = vadd.f32 %v1206, %v1315
  %v1317 = vrot.slane %v1316, 2
  %v1318 = vadd.f32 %v1316, %v1317
  %v1319 = vrot.slane %v1318, 1
  %v1320 = vadd.f32 %v1318, %v1319
  %v1321 = vrot.slane %v1209, 4
  %v1322 = vadd.f32 %v1209, %v1321
  %v1323 = vrot.slane %v1322, 2
  %v1324 = vadd.f32 %v1322, %v1323
  %v1325 = vrot.slane %v1324, 1
  %v1326 = vadd.f32 %v1324, %v1325
  %v1327 = vrot.slane %v1212, 4
  %v1328 = vadd.f32 %v1212, %v1327
  %v1329 = vrot.slane %v1328, 2
  %v1330 = vadd.f32 %v1328, %v1329
  %v1331 = vrot.slane %v1330, 1
  %v1332 = vadd.f32 %v1330, %v1331
  %v1333 = vrot.slane %v1215, 4
  %v1334 = vadd.f32 %v1215, %v1333
  %v1335 = vrot.slane %v1334, 2
  %v1336 = vadd.f32 %v1334, %v1335
  %v1337 = vrot.slane %v1336, 1
  %v1338 = vadd.f32 %v1336, %v1337
  %v1339 = vrot.slane %v1218, 4
  %v1340 = vadd.f32 %v1218, %v1339
  %v1341 = vrot.slane %v1340, 2
  %v1342 = vadd.f32 %v1340, %v1341
  %v1343 = vrot.slane %v1342, 1
  %v1344 = vadd.f32 %v1342, %v1343
  %v1345 = vrot.slane %v1221, 4
  %v1346 = vadd.f32 %v1221, %v1345
  %v1347 = vrot.slane %v1346, 2
  %v1348 = vadd.f32 %v1346, %v1347
  %v1349 = vrot.slane %v1348, 1
  %v1350 = vadd.f32 %v1348, %v1349
  %v1351 = vrot.slane %v1224, 4
  %v1352 = vadd.f32 %v1224, %v1351
  %v1353 = vrot.slane %v1352, 2
  %v1354 = vadd.f32 %v1352, %v1353
  %v1355 = vrot.slane %v1354, 1
  %v1356 = vadd.f32 %v1354, %v1355
  %v1357 = vrot.slane %v1227, 4
  %v1358 = vadd.f32 %v1227, %v1357
  %v1359 = vrot.slane %v1358, 2
  %v1360 = vadd.f32 %v1358, %v1359
  %v1361 = vrot.slane %v1360, 1
  %v1362 = vadd.f32 %v1360, %v1361
  %v1363 = vrot.slane %v1230, 4
  %v1364 = vadd.f32 %v1230, %v1363
  %v1365 = vrot.slane %v1364, 2
  %v1366 = vadd.f32 %v1364, %v1365
  %v1367 = vrot.slane %v1366, 1
  %v1368 = vadd.f32 %v1366, %v1367
  %v1369 = vrot.slane %v1233, 4
  %v1370 = vadd.f32 %v1233, %v1369
  %v1371 = vrot.slane %v1370, 2
  %v1372 = vadd.f32 %v1370, %v1371
  %v1373 = vrot.slane %v1372, 1
  %v1374 = vadd.f32 %v1372, %v1373
  %v1375 = vrot.slane %v1236, 4
  %v1376 = vadd.f32 %v1236, %v1375
  %v1377 = vrot.slane %v1376, 2
  %v1378 = vadd.f32 %v1376, %v1377
  %v1379 = vrot.slane %v1378, 1
  %v1380 = vadd.f32 %v1378, %v1379
  %v1381 = vrot.slane %v1239, 4
  %v1382 = vadd.f32 %v1239, %v1381
  %v1383 = vrot.slane %v1382, 2
  %v1384 = vadd.f32 %v1382, %v1383
  %v1385 = vrot.slane %v1384, 1
  %v1386 = vadd.f32 %v1384, %v1385
  %v1387 = vrot.slane %v1242, 4
  %v1388 = vadd.f32 %v1242, %v1387
  %v1389 = vrot.slane %v1388, 2
  %v1390 = vadd.f32 %v1388, %v1389
  %v1391 = vrot.slane %v1390, 1
  %v1392 = vadd.f32 %v1390, %v1391
  %v1393 = vmul.f32 %v998, 0.00390625
  %v1394 = vmul.f32 %v1004, 0.00390625
  %v1395 = vmul.f32 %v1010, 0.00390625
  %v1396 = vmul.f32 %v1016, 0.00390625
  %v1397 = vmul.f32 %v1022, 0.00390625
  %v1398 = vmul.f32 %v1028, 0.00390625
  %v1399 = vmul.f32 %v1034, 0.00390625
  %v1400 = vmul.f32 %v1040, 0.00390625
  %v1401 = vmul.f32 %v1046, 0.00390625
  %v1402 = vmul.f32 %v1052, 0.00390625
  %v1403 = vmul.f32 %v1058, 0.00390625
  %v1404 = vmul.f32 %v1064, 0.00390625
  %v1405 = vmul.f32 %v1070, 0.00390625
  %v1406 = vmul.f32 %v1076, 0.00390625
  %v1407 = vmul.f32 %v1082, 0.00390625
  %v1408 = vmul.f32 %v1088, 0.00390625
  %v1409 = vmul.f32 %v1094, 0.00390625
  %v1410 = vmul.f32 %v1100, 0.00390625
  %v1411 = vmul.f32 %v1106, 0.00390625
  %v1412 = vmul.f32 %v1112, 0.00390625
  %v1413 = vmul.f32 %v1118, 0.00390625
  %v1414 = vmul.f32 %v1124, 0.00390625
  %v1415 = vmul.f32 %v1130, 0.00390625
  %v1416 = vmul.f32 %v1136, 0.00390625
  %v1417 = vmul.f32 %v1142, 0.00390625
  %v1418 = vmul.f32 %v1248, 0.00390625
  %v1419 = vmul.f32 %v1254, 0.00390625
  %v1420 = vmul.f32 %v1260, 0.00390625
  %v1421 = vmul.f32 %v1266, 0.00390625
  %v1422 = vmul.f32 %v1272, 0.00390625
  %v1423 = vmul.f32 %v1278, 0.00390625
  %v1424 = vmul.f32 %v1284, 0.00390625
  %v1425 = vmul.f32 %v1290, 0.00390625
  %v1426 = vmul.f32 %v1296, 0.00390625
  %v1427 = vmul.f32 %v1302, 0.00390625
  %v1428 = vmul.f32 %v1308, 0.00390625
  %v1429 = vmul.f32 %v1314, 0.00390625
  %v1430 = vmul.f32 %v1320, 0.00390625
  %v1431 = vmul.f32 %v1326, 0.00390625
  %v1432 = vmul.f32 %v1332, 0.00390625
  %v1433 = vmul.f32 %v1338, 0.00390625
  %v1434 = vmul.f32 %v1344, 0.00390625
  %v1435 = vmul.f32 %v1350, 0.00390625
  %v1436 = vmul.f32 %v1356, 0.00390625
  %v1437 = vmul.f32 %v1362, 0.00390625
  %v1438 = vmul.f32 %v1368, 0.00390625
  %v1439 = vmul.f32 %v1374, 0.00390625
  %v1440 = vmul.f32 %v1380, 0.00390625
  %v1441 = vmul.f32 %v1386, 0.00390625
  %v1442 = vmul.f32 %v1392, 0.00390625
  %v1443 = vmul.f32 %v1393, %v1393
  %v1444 = vmul.f32 %v1394, %v1394
  %v1445 = vmul.f32 %v1395, %v1395
  %v1446 = vmul.f32 %v1396, %v1396
  %v1447 = vmul.f32 %v1397, %v1397
  %v1448 = vmul.f32 %v1398, %v1398
  %v1449 = vmul.f32 %v1399, %v1399
  %v1450 = vmul.f32 %v1400, %v1400
  %v1451 = vmul.f32 %v1401, %v1401
  %v1452 = vmul.f32 %v1402, %v1402
  %v1453 = vmul.f32 %v1403, %v1403
  %v1454 = vmul.f32 %v1404, %v1404
  %v1455 = vmul.f32 %v1405, %v1405
  %v1456 = vmul.f32 %v1406, %v1406
  %v1457 = vmul.f32 %v1407, %v1407
  %v1458 = vmul.f32 %v1408, %v1408
  %v1459 = vmul.f32 %v1409, %v1409
  %v1460 = vmul.f32 %v1410, %v1410
  %v1461 = vmul.f32 %v1411, %v1411
  %v1462 = vmul.f32 %v1412, %v1412
  %v1463 = vmul.f32 %v1413, %v1413
  %v1464 = vmul.f32 %v1414, %v1414
  %v1465 = vmul.f32 %v1415, %v1415
  %v1466 = vmul.f32 %v1416, %v1416
  %v1467 = vmul.f32 %v1417, %v1417
  %v1468 = vsub.f32 %v1418, %v1443
  %v1469 = vsub.f32 %v1419, %v1444
  %v1470 = vsub.f32 %v1420, %v1445
  %v1471 = vsub.f32 %v1421, %v1446
  %v1472 = vsub.f32 %v1422, %v1447
  %v1473 = vsub.f32 %v1423, %v1448
  %v1474 = vsub.f32 %v1424, %v1449
  %v1475 = vsub.f32 %v1425, %v1450
  %v1476 = vsub.f32 %v1426, %v1451
  %v1477 = vsub.f32 %v1427, %v1452
  %v1478 = vsub.f32 %v1428, %v1453
  %v1479 = vsub.f32 %v1429, %v1454
  %v1480 = vsub.f32 %v1430, %v1455
  %v1481 = vsub.f32 %v1431, %v1456
  %v1482 = vsub.f32 %v1432, %v1457
  %v1483 = vsub.f32 %v1433, %v1458
  %v1484 = vsub.f32 %v1434, %v1459
  %v1485 = vsub.f32 %v1435, %v1460
  %v1486 = vsub.f32 %v1436, %v1461
  %v1487 = vsub.f32 %v1437, %v1462
  %v1488 = vsub.f32 %v1438, %v1463
  %v1489 = vsub.f32 %v1439, %v1464
  %v1490 = vsub.f32 %v1440, %v1465
  %v1491 = vsub.f32 %v1441, %v1466
  %v1492 = vsub.f32 %v1442, %v1467
  %v1493 = vsub.f32 %v893, %v1393
  %v1494 = vsub.f32 %v894, %v1394
  %v1495 = vsub.f32 %v895, %v1395
  %v1496 = vsub.f32 %v896, %v1396
  %v1497 = vsub.f32 %v897, %v1397
  %v1498 = vsub.f32 %v898, %v1398
  %v1499 = vsub.f32 %v899, %v1399
  %v1500 = vsub.f32 %v900, %v1400
  %v1501 = vsub.f32 %v901, %v1401
  %v1502 = vsub.f32 %v902, %v1402
  %v1503 = vsub.f32 %v903, %v1403
  %v1504 = vsub.f32 %v904, %v1404
  %v1505 = vsub.f32 %v905, %v1405
  %v1506 = vsub.f32 %v906, %v1406
  %v1507 = vsub.f32 %v907, %v1407
  %v1508 = vsub.f32 %v908, %v1408
  %v1509 = vsub.f32 %v909, %v1409
  %v1510 = vsub.f32 %v910, %v1410
  %v1511 = vsub.f32 %v911, %v1411
  %v1512 = vsub.f32 %v912, %v1412
  %v1513 = vsub.f32 %v913, %v1413
  %v1514 = vsub.f32 %v914, %v1414
  %v1515 = vsub.f32 %v915, %v1415
  %v1516 = vsub.f32 %v916, %v1416
  %v1517 = vsub.f32 %v917, %v1417
  %v1518 = vadd.f32 %v1468, 1e-05
  %v1519 = vadd.f32 %v1469, 1e-05
  %v1520 = vadd.f32 %v1470, 1e-05
  %v1521 = vadd.f32 %v1471, 1e-05
  %v1522 = vadd.f32 %v1472, 1e-05
  %v1523 = vadd.f32 %v1473, 1e-05
  %v1524 = vadd.f32 %v1474, 1e-05
  %v1525 = vadd.f32 %v1475, 1e-05
  %v1526 = vadd.f32 %v1476, 1e-05
  %v1527 = vadd.f32 %v1477, 1e-05
  %v1528 = vadd.f32 %v1478, 1e-05
  %v1529 = vadd.f32 %v1479, 1e-05
  %v1530 = vadd.f32 %v1480, 1e-05
  %v1531 = vadd.f32 %v1481, 1e-05
  %v1532 = vadd.f32 %v1482, 1e-05
  %v1533 = vadd.f32 %v1483, 1e-05
  %v1534 = vadd.f32 %v1484, 1e-05
  %v1535 = vadd.f32 %v1485, 1e-05
  %v1536 = vadd.f32 %v1486, 1e-05
  %v1537 = vadd.f32 %v1487, 1e-05
  %v1538 = vadd.f32 %v1488, 1e-05
  %v1539 = vadd.f32 %v1489, 1e-05
  %v1540 = vadd.f32 %v1490, 1e-05
  %v1541 = vadd.f32 %v1491, 1e-05
  %v1542 = vadd.f32 %v1492, 1e-05
  %v1543 = vrsqrt.pop %v1518
  %v1544 = vrsqrt.pop %v1519
  %v1545 = vrsqrt.pop %v1520
  %v1546 = vrsqrt.pop %v1521
  %v1547 = vrsqrt.pop %v1522
  %v1548 = vrsqrt.pop %v1523
  %v1549 = vrsqrt.pop %v1524
  %v1550 = vrsqrt.pop %v1525
  %v1551 = vrsqrt.pop %v1526
  %v1552 = vrsqrt.pop %v1527
  %v1553 = vrsqrt.pop %v1528
  %v1554 = vrsqrt.pop %v1529
  %v1555 = vrsqrt.pop %v1530
  %v1556 = vrsqrt.pop %v1531
  %v1557 = vrsqrt.pop %v1532
  %v1558 = vrsqrt.pop %v1533
  %v1559 = vrsqrt.pop %v1534
  %v1560 = vrsqrt.pop %v1535
  %v1561 = vrsqrt.pop %v1536
  %v1562 = vrsqrt.pop %v1537
  %v1563 = vrsqrt.pop %v1538
  %v1564 = vrsqrt.pop %v1539
  %v1565 = vrsqrt.pop %v1540
  %v1566 = vrsqrt.pop %v1541
  %v1567 = vrsqrt.pop %v1542
  %v1568 = vmul.f32 %v1493, %v1543
  %v1569 = vmul.f32 %v1494, %v1544
  %v1570 = vmul.f32 %v1495, %v1545
  %v1571 = vmul.f32 %v1496, %v1546
  %v1572 = vmul.f32 %v1497, %v1547
  %v1573 = vmul.f32 %v1498, %v1548
  %v1574 = vmul.f32 %v1499, %v1549
  %v1575 = vmul.f32 %v1500, %v1550
  %v1576 = vmul.f32 %v1501, %v1551
  %v1577 = vmul.f32 %v1502, %v1552
  %v1578 = vmul.f32 %v1503, %v1553
  %v1579 = vmul.f32 %v1504, %v1554
  %v1580 = vmul.f32 %v1505, %v1555
  %v1581 = vmul.f32 %v1506, %v1556
  %v1582 = vmul.f32 %v1507, %v1557
  %v1583 = vmul.f32 %v1508, %v1558
  %v1584 = vmul.f32 %v1509, %v1559
  %v1585 = vmul.f32 %v1510, %v1560
  %v1586 = vmul.f32 %v1511, %v1561
  %v1587 = vmul.f32 %v1512, %v1562
  %v1588 = vmul.f32 %v1513, %v1563
  %v1589 = vmul.f32 %v1514, %v1564
  %v1590 = vmul.f32 %v1515, %v1565
  %v1591 = vmul.f32 %v1516, %v1566
  %v1592 = vmul.f32 %v1517, %v1567
  %vm1593 = vcmp.ne.f32.partialorder %v1568, %v1568
  %vm1594 = vcmp.ne.f32.partialorder %v1569, %v1569
  %vm1595 = vcmp.ne.f32.partialorder %v1570, %v1570
  %vm1596 = vcmp.ne.f32.partialorder %v1571, %v1571
  %vm1597 = vcmp.ne.f32.partialorder %v1572, %v1572
  %vm1598 = vcmp.ne.f32.partialorder %v1573, %v1573
  %vm1599 = vcmp.ne.f32.partialorder %v1574, %v1574
  %vm1600 = vcmp.ne.f32.partialorder %v1575, %v1575
  %vm1601 = vcmp.ne.f32.partialorder %v1576, %v1576
  %vm1602 = vcmp.ne.f32.partialorder %v1577, %v1577
  %vm1603 = vcmp.ne.f32.partialorder %v1578, %v1578
  %vm1604 = vcmp.ne.f32.partialorder %v1579, %v1579
  %vm1605 = vcmp.ne.f32.partialorder %v1580, %v1580
  %vm1606 = vcmp.ne.f32.partialorder %v1581, %v1581
  %vm1607 = vcmp.ne.f32.partialorder %v1582, %v1582
  %vm1608 = vcmp.ne.f32.partialorder %v1583, %v1583
  %vm1609 = vcmp.ne.f32.partialorder %v1584, %v1584
  %vm1610 = vcmp.ne.f32.partialorder %v1585, %v1585
  %vm1611 = vcmp.ne.f32.partialorder %v1586, %v1586
  %vm1612 = vcmp.ne.f32.partialorder %v1587, %v1587
  %vm1613 = vcmp.ne.f32.partialorder %v1588, %v1588
  %vm1614 = vcmp.ne.f32.partialorder %v1589, %v1589
  %vm1615 = vcmp.ne.f32.partialorder %v1590, %v1590
  %vm1616 = vcmp.ne.f32.partialorder %v1591, %v1591
  %vm1617 = vcmp.ne.f32.partialorder %v1592, %v1592
  %v1618 = vsel %vm1593, 0.0, %v1568
  %v1619 = vsel %vm1594, 0.0, %v1569
  %v1620 = vsel %vm1595, 0.0, %v1570
  %v1621 = vsel %vm1596, 0.0, %v1571
  %v1622 = vsel %vm1597, 0.0, %v1572
  %v1623 = vsel %vm1598, 0.0, %v1573
  %v1624 = vsel %vm1599, 0.0, %v1574
  %v1625 = vsel %vm1600, 0.0, %v1575
  %v1626 = vsel %vm1601, 0.0, %v1576
  %v1627 = vsel %vm1602, 0.0, %v1577
  %v1628 = vsel %vm1603, 0.0, %v1578
  %v1629 = vsel %vm1604, 0.0, %v1579
  %v1630 = vsel %vm1605, 0.0, %v1580
  %v1631 = vsel %vm1606, 0.0, %v1581
  %v1632 = vsel %vm1607, 0.0, %v1582
  %v1633 = vsel %vm1608, 0.0, %v1583
  %v1634 = vsel %vm1609, 0.0, %v1584
  %v1635 = vsel %vm1610, 0.0, %v1585
  %v1636 = vsel %vm1611, 0.0, %v1586
  %v1637 = vsel %vm1612, 0.0, %v1587
  %v1638 = vsel %vm1613, 0.0, %v1588
  %v1639 = vsel %vm1614, 0.0, %v1589
  %v1640 = vsel %vm1615, 0.0, %v1590
  %v1641 = vsel %vm1616, 0.0, %v1591
  %v1642 = vsel %vm1617, 0.0, %v1592
  %v1643 = vmax.f32 %v1618, 0.0
  %v1644 = vmax.f32 %v1619, 0.0
  %v1645 = vmax.f32 %v1620, 0.0
  %v1646 = vmax.f32 %v1621, 0.0
  %v1647 = vmax.f32 %v1622, 0.0
  %v1648 = vmax.f32 %v1623, 0.0
  %v1649 = vmax.f32 %v1624, 0.0
  %v1650 = vmax.f32 %v1625, 0.0
  %v1651 = vmax.f32 %v1626, 0.0
  %v1652 = vmax.f32 %v1627, 0.0
  %v1653 = vmax.f32 %v1628, 0.0
  %v1654 = vmax.f32 %v1629, 0.0
  %v1655 = vmax.f32 %v1630, 0.0
  %v1656 = vmax.f32 %v1631, 0.0
  %v1657 = vmax.f32 %v1632, 0.0
  %v1658 = vmax.f32 %v1633, 0.0
  %v1659 = vmax.f32 %v1634, 0.0
  %v1660 = vmax.f32 %v1635, 0.0
  %v1661 = vmax.f32 %v1636, 0.0
  %v1662 = vmax.f32 %v1637, 0.0
  %v1663 = vmax.f32 %v1638, 0.0
  %v1664 = vmax.f32 %v1639, 0.0
  %v1665 = vmax.f32 %v1640, 0.0
  %v1666 = vmax.f32 %v1641, 0.0
  %v1667 = vmax.f32 %v1642, 0.0
  %v1668 = vadd.f32 %v773, %v1643
  %v1669 = vadd.f32 %v774, %v1644
  %v1670 = vadd.f32 %v775, %v1645
  %v1671 = vadd.f32 %v776, %v1646
  %v1672 = vadd.f32 %v777, %v1647
  %v1673 = vadd.f32 %v774, %v1648
  %v1674 = vadd.f32 %v778, %v1649
  %v1675 = vadd.f32 %v779, %v1650
  %v1676 = vadd.f32 %v780, %v1651
  %v1677 = vadd.f32 %v781, %v1652
  %v1678 = vadd.f32 %v775, %v1653
  %v1679 = vadd.f32 %v779, %v1654
  %v1680 = vadd.f32 %v782, %v1655
  %v1681 = vadd.f32 %v783, %v1656
  %v1682 = vadd.f32 %v784, %v1657
  %v1683 = vadd.f32 %v776, %v1658
  %v1684 = vadd.f32 %v780, %v1659
  %v1685 = vadd.f32 %v783, %v1660
  %v1686 = vadd.f32 %v785, %v1661
  %v1687 = vadd.f32 %v786, %v1662
  %v1688 = vadd.f32 %v777, %v1663
  %v1689 = vadd.f32 %v781, %v1664
  %v1690 = vadd.f32 %v784, %v1665
  %v1691 = vadd.f32 %v786, %v1666
  %v1692 = vadd.f32 %v787, %v1667
  %v1693 = vsub.f32 0.0, %v1668
  %v1694 = vsub.f32 0.0, %v1669
  %v1695 = vsub.f32 0.0, %v1670
  %v1696 = vsub.f32 0.0, %v1671
  %v1697 = vsub.f32 0.0, %v1672
  %v1698 = vsub.f32 0.0, %v1673
  %v1699 = vsub.f32 0.0, %v1674
  %v1700 = vsub.f32 0.0, %v1675
  %v1701 = vsub.f32 0.0, %v1676
  %v1702 = vsub.f32 0.0, %v1677
  %v1703 = vsub.f32 0.0, %v1678
  %v1704 = vsub.f32 0.0, %v1679
  %v1705 = vsub.f32 0.0, %v1680
  %v1706 = vsub.f32 0.0, %v1681
  %v1707 = vsub.f32 0.0, %v1682
  %v1708 = vsub.f32 0.0, %v1683
  %v1709 = vsub.f32 0.0, %v1684
  %v1710 = vsub.f32 0.0, %v1685
  %v1711 = vsub.f32 0.0, %v1686
  %v1712 = vsub.f32 0.0, %v1687
  %v1713 = vsub.f32 0.0, %v1688
  %v1714 = vsub.f32 0.0, %v1689
  %v1715 = vsub.f32 0.0, %v1690
  %v1716 = vsub.f32 0.0, %v1691
  %v1717 = vsub.f32 0.0, %v1692
  %v1718 = vmul.f32 %v1693, 1.442695
  %v1719 = vpow.pop %v1718
  %v1720 = vmul.f32 %v1694, 1.442695
  %v1721 = vpow.pop %v1720
  %v1722 = vmul.f32 %v1695, 1.442695
  %v1723 = vpow.pop %v1722
  %v1724 = vmul.f32 %v1696, 1.442695
  %v1725 = vpow.pop %v1724
  %v1726 = vmul.f32 %v1697, 1.442695
  %v1727 = vpow.pop %v1726
  %v1728 = vmul.f32 %v1698, 1.442695
  %v1729 = vpow.pop %v1728
  %v1730 = vmul.f32 %v1699, 1.442695
  %v1731 = vpow.pop %v1730
  %v1732 = vmul.f32 %v1700, 1.442695
  %v1733 = vpow.pop %v1732
  %v1734 = vmul.f32 %v1701, 1.442695
  %v1735 = vpow.pop %v1734
  %v1736 = vmul.f32 %v1702, 1.442695
  %v1737 = vpow.pop %v1736
  %v1738 = vmul.f32 %v1703, 1.442695
  %v1739 = vpow.pop %v1738
  %v1740 = vmul.f32 %v1704, 1.442695
  %v1741 = vpow.pop %v1740
  %v1742 = vmul.f32 %v1705, 1.442695
  %v1743 = vpow.pop %v1742
  %v1744 = vmul.f32 %v1706, 1.442695
  %v1745 = vpow.pop %v1744
  %v1746 = vmul.f32 %v1707, 1.442695
  %v1747 = vpow.pop %v1746
  %v1748 = vmul.f32 %v1708, 1.442695
  %v1749 = vpow.pop %v1748
  %v1750 = vmul.f32 %v1709, 1.442695
  %v1751 = vpow.pop %v1750
  %v1752 = vmul.f32 %v1710, 1.442695
  %v1753 = vpow.pop %v1752
  %v1754 = vmul.f32 %v1711, 1.442695
  %v1755 = vpow.pop %v1754
  %v1756 = vmul.f32 %v1712, 1.442695
  %v1757 = vpow.pop %v1756
  %v1758 = vmul.f32 %v1713, 1.442695
  %v1759 = vpow.pop %v1758
  %v1760 = vmul.f32 %v1714, 1.442695
  %v1761 = vpow.pop %v1760
  %v1762 = vmul.f32 %v1715, 1.442695
  %v1763 = vpow.pop %v1762
  %v1764 = vmul.f32 %v1716, 1.442695
  %v1765 = vpow.pop %v1764
  %v1766 = vmul.f32 %v1717, 1.442695
  %v1767 = vpow.pop %v1766
  %v1768 = vadd.f32 %v1719, 1.0
  %v1769 = vadd.f32 %v1721, 1.0
  %v1770 = vadd.f32 %v1723, 1.0
  %v1771 = vadd.f32 %v1725, 1.0
  %v1772 = vadd.f32 %v1727, 1.0
  %v1773 = vadd.f32 %v1729, 1.0
  %v1774 = vadd.f32 %v1731, 1.0
  %v1775 = vadd.f32 %v1733, 1.0
  %v1776 = vadd.f32 %v1735, 1.0
  %v1777 = vadd.f32 %v1737, 1.0
  %v1778 = vadd.f32 %v1739, 1.0
  %v1779 = vadd.f32 %v1741, 1.0
  %v1780 = vadd.f32 %v1743, 1.0
  %v1781 = vadd.f32 %v1745, 1.0
  %v1782 = vadd.f32 %v1747, 1.0
  %v1783 = vadd.f32 %v1749, 1.0
  %v1784 = vadd.f32 %v1751, 1.0
  %v1785 = vadd.f32 %v1753, 1.0
  %v1786 = vadd.f32 %v1755, 1.0
  %v1787 = vadd.f32 %v1757, 1.0
  %v1788 = vadd.f32 %v1759, 1.0
  %v1789 = vadd.f32 %v1761, 1.0
  %v1790 = vadd.f32 %v1763, 1.0
  %v1791 = vadd.f32 %v1765, 1.0
  %v1792 = vadd.f32 %v1767, 1.0
  %v1793 = vrcp.pop %v1768
  %v1794 = vrcp.pop %v1769
  %v1795 = vrcp.pop %v1770
  %v1796 = vrcp.pop %v1771
  %v1797 = vrcp.pop %v1772
  %v1798 = vrcp.pop %v1773
  %v1799 = vrcp.pop %v1774
  %v1800 = vrcp.pop %v1775
  %v1801 = vrcp.pop %v1776
  %v1802 = vrcp.pop %v1777
  %v1803 = vrcp.pop %v1778
  %v1804 = vrcp.pop %v1779
  %v1805 = vrcp.pop %v1780
  %v1806 = vrcp.pop %v1781
  %v1807 = vrcp.pop %v1782
  %v1808 = vrcp.pop %v1783
  %v1809 = vrcp.pop %v1784
  %v1810 = vrcp.pop %v1785
  %v1811 = vrcp.pop %v1786
  %v1812 = vrcp.pop %v1787
  %v1813 = vrcp.pop %v1788
  %v1814 = vrcp.pop %v1789
  %v1815 = vrcp.pop %v1790
  %v1816 = vrcp.pop %v1791
  %v1817 = vrcp.pop %v1792
  %v1818 = vmul.f32 %v1793, 1.442695
  %v1819 = vpow.pop %v1818
  %v1820 = vmul.f32 %v1794, 1.442695
  %v1821 = vpow.pop %v1820
  %v1822 = vmul.f32 %v1795, 1.442695
  %v1823 = vpow.pop %v1822
  %v1824 = vmul.f32 %v1796, 1.442695
  %v1825 = vpow.pop %v1824
  %v1826 = vmul.f32 %v1797, 1.442695
  %v1827 = vpow.pop %v1826
  %v1828 = vmul.f32 %v1798, 1.442695
  %v1829 = vpow.pop %v1828
  %v1830 = vmul.f32 %v1799, 1.442695
  %v1831 = vpow.pop %v1830
  %v1832 = vmul.f32 %v1800, 1.442695
  %v1833 = vpow.pop %v1832
  %v1834 = vmul.f32 %v1801, 1.442695
  %v1835 = vpow.pop %v1834
  %v1836 = vmul.f32 %v1802, 1.442695
  %v1837 = vpow.pop %v1836
  %v1838 = vmul.f32 %v1803, 1.442695
  %v1839 = vpow.pop %v1838
  %v1840 = vmul.f32 %v1804, 1.442695
  %v1841 = vpow.pop %v1840
  %v1842 = vmul.f32 %v1805, 1.442695
  %v1843 = vpow.pop %v1842
  %v1844 = vmul.f32 %v1806, 1.442695
  %v1845 = vpow.pop %v1844
  %v1846 = vmul.f32 %v1807, 1.442695
  %v1847 = vpow.pop %v1846
  %v1848 = vmul.f32 %v1808, 1.442695
  %v1849 = vpow.pop %v1848
  %v1850 = vmul.f32 %v1809, 1.442695
  %v1851 = vpow.pop %v1850
  %v1852 = vmul.f32 %v1810, 1.442695
  %v1853 = vpow.pop %v1852
  %v1854 = vmul.f32 %v1811, 1.442695
  %v1855 = vpow.pop %v1854
  %v1856 = vmul.f32 %v1812, 1.442695
  %v1857 = vpow.pop %v1856
  %v1858 = vmul.f32 %v1813, 1.442695
  %v1859 = vpow.pop %v1858
  %v1860 = vmul.f32 %v1814, 1.442695
  %v1861 = vpow.pop %v1860
  %v1862 = vmul.f32 %v1815, 1.442695
  %v1863 = vpow.pop %v1862
  %v1864 = vmul.f32 %v1816, 1.442695
  %v1865 = vpow.pop %v1864
  %v1866 = vmul.f32 %v1817, 1.442695
  %v1867 = vpow.pop %v1866
  %v1868 = vsel %vm110, %v1819, 0.0
  %v1869 = vsel %vm110, %v1821, 0.0
  %v1870 = vadd.f32 %v1868, %v1869
  %v1871 = vsel %vm110, %v1823, 0.0
  %v1872 = vadd.f32 %v1870, %v1871
  %v1873 = vsel %vm110, %v1825, 0.0
  %v1874 = vadd.f32 %v1872, %v1873
  %v1875 = vsel %vm110, %v1827, 0.0
  %v1876 = vadd.f32 %v1874, %v1875
  %v1877 = vsel %vm110, %v1829, 0.0
  %v1878 = vsel %vm110, %v1831, 0.0
  %v1879 = vadd.f32 %v1877, %v1878
  %v1880 = vsel %vm110, %v1833, 0.0
  %v1881 = vadd.f32 %v1879, %v1880
  %v1882 = vsel %vm110, %v1835, 0.0
  %v1883 = vadd.f32 %v1881, %v1882
  %v1884 = vsel %vm110, %v1837, 0.0
  %v1885 = vadd.f32 %v1883, %v1884
  %v1886 = vsel %vm110, %v1839, 0.0
  %v1887 = vsel %vm110, %v1841, 0.0
  %v1888 = vadd.f32 %v1886, %v1887
  %v1889 = vsel %vm110, %v1843, 0.0
  %v1890 = vadd.f32 %v1888, %v1889
  %v1891 = vsel %vm110, %v1845, 0.0
  %v1892 = vadd.f32 %v1890, %v1891
  %v1893 = vsel %vm110, %v1847, 0.0
  %v1894 = vadd.f32 %v1892, %v1893
  %v1895 = vsel %vm110, %v1849, 0.0
  %v1896 = vsel %vm110, %v1851, 0.0
  %v1897 = vadd.f32 %v1895, %v1896
  %v1898 = vsel %vm110, %v1853, 0.0
  %v1899 = vadd.f32 %v1897, %v1898
  %v1900 = vsel %vm110, %v1855, 0.0
  %v1901 = vadd.f32 %v1899, %v1900
  %v1902 = vsel %vm110, %v1857, 0.0
  %v1903 = vadd.f32 %v1901, %v1902
  %v1904 = vsel %vm110, %v1859, 0.0
  %v1905 = vsel %vm110, %v1861, 0.0
  %v1906 = vadd.f32 %v1904, %v1905
  %v1907 = vsel %vm110, %v1863, 0.0
  %v1908 = vadd.f32 %v1906, %v1907
  %v1909 = vsel %vm110, %v1865, 0.0
  %v1910 = vadd.f32 %v1908, %v1909
  %v1911 = vsel %vm110, %v1867, 0.0
  %v1912 = vadd.f32 %v1910, %v1911
  %1913 = vrot.lane.b32.xlu0 %v732, 32
  %v1914 = vpop.permute.xlu0 %1913
  %1915 = vrot.lane.b32.xlu0 %v736, 32
  %v1916 = vpop.permute.xlu0 %1915
  %1917 = vrot.lane.b32.xlu0 %v742, 32
  %v1918 = vpop.permute.xlu0 %1917
  %1919 = vrot.lane.b32.xlu0 %v746, 32
  %v1920 = vpop.permute.xlu0 %1919
  %1921 = vrot.lane.b32.xlu0 %v752, 32
  %v1922 = vpop.permute.xlu0 %1921
  %v1928 = vmul.f32 %v1819, %v1914
  %v1929 = vmul.f32 %v1821, %v1916
  %v1930 = vmul.f32 %v1823, %v1918
  %v1931 = vmul.f32 %v1825, %v1920
  %v1932 = vmul.f32 %v1827, %v1922
  %v1933 = vmul.f32 %v1829, %v1914
  %v1934 = vmul.f32 %v1831, %v1916
  %v1935 = vmul.f32 %v1833, %v1918
  %v1936 = vmul.f32 %v1835, %v1920
  %v1937 = vmul.f32 %v1837, %v1922
  %v1938 = vmul.f32 %v1839, %v1914
  %v1939 = vmul.f32 %v1841, %v1916
  %v1940 = vmul.f32 %v1843, %v1918
  %v1941 = vmul.f32 %v1845, %v1920
  %v1942 = vmul.f32 %v1847, %v1922
  %v1943 = vmul.f32 %v1849, %v1914
  %v1944 = vmul.f32 %v1851, %v1916
  %v1945 = vmul.f32 %v1853, %v1918
  %v1946 = vmul.f32 %v1855, %v1920
  %v1947 = vmul.f32 %v1857, %v1922
  %v1948 = vmul.f32 %v1859, %v1914
  %v1949 = vmul.f32 %v1861, %v1916
  %v1950 = vmul.f32 %v1863, %v1918
  %v1951 = vmul.f32 %v1865, %v1920
  %v1952 = vmul.f32 %v1867, %v1922
  %v1953 = vsel %vm110, %v1928, 0.0
  %v1954 = vsel %vm110, %v1929, 0.0
  %v1955 = vadd.f32 %v1953, %v1954
  %v1956 = vsel %vm110, %v1930, 0.0
  %v1957 = vadd.f32 %v1955, %v1956
  %v1958 = vsel %vm110, %v1931, 0.0
  %v1959 = vadd.f32 %v1957, %v1958
  %v1960 = vsel %vm110, %v1932, 0.0
  %v1961 = vadd.f32 %v1959, %v1960
  %v1962 = vsel %vm110, %v1933, 0.0
  %v1963 = vsel %vm110, %v1934, 0.0
  %v1964 = vadd.f32 %v1962, %v1963
  %v1965 = vsel %vm110, %v1935, 0.0
  %v1966 = vadd.f32 %v1964, %v1965
  %v1967 = vsel %vm110, %v1936, 0.0
  %v1968 = vadd.f32 %v1966, %v1967
  %v1969 = vsel %vm110, %v1937, 0.0
  %v1970 = vadd.f32 %v1968, %v1969
  %v1971 = vsel %vm110, %v1938, 0.0
  %v1972 = vsel %vm110, %v1939, 0.0
  %v1973 = vadd.f32 %v1971, %v1972
  %v1974 = vsel %vm110, %v1940, 0.0
  %v1975 = vadd.f32 %v1973, %v1974
  %v1976 = vsel %vm110, %v1941, 0.0
  %v1977 = vadd.f32 %v1975, %v1976
  %v1978 = vsel %vm110, %v1942, 0.0
  %v1979 = vadd.f32 %v1977, %v1978
  %v1980 = vsel %vm110, %v1943, 0.0
  %v1981 = vsel %vm110, %v1944, 0.0
  %v1982 = vadd.f32 %v1980, %v1981
  %v1983 = vsel %vm110, %v1945, 0.0
  %v1984 = vadd.f32 %v1982, %v1983
  %v1985 = vsel %vm110, %v1946, 0.0
  %v1986 = vadd.f32 %v1984, %v1985
  %v1987 = vsel %vm110, %v1947, 0.0
  %v1988 = vadd.f32 %v1986, %v1987
  %v1989 = vsel %vm110, %v1948, 0.0
  %v1990 = vsel %vm110, %v1949, 0.0
  %v1991 = vadd.f32 %v1989, %v1990
  %v1992 = vsel %vm110, %v1950, 0.0
  %v1993 = vadd.f32 %v1991, %v1992
  %v1994 = vsel %vm110, %v1951, 0.0
  %v1995 = vadd.f32 %v1993, %v1994
  %v1996 = vsel %vm110, %v1952, 0.0
  %v1997 = vadd.f32 %v1995, %v1996
  %v1998 = vrcp.pop %v1876
  %v1999 = vrcp.pop %v1885
  %v2000 = vrcp.pop %v1894
  %v2001 = vrcp.pop %v1903
  %v2002 = vrcp.pop %v1912
  %v2003 = vmul.f32 %v1961, %v1998
  %v2004 = vmul.f32 %v1970, %v1999
  %v2005 = vmul.f32 %v1979, %v2000
  %v2006 = vmul.f32 %v1988, %v2001
  %v2007 = vmul.f32 %v1997, %v2002
  %v2008 = vmul.f32 %v2003, 0.2
  %v2009 = vmul.f32 %v2004, 0.2
  %v2010 = vmul.f32 %v2005, 0.2
  %v2011 = vmul.f32 %v2006, 0.2
  %v2012 = vmul.f32 %v2007, 0.2
  %2018 = vrot.lane.b32.xlu0 %v2008, 64
  %v2019 = vpop.permute.xlu0 %2018
  %2020 = vrot.lane.b32.xlu0 %v2009, 64
  %v2021 = vpop.permute.xlu0 %2020
  %2022 = vrot.lane.b32.xlu0 %v2010, 64
  %v2023 = vpop.permute.xlu0 %2022
  %2024 = vrot.lane.b32.xlu0 %v2011, 64
  %v2025 = vpop.permute.xlu0 %2024
  %2026 = vrot.lane.b32.xlu0 %v2012, 64
  %v2027 = vpop.permute.xlu0 %2026
  %v2033 = vadd.f32 %v732, %v2019
  %v2034 = vadd.f32 %v736, %v2021
  %v2035 = vadd.f32 %v742, %v2023
  %v2036 = vadd.f32 %v746, %v2025
  %v2037 = vadd.f32 %v752, %v2027
  %2043 = vrot.lane.b32.xlu0 %v2033, 64
  %v2044 = vpop.permute.xlu0 %2043
  %2045 = vrot.lane.b32.xlu0 %v2034, 64
  %v2046 = vpop.permute.xlu0 %2045
  %2047 = vrot.lane.b32.xlu0 %v2035, 64
  %v2048 = vpop.permute.xlu0 %2047
  %2049 = vrot.lane.b32.xlu0 %v2036, 64
  %v2050 = vpop.permute.xlu0 %2049
  %2051 = vrot.lane.b32.xlu0 %v2037, 64
  %v2052 = vpop.permute.xlu0 %2051
  %v2058 = vsel %vm110, %v2044, 0.0
  %2059 = vadd.xlane.f32.xlu0 %v2058
  %v2060 = vpop.xlane.xlu0 %2059
  %v2061 = vsel %vm110, %v2046, 0.0
  %2062 = vadd.xlane.f32.xlu0 %v2061
  %v2063 = vpop.xlane.xlu0 %2062
  %v2064 = vsel %vm110, %v2048, 0.0
  %2065 = vadd.xlane.f32.xlu0 %v2064
  %v2066 = vpop.xlane.xlu0 %2065
  %v2067 = vsel %vm110, %v2050, 0.0
  %2068 = vadd.xlane.f32.xlu0 %v2067
  %v2069 = vpop.xlane.xlu0 %2068
  %v2070 = vsel %vm110, %v2052, 0.0
  %2071 = vadd.xlane.f32.xlu0 %v2070
  %v2072 = vpop.xlane.xlu0 %2071
  %v2073 = vrot.slane %v2060, 4
  %v2074 = vadd.f32 %v2060, %v2073
  %v2075 = vrot.slane %v2074, 2
  %v2076 = vadd.f32 %v2074, %v2075
  %v2077 = vrot.slane %v2076, 1
  %v2078 = vadd.f32 %v2076, %v2077
  %v2079 = vrot.slane %v2063, 4
  %v2080 = vadd.f32 %v2063, %v2079
  %v2081 = vrot.slane %v2080, 2
  %v2082 = vadd.f32 %v2080, %v2081
  %v2083 = vrot.slane %v2082, 1
  %v2084 = vadd.f32 %v2082, %v2083
  %v2085 = vrot.slane %v2066, 4
  %v2086 = vadd.f32 %v2066, %v2085
  %v2087 = vrot.slane %v2086, 2
  %v2088 = vadd.f32 %v2086, %v2087
  %v2089 = vrot.slane %v2088, 1
  %v2090 = vadd.f32 %v2088, %v2089
  %v2091 = vrot.slane %v2069, 4
  %v2092 = vadd.f32 %v2069, %v2091
  %v2093 = vrot.slane %v2092, 2
  %v2094 = vadd.f32 %v2092, %v2093
  %v2095 = vrot.slane %v2094, 1
  %v2096 = vadd.f32 %v2094, %v2095
  %v2097 = vrot.slane %v2072, 4
  %v2098 = vadd.f32 %v2072, %v2097
  %v2099 = vrot.slane %v2098, 2
  %v2100 = vadd.f32 %v2098, %v2099
  %v2101 = vrot.slane %v2100, 1
  %v2102 = vadd.f32 %v2100, %v2101
  %v2103 = vmul.f32 %v2033, %v2033
  %v2104 = vmul.f32 %v2034, %v2034
  %v2105 = vmul.f32 %v2035, %v2035
  %v2106 = vmul.f32 %v2036, %v2036
  %v2107 = vmul.f32 %v2037, %v2037
  %2113 = vrot.lane.b32.xlu0 %v2103, 64
  %v2114 = vpop.permute.xlu0 %2113
  %2115 = vrot.lane.b32.xlu0 %v2104, 64
  %v2116 = vpop.permute.xlu0 %2115
  %2117 = vrot.lane.b32.xlu0 %v2105, 64
  %v2118 = vpop.permute.xlu0 %2117
  %2119 = vrot.lane.b32.xlu0 %v2106, 64
  %v2120 = vpop.permute.xlu0 %2119
  %2121 = vrot.lane.b32.xlu0 %v2107, 64
  %v2122 = vpop.permute.xlu0 %2121
  %v2128 = vsel %vm110, %v2114, 0.0
  %2129 = vadd.xlane.f32.xlu0 %v2128
  %v2130 = vpop.xlane.xlu0 %2129
  %v2131 = vsel %vm110, %v2116, 0.0
  %2132 = vadd.xlane.f32.xlu0 %v2131
  %v2133 = vpop.xlane.xlu0 %2132
  %v2134 = vsel %vm110, %v2118, 0.0
  %2135 = vadd.xlane.f32.xlu0 %v2134
  %v2136 = vpop.xlane.xlu0 %2135
  %v2137 = vsel %vm110, %v2120, 0.0
  %2138 = vadd.xlane.f32.xlu0 %v2137
  %v2139 = vpop.xlane.xlu0 %2138
  %v2140 = vsel %vm110, %v2122, 0.0
  %2141 = vadd.xlane.f32.xlu0 %v2140
  %v2142 = vpop.xlane.xlu0 %2141
  %v2143 = vrot.slane %v2130, 4
  %v2144 = vadd.f32 %v2130, %v2143
  %v2145 = vrot.slane %v2144, 2
  %v2146 = vadd.f32 %v2144, %v2145
  %v2147 = vrot.slane %v2146, 1
  %v2148 = vadd.f32 %v2146, %v2147
  %v2149 = vrot.slane %v2133, 4
  %v2150 = vadd.f32 %v2133, %v2149
  %v2151 = vrot.slane %v2150, 2
  %v2152 = vadd.f32 %v2150, %v2151
  %v2153 = vrot.slane %v2152, 1
  %v2154 = vadd.f32 %v2152, %v2153
  %v2155 = vrot.slane %v2136, 4
  %v2156 = vadd.f32 %v2136, %v2155
  %v2157 = vrot.slane %v2156, 2
  %v2158 = vadd.f32 %v2156, %v2157
  %v2159 = vrot.slane %v2158, 1
  %v2160 = vadd.f32 %v2158, %v2159
  %v2161 = vrot.slane %v2139, 4
  %v2162 = vadd.f32 %v2139, %v2161
  %v2163 = vrot.slane %v2162, 2
  %v2164 = vadd.f32 %v2162, %v2163
  %v2165 = vrot.slane %v2164, 1
  %v2166 = vadd.f32 %v2164, %v2165
  %v2167 = vrot.slane %v2142, 4
  %v2168 = vadd.f32 %v2142, %v2167
  %v2169 = vrot.slane %v2168, 2
  %v2170 = vadd.f32 %v2168, %v2169
  %v2171 = vrot.slane %v2170, 1
  %v2172 = vadd.f32 %v2170, %v2171
  %v2173 = vmul.f32 %v2078, 0.00390625
  %v2174 = vmul.f32 %v2084, 0.00390625
  %v2175 = vmul.f32 %v2090, 0.00390625
  %v2176 = vmul.f32 %v2096, 0.00390625
  %v2177 = vmul.f32 %v2102, 0.00390625
  %v2178 = vmul.f32 %v2148, 0.00390625
  %v2179 = vmul.f32 %v2154, 0.00390625
  %v2180 = vmul.f32 %v2160, 0.00390625
  %v2181 = vmul.f32 %v2166, 0.00390625
  %v2182 = vmul.f32 %v2172, 0.00390625
  %v2183 = vmul.f32 %v2173, %v2173
  %v2184 = vmul.f32 %v2174, %v2174
  %v2185 = vmul.f32 %v2175, %v2175
  %v2186 = vmul.f32 %v2176, %v2176
  %v2187 = vmul.f32 %v2177, %v2177
  %v2188 = vsub.f32 %v2178, %v2183
  %v2189 = vsub.f32 %v2179, %v2184
  %v2190 = vsub.f32 %v2180, %v2185
  %v2191 = vsub.f32 %v2181, %v2186
  %v2192 = vsub.f32 %v2182, %v2187
  %v2193 = vsub.f32 %v2033, %v2173
  %v2194 = vsub.f32 %v2034, %v2174
  %v2195 = vsub.f32 %v2035, %v2175
  %v2196 = vsub.f32 %v2036, %v2176
  %v2197 = vsub.f32 %v2037, %v2177
  %v2198 = vadd.f32 %v2188, 1e-05
  %v2199 = vadd.f32 %v2189, 1e-05
  %v2200 = vadd.f32 %v2190, 1e-05
  %v2201 = vadd.f32 %v2191, 1e-05
  %v2202 = vadd.f32 %v2192, 1e-05
  %v2203 = vrsqrt.pop %v2198
  %v2204 = vrsqrt.pop %v2199
  %v2205 = vrsqrt.pop %v2200
  %v2206 = vrsqrt.pop %v2201
  %v2207 = vrsqrt.pop %v2202
  %v2208 = vmul.f32 %v2193, %v2203
  %v2209 = vmul.f32 %v2194, %v2204
  %v2210 = vmul.f32 %v2195, %v2205
  %v2211 = vmul.f32 %v2196, %v2206
  %v2212 = vmul.f32 %v2197, %v2207
  %vm2213 = vcmp.ne.f32.partialorder %v2208, %v2208
  %vm2214 = vcmp.ne.f32.partialorder %v2209, %v2209
  %vm2215 = vcmp.ne.f32.partialorder %v2210, %v2210
  %vm2216 = vcmp.ne.f32.partialorder %v2211, %v2211
  %vm2217 = vcmp.ne.f32.partialorder %v2212, %v2212
  %v2218 = vsel %vm2213, 0.0, %v2208
  %v2219 = vsel %vm2214, 0.0, %v2209
  %v2220 = vsel %vm2215, 0.0, %v2210
  %v2221 = vsel %vm2216, 0.0, %v2211
  %v2222 = vsel %vm2217, 0.0, %v2212
  %v2228 = vrot.slane %v2218, 1
  %v2229 = vrot.slane %v2218, 2
  %v2230 = vrot.slane %v2218, 3
  %v2231 = vrot.slane %v2218, 4
  %v2232 = vrot.slane %v2218, 5
  %v2233 = vrot.slane %v2218, 6
  %v2234 = vrot.slane %v2218, 7
  %v2235 = vrot.slane %v2219, 1
  %v2236 = vrot.slane %v2219, 2
  %v2237 = vrot.slane %v2219, 3
  %v2238 = vrot.slane %v2219, 4
  %v2239 = vrot.slane %v2219, 5
  %v2240 = vrot.slane %v2219, 6
  %v2241 = vrot.slane %v2219, 7
  %v2242 = vrot.slane %v2220, 1
  %v2243 = vrot.slane %v2220, 2
  %v2244 = vrot.slane %v2220, 3
  %v2245 = vrot.slane %v2220, 4
  %v2246 = vrot.slane %v2220, 5
  %v2247 = vrot.slane %v2220, 6
  %v2248 = vrot.slane %v2220, 7
  %v2249 = vrot.slane %v2221, 1
  %v2250 = vrot.slane %v2221, 2
  %v2251 = vrot.slane %v2221, 3
  %v2252 = vrot.slane %v2221, 4
  %v2253 = vrot.slane %v2221, 5
  %v2254 = vrot.slane %v2221, 6
  %v2255 = vrot.slane %v2221, 7
  %v2256 = vrot.slane %v2222, 1
  %v2257 = vrot.slane %v2222, 2
  %v2258 = vrot.slane %v2222, 3
  %v2259 = vrot.slane %v2222, 4
  %v2260 = vrot.slane %v2222, 5
  %v2261 = vrot.slane %v2222, 6
  %v2262 = vrot.slane %v2222, 7
  %2263 = vrot.lane.b32.xlu0 %v2218, 64
  %v2264 = vpop.permute.xlu0 %2263
  %2265 = vrot.lane.b32.xlu0 %v2228, 64
  %v2266 = vpop.permute.xlu0 %2265
  %2267 = vrot.lane.b32.xlu0 %v2229, 64
  %v2268 = vpop.permute.xlu0 %2267
  %2269 = vrot.lane.b32.xlu0 %v2230, 64
  %v2270 = vpop.permute.xlu0 %2269
  %2271 = vrot.lane.b32.xlu0 %v2231, 64
  %v2272 = vpop.permute.xlu0 %2271
  %2273 = vrot.lane.b32.xlu0 %v2232, 64
  %v2274 = vpop.permute.xlu0 %2273
  %2275 = vrot.lane.b32.xlu0 %v2233, 64
  %v2276 = vpop.permute.xlu0 %2275
  %2277 = vrot.lane.b32.xlu0 %v2234, 64
  %v2278 = vpop.permute.xlu0 %2277
  %2279 = vrot.lane.b32.xlu0 %v2219, 64
  %v2280 = vpop.permute.xlu0 %2279
  %2281 = vrot.lane.b32.xlu0 %v2235, 64
  %v2282 = vpop.permute.xlu0 %2281
  %2283 = vrot.lane.b32.xlu0 %v2236, 64
  %v2284 = vpop.permute.xlu0 %2283
  %2285 = vrot.lane.b32.xlu0 %v2237, 64
  %v2286 = vpop.permute.xlu0 %2285
  %2287 = vrot.lane.b32.xlu0 %v2238, 64
  %v2288 = vpop.permute.xlu0 %2287
  %2289 = vrot.lane.b32.xlu0 %v2239, 64
  %v2290 = vpop.permute.xlu0 %2289
  %2291 = vrot.lane.b32.xlu0 %v2240, 64
  %v2292 = vpop.permute.xlu0 %2291
  %2293 = vrot.lane.b32.xlu0 %v2241, 64
  %v2294 = vpop.permute.xlu0 %2293
  %2295 = vrot.lane.b32.xlu0 %v2220, 64
  %v2296 = vpop.permute.xlu0 %2295
  %2297 = vrot.lane.b32.xlu0 %v2242, 64
  %v2298 = vpop.permute.xlu0 %2297
  %2299 = vrot.lane.b32.xlu0 %v2243, 64
  %v2300 = vpop.permute.xlu0 %2299
  %2301 = vrot.lane.b32.xlu0 %v2244, 64
  %v2302 = vpop.permute.xlu0 %2301
  %2303 = vrot.lane.b32.xlu0 %v2245, 64
  %v2304 = vpop.permute.xlu0 %2303
  %2305 = vrot.lane.b32.xlu0 %v2246, 64
  %v2306 = vpop.permute.xlu0 %2305
  %2307 = vrot.lane.b32.xlu0 %v2247, 64
  %v2308 = vpop.permute.xlu0 %2307
  %2309 = vrot.lane.b32.xlu0 %v2248, 64
  %v2310 = vpop.permute.xlu0 %2309
  %2311 = vrot.lane.b32.xlu0 %v2221, 64
  %v2312 = vpop.permute.xlu0 %2311
  %2313 = vrot.lane.b32.xlu0 %v2249, 64
  %v2314 = vpop.permute.xlu0 %2313
  %2315 = vrot.lane.b32.xlu0 %v2250, 64
  %v2316 = vpop.permute.xlu0 %2315
  %2317 = vrot.lane.b32.xlu0 %v2251, 64
  %v2318 = vpop.permute.xlu0 %2317
  %2319 = vrot.lane.b32.xlu0 %v2252, 64
  %v2320 = vpop.permute.xlu0 %2319
  %2321 = vrot.lane.b32.xlu0 %v2253, 64
  %v2322 = vpop.permute.xlu0 %2321
  %2323 = vrot.lane.b32.xlu0 %v2254, 64
  %v2324 = vpop.permute.xlu0 %2323
  %2325 = vrot.lane.b32.xlu0 %v2255, 64
  %v2326 = vpop.permute.xlu0 %2325
  %2327 = vrot.lane.b32.xlu0 %v2222, 64
  %v2328 = vpop.permute.xlu0 %2327
  %2329 = vrot.lane.b32.xlu0 %v2256, 64
  %v2330 = vpop.permute.xlu0 %2329
  %2331 = vrot.lane.b32.xlu0 %v2257, 64
  %v2332 = vpop.permute.xlu0 %2331
  %2333 = vrot.lane.b32.xlu0 %v2258, 64
  %v2334 = vpop.permute.xlu0 %2333
  %2335 = vrot.lane.b32.xlu0 %v2259, 64
  %v2336 = vpop.permute.xlu0 %2335
  %2337 = vrot.lane.b32.xlu0 %v2260, 64
  %v2338 = vpop.permute.xlu0 %2337
  %2339 = vrot.lane.b32.xlu0 %v2261, 64
  %v2340 = vpop.permute.xlu0 %2339
  %2341 = vrot.lane.b32.xlu0 %v2262, 64
  %v2342 = vpop.permute.xlu0 %2341
  %v2383 = vadd.f32 %v471, %v2264
  %v2384 = vadd.f32 %v472, %v2266
  %v2385 = vadd.f32 %v473, %v2268
  %v2386 = vadd.f32 %v474, %v2270
  %v2387 = vadd.f32 %v475, %v2272
  %v2388 = vadd.f32 %v476, %v2274
  %v2389 = vadd.f32 %v477, %v2276
  %v2390 = vadd.f32 %v478, %v2278
  %v2391 = vadd.f32 %v479, %v2280
  %v2392 = vadd.f32 %v480, %v2282
  %v2393 = vadd.f32 %v481, %v2284
  %v2394 = vadd.f32 %v482, %v2286
  %v2395 = vadd.f32 %v483, %v2288
  %v2396 = vadd.f32 %v484, %v2290
  %v2397 = vadd.f32 %v485, %v2292
  %v2398 = vadd.f32 %v486, %v2294
  %v2399 = vadd.f32 %v487, %v2296
  %v2400 = vadd.f32 %v488, %v2298
  %v2401 = vadd.f32 %v489, %v2300
  %v2402 = vadd.f32 %v490, %v2302
  %v2403 = vadd.f32 %v491, %v2304
  %v2404 = vadd.f32 %v492, %v2306
  %v2405 = vadd.f32 %v493, %v2308
  %v2406 = vadd.f32 %v494, %v2310
  %v2407 = vadd.f32 %v495, %v2312
  %v2408 = vadd.f32 %v496, %v2314
  %v2409 = vadd.f32 %v497, %v2316
  %v2410 = vadd.f32 %v498, %v2318
  %v2411 = vadd.f32 %v499, %v2320
  %v2412 = vadd.f32 %v500, %v2322
  %v2413 = vadd.f32 %v501, %v2324
  %v2414 = vadd.f32 %v502, %v2326
  %v2415 = vadd.f32 %v503, %v2328
  %v2416 = vadd.f32 %v504, %v2330
  %v2417 = vadd.f32 %v505, %v2332
  %v2418 = vadd.f32 %v506, %v2334
  %v2419 = vadd.f32 %v507, %v2336
  %v2420 = vadd.f32 %v508, %v2338
  %v2421 = vadd.f32 %v509, %v2340
  %v2422 = vadd.f32 %v510, %v2342
  %v2423 = vmax.f32 %v2383, 0.0
  %v2424 = vmax.f32 %v2384, 0.0
  %v2425 = vmax.f32 %v2385, 0.0
  %v2426 = vmax.f32 %v2386, 0.0
  %v2427 = vmax.f32 %v2387, 0.0
  %v2428 = vmax.f32 %v2388, 0.0
  %v2429 = vmax.f32 %v2389, 0.0
  %v2430 = vmax.f32 %v2390, 0.0
  %v2431 = vmax.f32 %v2391, 0.0
  %v2432 = vmax.f32 %v2392, 0.0
  %v2433 = vmax.f32 %v2393, 0.0
  %v2434 = vmax.f32 %v2394, 0.0
  %v2435 = vmax.f32 %v2395, 0.0
  %v2436 = vmax.f32 %v2396, 0.0
  %v2437 = vmax.f32 %v2397, 0.0
  %v2438 = vmax.f32 %v2398, 0.0
  %v2439 = vmax.f32 %v2399, 0.0
  %v2440 = vmax.f32 %v2400, 0.0
  %v2441 = vmax.f32 %v2401, 0.0
  %v2442 = vmax.f32 %v2402, 0.0
  %v2443 = vmax.f32 %v2403, 0.0
  %v2444 = vmax.f32 %v2404, 0.0
  %v2445 = vmax.f32 %v2405, 0.0
  %v2446 = vmax.f32 %v2406, 0.0
  %v2447 = vmax.f32 %v2407, 0.0
  %v2448 = vmax.f32 %v2408, 0.0
  %v2449 = vmax.f32 %v2409, 0.0
  %v2450 = vmax.f32 %v2410, 0.0
  %v2451 = vmax.f32 %v2411, 0.0
  %v2452 = vmax.f32 %v2412, 0.0
  %v2453 = vmax.f32 %v2413, 0.0
  %v2454 = vmax.f32 %v2414, 0.0
  %v2455 = vmax.f32 %v2415, 0.0
  %v2456 = vmax.f32 %v2416, 0.0
  %v2457 = vmax.f32 %v2417, 0.0
  %v2458 = vmax.f32 %v2418, 0.0
  %v2459 = vmax.f32 %v2419, 0.0
  %v2460 = vmax.f32 %v2420, 0.0
  %v2461 = vmax.f32 %v2421, 0.0
  %v2462 = vmax.f32 %v2422, 0.0
  %v2463 = vpack.c.bf16 %v2423, %v2423
  %v2464 = vpack.c.bf16 %v2424, %v2424
  %v2465 = vpack.c.bf16 %v2425, %v2425
  %v2466 = vpack.c.bf16 %v2426, %v2426
  %v2467 = vpack.c.bf16 %v2427, %v2427
  %v2468 = vpack.c.bf16 %v2428, %v2428
  %v2469 = vpack.c.bf16 %v2429, %v2429
  %v2470 = vpack.c.bf16 %v2430, %v2430
  %v2471 = vpack.c.bf16 %v2431, %v2431
  %v2472 = vpack.c.bf16 %v2432, %v2432
  %v2473 = vpack.c.bf16 %v2433, %v2433
  %v2474 = vpack.c.bf16 %v2434, %v2434
  %v2475 = vpack.c.bf16 %v2435, %v2435
  %v2476 = vpack.c.bf16 %v2436, %v2436
  %v2477 = vpack.c.bf16 %v2437, %v2437
  %v2478 = vpack.c.bf16 %v2438, %v2438
  %v2479 = vpack.c.bf16 %v2439, %v2439
  %v2480 = vpack.c.bf16 %v2440, %v2440
  %v2481 = vpack.c.bf16 %v2441, %v2441
  %v2482 = vpack.c.bf16 %v2442, %v2442
  %v2483 = vpack.c.bf16 %v2443, %v2443
  %v2484 = vpack.c.bf16 %v2444, %v2444
  %v2485 = vpack.c.bf16 %v2445, %v2445
  %v2486 = vpack.c.bf16 %v2446, %v2446
  %v2487 = vpack.c.bf16 %v2447, %v2447
  %v2488 = vpack.c.bf16 %v2448, %v2448
  %v2489 = vpack.c.bf16 %v2449, %v2449
  %v2490 = vpack.c.bf16 %v2450, %v2450
  %v2491 = vpack.c.bf16 %v2451, %v2451
  %v2492 = vpack.c.bf16 %v2452, %v2452
  %v2493 = vpack.c.bf16 %v2453, %v2453
  %v2494 = vpack.c.bf16 %v2454, %v2454
  %v2495 = vpack.c.bf16 %v2455, %v2455
  %v2496 = vpack.c.bf16 %v2456, %v2456
  %v2497 = vpack.c.bf16 %v2457, %v2457
  %v2498 = vpack.c.bf16 %v2458, %v2458
  %v2499 = vpack.c.bf16 %v2459, %v2459
  %v2500 = vpack.c.bf16 %v2460, %v2460
  %v2501 = vpack.c.bf16 %v2461, %v2461
  %v2502 = vpack.c.bf16 %v2462, %v2462
  %v2503 = vld [vmem:[%s2] sm:$0xff]
  %v2504 = vld [vmem:[%s2 + $0x8] sm:$0xff]
  %v2505 = vld [vmem:[%s2 + $0x10] sm:$0xff]
  %v2506 = vld [vmem:[%s2 + $0x18] sm:$0xff]
  %v2507 = vpack.c.bf16 %v2504, %v2503
  %v2508 = vpack.c.bf16 %v2506, %v2505
  %v2549 = vunpack.c.l.b16 %v2463
  %v2550 = vunpack.c.l.b16 %v2464
  %v2551 = vunpack.c.l.b16 %v2465
  %v2552 = vunpack.c.l.b16 %v2466
  %v2553 = vunpack.c.l.b16 %v2467
  %v2554 = vunpack.c.l.b16 %v2468
  %v2555 = vunpack.c.l.b16 %v2469
  %v2556 = vunpack.c.l.b16 %v2470
  %v2557 = vunpack.c.l.b16 %v2471
  %v2558 = vunpack.c.l.b16 %v2472
  %v2559 = vunpack.c.l.b16 %v2473
  %v2560 = vunpack.c.l.b16 %v2474
  %v2561 = vunpack.c.l.b16 %v2475
  %v2562 = vunpack.c.l.b16 %v2476
  %v2563 = vunpack.c.l.b16 %v2477
  %v2564 = vunpack.c.l.b16 %v2478
  %v2565 = vunpack.c.l.b16 %v2479
  %v2566 = vunpack.c.l.b16 %v2480
  %v2567 = vunpack.c.l.b16 %v2481
  %v2568 = vunpack.c.l.b16 %v2482
  %v2569 = vunpack.c.l.b16 %v2483
  %v2570 = vunpack.c.l.b16 %v2484
  %v2571 = vunpack.c.l.b16 %v2485
  %v2572 = vunpack.c.l.b16 %v2486
  %v2573 = vunpack.c.l.b16 %v2487
  %v2574 = vunpack.c.l.b16 %v2488
  %v2575 = vunpack.c.l.b16 %v2489
  %v2576 = vunpack.c.l.b16 %v2490
  %v2577 = vunpack.c.l.b16 %v2491
  %v2578 = vunpack.c.l.b16 %v2492
  %v2579 = vunpack.c.l.b16 %v2493
  %v2580 = vunpack.c.l.b16 %v2494
  %v2581 = vunpack.c.l.b16 %v2495
  %v2582 = vunpack.c.l.b16 %v2496
  %v2583 = vunpack.c.l.b16 %v2497
  %v2584 = vunpack.c.l.b16 %v2498
  %v2585 = vunpack.c.l.b16 %v2499
  %v2586 = vunpack.c.l.b16 %v2500
  %v2587 = vunpack.c.l.b16 %v2501
  %v2588 = vunpack.c.l.b16 %v2502
  %v2589 = vrot.slane %v2550, 7
  %v2590 = vsel %vm643, %v2589, %v2549
  %v2591 = vrot.slane %v2551, 6
  %v2592 = vsel %vm645, %v2591, %v2590
  %v2593 = vrot.slane %v2552, 5
  %v2594 = vsel %vm647, %v2593, %v2592
  %v2595 = vrot.slane %v2553, 4
  %v2596 = vsel %vm649, %v2595, %v2594
  %v2597 = vrot.slane %v2554, 3
  %v2598 = vsel %vm651, %v2597, %v2596
  %v2599 = vrot.slane %v2555, 2
  %v2600 = vsel %vm653, %v2599, %v2598
  %v2601 = vrot.slane %v2556, 1
  %v2602 = vsel %vm655, %v2601, %v2600
  %v2603 = vrot.slane %v2558, 7
  %v2604 = vsel %vm643, %v2603, %v2557
  %v2605 = vrot.slane %v2559, 6
  %v2606 = vsel %vm645, %v2605, %v2604
  %v2607 = vrot.slane %v2560, 5
  %v2608 = vsel %vm647, %v2607, %v2606
  %v2609 = vrot.slane %v2561, 4
  %v2610 = vsel %vm649, %v2609, %v2608
  %v2611 = vrot.slane %v2562, 3
  %v2612 = vsel %vm651, %v2611, %v2610
  %v2613 = vrot.slane %v2563, 2
  %v2614 = vsel %vm653, %v2613, %v2612
  %v2615 = vrot.slane %v2564, 1
  %v2616 = vsel %vm655, %v2615, %v2614
  %v2617 = vrot.slane %v2566, 7
  %v2618 = vsel %vm643, %v2617, %v2565
  %v2619 = vrot.slane %v2567, 6
  %v2620 = vsel %vm645, %v2619, %v2618
  %v2621 = vrot.slane %v2568, 5
  %v2622 = vsel %vm647, %v2621, %v2620
  %v2623 = vrot.slane %v2569, 4
  %v2624 = vsel %vm649, %v2623, %v2622
  %v2625 = vrot.slane %v2570, 3
  %v2626 = vsel %vm651, %v2625, %v2624
  %v2627 = vrot.slane %v2571, 2
  %v2628 = vsel %vm653, %v2627, %v2626
  %v2629 = vrot.slane %v2572, 1
  %v2630 = vsel %vm655, %v2629, %v2628
  %v2631 = vrot.slane %v2574, 7
  %v2632 = vsel %vm643, %v2631, %v2573
  %v2633 = vrot.slane %v2575, 6
  %v2634 = vsel %vm645, %v2633, %v2632
  %v2635 = vrot.slane %v2576, 5
  %v2636 = vsel %vm647, %v2635, %v2634
  %v2637 = vrot.slane %v2577, 4
  %v2638 = vsel %vm649, %v2637, %v2636
  %v2639 = vrot.slane %v2578, 3
  %v2640 = vsel %vm651, %v2639, %v2638
  %v2641 = vrot.slane %v2579, 2
  %v2642 = vsel %vm653, %v2641, %v2640
  %v2643 = vrot.slane %v2580, 1
  %v2644 = vsel %vm655, %v2643, %v2642
  %v2645 = vrot.slane %v2582, 7
  %v2646 = vsel %vm643, %v2645, %v2581
  %v2647 = vrot.slane %v2583, 6
  %v2648 = vsel %vm645, %v2647, %v2646
  %v2649 = vrot.slane %v2584, 5
  %v2650 = vsel %vm647, %v2649, %v2648
  %v2651 = vrot.slane %v2585, 4
  %v2652 = vsel %vm649, %v2651, %v2650
  %v2653 = vrot.slane %v2586, 3
  %v2654 = vsel %vm651, %v2653, %v2652
  %v2655 = vrot.slane %v2587, 2
  %v2656 = vsel %vm653, %v2655, %v2654
  %v2657 = vrot.slane %v2588, 1
  %v2658 = vsel %vm655, %v2657, %v2656
  %v2659 = vpack.c.b16 %v2616, %v2602
  %v2660 = vpack.c.b16 %v2644, %v2630
  %v2661 = vpack.c.b16 %v2658, %v2658
  %v2663 = vsel %vm110, %v2659, 0
  %v2666 = vsel %vm110, %v2660, 0
  %v2669 = vsel %vm110, %v2661, 0
  %2671 = vmatprep.subr.bf16.mxu0 0
  %2672 = vmatpush1.bf16.msra.mxu0 0
  %2673 = vmatprep.subr.bf16.mxu0 0
  %2674 = vmatpush1.bf16.msra.mxu0 0
  %2675 = vmatprep.subr.bf16.mxu0 0
  %2676 = vmatpush1.bf16.msra.mxu0 0
  %2677 = vmatprep.subr.bf16.mxu0 0
  %2678 = vmatpush1.bf16.msra.mxu0 0
  %2679 = vmatprep.subr.bf16.mxu0 0
  %2680 = vmatpush1.bf16.msra.mxu0 0
  %2681 = vmatprep.subr.bf16.mxu0 0
  %2682 = vmatpush1.bf16.msra.mxu0 0
  %2683 = vmatprep.subr.bf16.mxu0 0
  %2684 = vmatpush1.bf16.msra.mxu0 %v2508
  %2685 = vmatprep.subr.bf16.mxu0 0
  %2686 = vmatpush1.bf16.msra.mxu0 %v2507
  %2687 = vmatprep.subr.bf16.mxu0 0
  %2688 = vmatpush2.bf16.msra.mxu0 0
  %2689 = vmatprep.subr.bf16.mxu0 0
  %2690 = vmatpush2.bf16.msra.mxu0 0
  %2691 = vmatprep.subr.bf16.mxu0 0
  %2692 = vmatpush2.bf16.msra.mxu0 0
  %2693 = vmatprep.subr.bf16.mxu0 0
  %2694 = vmatpush2.bf16.msra.mxu0 0
  %2695 = vmatprep.subr.bf16.mxu0 0
  %2696 = vmatpush2.bf16.msra.mxu0 0
  %2697 = vmatprep.subr.bf16.mxu0 0
  %2698 = vmatpush2.bf16.msra.mxu0 0
  %2699 = vmatprep.subr.bf16.mxu0 0
  %2700 = vmatpush2.bf16.msra.mxu0 0
  %2701 = vmatprep.subr.bf16.mxu0 0
  %2702 = vmatpush2.bf16.msra.mxu0 0
  %2703 = vmatprep.mubr.bf16.mxu0 0
  %2704 = vmatmul.mubr.bf16.gmra.mxu0 %v2663
  %v2705 = vpop.f32.mrf.mxu0
  %v2706 = vadd.f32 0.0, %v2705
  %v2707 = vpop.f32.mrf.mxu0
  %v2708 = vpop.f32.mrf.mxu0
  %v2709 = vadd.f32 0.0, %v2708
  %v2710 = vpop.f32.mrf.mxu0
  %2711 = vmatprep.mubr.bf16.mxu0 0
  %2712 = vmatmul.mubr.bf16.gmra.mxu0 %v2666
  %v2713 = vpop.f32.mrf.mxu0
  %v2714 = vadd.f32 0.0, %v2713
  %v2715 = vpop.f32.mrf.mxu0
  %v2716 = vpop.f32.mrf.mxu0
  %v2717 = vadd.f32 0.0, %v2716
  %v2718 = vpop.f32.mrf.mxu0
  %2719 = vmatprep.mubr.bf16.mxu0 0
  %2720 = vmatmul.mubr.bf16.gmra.mxu0 %v2669
  %v2721 = vpop.f32.mrf.mxu0
  %v2722 = vadd.f32 0.0, %v2721
  %v2723 = vpop.f32.mrf.mxu0
  %v2724 = vpop.f32.mrf.mxu0
  %v2725 = vpop.f32.mrf.mxu0
  %2726 = vdwg.mxu0
  %v2727 = vpack.c.bf16 %v1669, %v1668
  %v2728 = vpack.c.bf16 %v1671, %v1670
  %v2729 = vpack.c.bf16 %v1673, %v1672
  %v2730 = vpack.c.bf16 %v1675, %v1674
  %v2731 = vpack.c.bf16 %v1677, %v1676
  %v2732 = vpack.c.bf16 %v1679, %v1678
  %v2733 = vpack.c.bf16 %v1681, %v1680
  %v2734 = vpack.c.bf16 %v1683, %v1682
  %v2735 = vpack.c.bf16 %v1685, %v1684
  %v2736 = vpack.c.bf16 %v1687, %v1686
  %v2737 = vpack.c.bf16 %v1689, %v1688
  %v2738 = vpack.c.bf16 %v1691, %v1690
  %v2739 = vpack.c.bf16 %v1692, %v1692
  %v2740 = vld [vmem:[%s3] sm:$0xff]
  %v2741 = vld [vmem:[%s3 + $0x8] sm:$0xff]
  %v2742 = vld [vmem:[%s3 + $0x10] sm:$0xff]
  %v2743 = vld [vmem:[%s3 + $0x18] sm:$0xff]
  %v2744 = vpack.c.bf16 %v2741, %v2740
  %v2745 = vpack.c.bf16 %v2743, %v2742
  %v2747 = vsel %vm110, %v2727, 0
  %v2750 = vsel %vm110, %v2728, 0
  %v2753 = vsel %vm110, %v2729, 0
  %v2756 = vsel %vm110, %v2730, 0
  %v2759 = vsel %vm110, %v2731, 0
  %v2762 = vsel %vm110, %v2732, 0
  %v2765 = vsel %vm110, %v2733, 0
  %v2768 = vsel %vm110, %v2734, 0
  %v2771 = vsel %vm110, %v2735, 0
  %v2774 = vsel %vm110, %v2736, 0
  %v2777 = vsel %vm110, %v2737, 0
  %v2780 = vsel %vm110, %v2738, 0
  %v2783 = vsel %vm110, %v2739, 0
  %2785 = vmatprep.subr.bf16.mxu0 0
  %2786 = vmatpush1.bf16.msra.mxu0 0
  %2787 = vmatprep.subr.bf16.mxu0 0
  %2788 = vmatpush1.bf16.msra.mxu0 0
  %2789 = vmatprep.subr.bf16.mxu0 0
  %2790 = vmatpush1.bf16.msra.mxu0 0
  %2791 = vmatprep.subr.bf16.mxu0 0
  %2792 = vmatpush1.bf16.msra.mxu0 0
  %2793 = vmatprep.subr.bf16.mxu0 0
  %2794 = vmatpush1.bf16.msra.mxu0 0
  %2795 = vmatprep.subr.bf16.mxu0 0
  %2796 = vmatpush1.bf16.msra.mxu0 0
  %2797 = vmatprep.subr.bf16.mxu0 0
  %2798 = vmatpush1.bf16.msra.mxu0 %v2745
  %2799 = vmatprep.subr.bf16.mxu0 0
  %2800 = vmatpush1.bf16.msra.mxu0 %v2744
  %2801 = vmatprep.subr.bf16.mxu0 0
  %2802 = vmatpush2.bf16.msra.mxu0 0
  %2803 = vmatprep.subr.bf16.mxu0 0
  %2804 = vmatpush2.bf16.msra.mxu0 0
  %2805 = vmatprep.subr.bf16.mxu0 0
  %2806 = vmatpush2.bf16.msra.mxu0 0
  %2807 = vmatprep.subr.bf16.mxu0 0
  %2808 = vmatpush2.bf16.msra.mxu0 0
  %2809 = vmatprep.subr.bf16.mxu0 0
  %2810 = vmatpush2.bf16.msra.mxu0 0
  %2811 = vmatprep.subr.bf16.mxu0 0
  %2812 = vmatpush2.bf16.msra.mxu0 0
  %2813 = vmatprep.subr.bf16.mxu0 0
  %2814 = vmatpush2.bf16.msra.mxu0 0
  %2815 = vmatprep.subr.bf16.mxu0 0
  %2816 = vmatpush2.bf16.msra.mxu0 0
  %2817 = vmatprep.mubr.bf16.mxu0 0
  %2818 = vmatmul.mubr.bf16.gmra.mxu0 %v2747
  %v2819 = vpop.f32.mrf.mxu0
  %v2820 = vadd.f32 0.0, %v2819
  %v2821 = vpop.f32.mrf.mxu0
  %v2822 = vpop.f32.mrf.mxu0
  %v2823 = vadd.f32 0.0, %v2822
  %v2824 = vpop.f32.mrf.mxu0
  %2825 = vmatprep.mubr.bf16.mxu0 0
  %2826 = vmatmul.mubr.bf16.gmra.mxu0 %v2750
  %v2827 = vpop.f32.mrf.mxu0
  %v2828 = vadd.f32 0.0, %v2827
  %v2829 = vpop.f32.mrf.mxu0
  %v2830 = vpop.f32.mrf.mxu0
  %v2831 = vadd.f32 0.0, %v2830
  %v2832 = vpop.f32.mrf.mxu0
  %2833 = vmatprep.mubr.bf16.mxu0 0
  %2834 = vmatmul.mubr.bf16.gmra.mxu0 %v2753
  %v2835 = vpop.f32.mrf.mxu0
  %v2836 = vadd.f32 0.0, %v2835
  %v2837 = vpop.f32.mrf.mxu0
  %v2838 = vpop.f32.mrf.mxu0
  %v2839 = vadd.f32 0.0, %v2838
  %v2840 = vpop.f32.mrf.mxu0
  %2841 = vmatprep.mubr.bf16.mxu0 0
  %2842 = vmatmul.mubr.bf16.gmra.mxu0 %v2756
  %v2843 = vpop.f32.mrf.mxu0
  %v2844 = vadd.f32 0.0, %v2843
  %v2845 = vpop.f32.mrf.mxu0
  %v2846 = vpop.f32.mrf.mxu0
  %v2847 = vadd.f32 0.0, %v2846
  %v2848 = vpop.f32.mrf.mxu0
  %2849 = vmatprep.mubr.bf16.mxu0 0
  %2850 = vmatmul.mubr.bf16.gmra.mxu0 %v2759
  %v2851 = vpop.f32.mrf.mxu0
  %v2852 = vadd.f32 0.0, %v2851
  %v2853 = vpop.f32.mrf.mxu0
  %v2854 = vpop.f32.mrf.mxu0
  %v2855 = vadd.f32 0.0, %v2854
  %v2856 = vpop.f32.mrf.mxu0
  %2857 = vmatprep.mubr.bf16.mxu0 0
  %2858 = vmatmul.mubr.bf16.gmra.mxu0 %v2762
  %v2859 = vpop.f32.mrf.mxu0
  %v2860 = vadd.f32 0.0, %v2859
  %v2861 = vpop.f32.mrf.mxu0
  %v2862 = vpop.f32.mrf.mxu0
  %v2863 = vadd.f32 0.0, %v2862
  %v2864 = vpop.f32.mrf.mxu0
  %2865 = vmatprep.mubr.bf16.mxu0 0
  %2866 = vmatmul.mubr.bf16.gmra.mxu0 %v2765
  %v2867 = vpop.f32.mrf.mxu0
  %v2868 = vadd.f32 0.0, %v2867
  %v2869 = vpop.f32.mrf.mxu0
  %v2870 = vpop.f32.mrf.mxu0
  %v2871 = vadd.f32 0.0, %v2870
  %v2872 = vpop.f32.mrf.mxu0
  %2873 = vmatprep.mubr.bf16.mxu0 0
  %2874 = vmatmul.mubr.bf16.gmra.mxu0 %v2768
  %v2875 = vpop.f32.mrf.mxu0
  %v2876 = vadd.f32 0.0, %v2875
  %v2877 = vpop.f32.mrf.mxu0
  %v2878 = vpop.f32.mrf.mxu0
  %v2879 = vadd.f32 0.0, %v2878
  %v2880 = vpop.f32.mrf.mxu0
  %2881 = vmatprep.mubr.bf16.mxu0 0
  %2882 = vmatmul.mubr.bf16.gmra.mxu0 %v2771
  %v2883 = vpop.f32.mrf.mxu0
  %v2884 = vadd.f32 0.0, %v2883
  %v2885 = vpop.f32.mrf.mxu0
  %v2886 = vpop.f32.mrf.mxu0
  %v2887 = vadd.f32 0.0, %v2886
  %v2888 = vpop.f32.mrf.mxu0
  %2889 = vmatprep.mubr.bf16.mxu0 0
  %2890 = vmatmul.mubr.bf16.gmra.mxu0 %v2774
  %v2891 = vpop.f32.mrf.mxu0
  %v2892 = vadd.f32 0.0, %v2891
  %v2893 = vpop.f32.mrf.mxu0
  %v2894 = vpop.f32.mrf.mxu0
  %v2895 = vadd.f32 0.0, %v2894
  %v2896 = vpop.f32.mrf.mxu0
  %2897 = vmatprep.mubr.bf16.mxu0 0
  %2898 = vmatmul.mubr.bf16.gmra.mxu0 %v2777
  %v2899 = vpop.f32.mrf.mxu0
  %v2900 = vadd.f32 0.0, %v2899
  %v2901 = vpop.f32.mrf.mxu0
  %v2902 = vpop.f32.mrf.mxu0
  %v2903 = vadd.f32 0.0, %v2902
  %v2904 = vpop.f32.mrf.mxu0
  %2905 = vmatprep.mubr.bf16.mxu0 0
  %2906 = vmatmul.mubr.bf16.gmra.mxu0 %v2780
  %v2907 = vpop.f32.mrf.mxu0
  %v2908 = vadd.f32 0.0, %v2907
  %v2909 = vpop.f32.mrf.mxu0
  %v2910 = vpop.f32.mrf.mxu0
  %v2911 = vadd.f32 0.0, %v2910
  %v2912 = vpop.f32.mrf.mxu0
  %2913 = vmatprep.mubr.bf16.mxu0 0
  %2914 = vmatmul.mubr.bf16.gmra.mxu0 %v2783
  %v2915 = vpop.f32.mrf.mxu0
  %v2916 = vadd.f32 0.0, %v2915
  %v2917 = vpop.f32.mrf.mxu0
  %v2918 = vpop.f32.mrf.mxu0
  %v2919 = vpop.f32.mrf.mxu0
  %2920 = vdwg.mxu0
  %2926 = vrot.lane.b32.xlu0 %v2706, 96
  %v2927 = vpop.permute.xlu0 %2926
  %2928 = vrot.lane.b32.xlu0 %v2709, 96
  %v2929 = vpop.permute.xlu0 %2928
  %2930 = vrot.lane.b32.xlu0 %v2714, 96
  %v2931 = vpop.permute.xlu0 %2930
  %2932 = vrot.lane.b32.xlu0 %v2717, 96
  %v2933 = vpop.permute.xlu0 %2932
  %2934 = vrot.lane.b32.xlu0 %v2722, 96
  %v2935 = vpop.permute.xlu0 %2934
  %v2941 = vadd.f32 %v2706, %v2927
  %v2942 = vadd.f32 %v2706, %v2929
  %v2943 = vadd.f32 %v2706, %v2931
  %v2944 = vadd.f32 %v2706, %v2933
  %v2945 = vadd.f32 %v2706, %v2935
  %v2946 = vadd.f32 %v2709, %v2927
  %v2947 = vadd.f32 %v2709, %v2929
  %v2948 = vadd.f32 %v2709, %v2931
  %v2949 = vadd.f32 %v2709, %v2933
  %v2950 = vadd.f32 %v2709, %v2935
  %v2951 = vadd.f32 %v2714, %v2927
  %v2952 = vadd.f32 %v2714, %v2929
  %v2953 = vadd.f32 %v2714, %v2931
  %v2954 = vadd.f32 %v2714, %v2933
  %v2955 = vadd.f32 %v2714, %v2935
  %v2956 = vadd.f32 %v2717, %v2927
  %v2957 = vadd.f32 %v2717, %v2929
  %v2958 = vadd.f32 %v2717, %v2931
  %v2959 = vadd.f32 %v2717, %v2933
  %v2960 = vadd.f32 %v2717, %v2935
  %v2961 = vadd.f32 %v2722, %v2927
  %v2962 = vadd.f32 %v2722, %v2929
  %v2963 = vadd.f32 %v2722, %v2931
  %v2964 = vadd.f32 %v2722, %v2933
  %v2965 = vadd.f32 %v2722, %v2935
  %v2966 = vadd.f32 %v2941, %v2820
  %v2967 = vadd.f32 %v2942, %v2823
  %v2968 = vadd.f32 %v2943, %v2828
  %v2969 = vadd.f32 %v2944, %v2831
  %v2970 = vadd.f32 %v2945, %v2836
  %v2971 = vadd.f32 %v2946, %v2839
  %v2972 = vadd.f32 %v2947, %v2844
  %v2973 = vadd.f32 %v2948, %v2847
  %v2974 = vadd.f32 %v2949, %v2852
  %v2975 = vadd.f32 %v2950, %v2855
  %v2976 = vadd.f32 %v2951, %v2860
  %v2977 = vadd.f32 %v2952, %v2863
  %v2978 = vadd.f32 %v2953, %v2868
  %v2979 = vadd.f32 %v2954, %v2871
  %v2980 = vadd.f32 %v2955, %v2876
  %v2981 = vadd.f32 %v2956, %v2879
  %v2982 = vadd.f32 %v2957, %v2884
  %v2983 = vadd.f32 %v2958, %v2887
  %v2984 = vadd.f32 %v2959, %v2892
  %v2985 = vadd.f32 %v2960, %v2895
  %v2986 = vadd.f32 %v2961, %v2900
  %v2987 = vadd.f32 %v2962, %v2903
  %v2988 = vadd.f32 %v2963, %v2908
  %v2989 = vadd.f32 %v2964, %v2911
  %v2990 = vadd.f32 %v2965, %v2916
  %v2991 = vsel %vm110, %v2966, 0.0
  %2992 = vadd.xlane.f32.xlu0 %v2991
  %v2993 = vpop.xlane.xlu0 %2992
  %v2994 = vsel %vm110, %v2967, 0.0
  %2995 = vadd.xlane.f32.xlu0 %v2994
  %v2996 = vpop.xlane.xlu0 %2995
  %v2997 = vsel %vm110, %v2968, 0.0
  %2998 = vadd.xlane.f32.xlu0 %v2997
  %v2999 = vpop.xlane.xlu0 %2998
  %v3000 = vsel %vm110, %v2969, 0.0
  %3001 = vadd.xlane.f32.xlu0 %v3000
  %v3002 = vpop.xlane.xlu0 %3001
  %v3003 = vsel %vm110, %v2970, 0.0
  %3004 = vadd.xlane.f32.xlu0 %v3003
  %v3005 = vpop.xlane.xlu0 %3004
  %v3006 = vsel %vm110, %v2971, 0.0
  %3007 = vadd.xlane.f32.xlu0 %v3006
  %v3008 = vpop.xlane.xlu0 %3007
  %v3009 = vsel %vm110, %v2972, 0.0
  %3010 = vadd.xlane.f32.xlu0 %v3009
  %v3011 = vpop.xlane.xlu0 %3010
  %v3012 = vsel %vm110, %v2973, 0.0
  %3013 = vadd.xlane.f32.xlu0 %v3012
  %v3014 = vpop.xlane.xlu0 %3013
  %v3015 = vsel %vm110, %v2974, 0.0
  %3016 = vadd.xlane.f32.xlu0 %v3015
  %v3017 = vpop.xlane.xlu0 %3016
  %v3018 = vsel %vm110, %v2975, 0.0
  %3019 = vadd.xlane.f32.xlu0 %v3018
  %v3020 = vpop.xlane.xlu0 %3019
  %v3021 = vsel %vm110, %v2976, 0.0
  %3022 = vadd.xlane.f32.xlu0 %v3021
  %v3023 = vpop.xlane.xlu0 %3022
  %v3024 = vsel %vm110, %v2977, 0.0
  %3025 = vadd.xlane.f32.xlu0 %v3024
  %v3026 = vpop.xlane.xlu0 %3025
  %v3027 = vsel %vm110, %v2978, 0.0
  %3028 = vadd.xlane.f32.xlu0 %v3027
  %v3029 = vpop.xlane.xlu0 %3028
  %v3030 = vsel %vm110, %v2979, 0.0
  %3031 = vadd.xlane.f32.xlu0 %v3030
  %v3032 = vpop.xlane.xlu0 %3031
  %v3033 = vsel %vm110, %v2980, 0.0
  %3034 = vadd.xlane.f32.xlu0 %v3033
  %v3035 = vpop.xlane.xlu0 %3034
  %v3036 = vsel %vm110, %v2981, 0.0
  %3037 = vadd.xlane.f32.xlu0 %v3036
  %v3038 = vpop.xlane.xlu0 %3037
  %v3039 = vsel %vm110, %v2982, 0.0
  %3040 = vadd.xlane.f32.xlu0 %v3039
  %v3041 = vpop.xlane.xlu0 %3040
  %v3042 = vsel %vm110, %v2983, 0.0
  %3043 = vadd.xlane.f32.xlu0 %v3042
  %v3044 = vpop.xlane.xlu0 %3043
  %v3045 = vsel %vm110, %v2984, 0.0
  %3046 = vadd.xlane.f32.xlu0 %v3045
  %v3047 = vpop.xlane.xlu0 %3046
  %v3048 = vsel %vm110, %v2985, 0.0
  %3049 = vadd.xlane.f32.xlu0 %v3048
  %v3050 = vpop.xlane.xlu0 %3049
  %v3051 = vsel %vm110, %v2986, 0.0
  %3052 = vadd.xlane.f32.xlu0 %v3051
  %v3053 = vpop.xlane.xlu0 %3052
  %v3054 = vsel %vm110, %v2987, 0.0
  %3055 = vadd.xlane.f32.xlu0 %v3054
  %v3056 = vpop.xlane.xlu0 %3055
  %v3057 = vsel %vm110, %v2988, 0.0
  %3058 = vadd.xlane.f32.xlu0 %v3057
  %v3059 = vpop.xlane.xlu0 %3058
  %v3060 = vsel %vm110, %v2989, 0.0
  %3061 = vadd.xlane.f32.xlu0 %v3060
  %v3062 = vpop.xlane.xlu0 %3061
  %v3063 = vsel %vm110, %v2990, 0.0
  %3064 = vadd.xlane.f32.xlu0 %v3063
  %v3065 = vpop.xlane.xlu0 %3064
  %v3066 = vrot.slane %v2993, 4
  %v3067 = vadd.f32 %v2993, %v3066
  %v3068 = vrot.slane %v3067, 2
  %v3069 = vadd.f32 %v3067, %v3068
  %v3070 = vrot.slane %v3069, 1
  %v3071 = vadd.f32 %v3069, %v3070
  %v3072 = vrot.slane %v2996, 4
  %v3073 = vadd.f32 %v2996, %v3072
  %v3074 = vrot.slane %v3073, 2
  %v3075 = vadd.f32 %v3073, %v3074
  %v3076 = vrot.slane %v3075, 1
  %v3077 = vadd.f32 %v3075, %v3076
  %v3078 = vrot.slane %v2999, 4
  %v3079 = vadd.f32 %v2999, %v3078
  %v3080 = vrot.slane %v3079, 2
  %v3081 = vadd.f32 %v3079, %v3080
  %v3082 = vrot.slane %v3081, 1
  %v3083 = vadd.f32 %v3081, %v3082
  %v3084 = vrot.slane %v3002, 4
  %v3085 = vadd.f32 %v3002, %v3084
  %v3086 = vrot.slane %v3085, 2
  %v3087 = vadd.f32 %v3085, %v3086
  %v3088 = vrot.slane %v3087, 1
  %v3089 = vadd.f32 %v3087, %v3088
  %v3090 = vrot.slane %v3005, 4
  %v3091 = vadd.f32 %v3005, %v3090
  %v3092 = vrot.slane %v3091, 2
  %v3093 = vadd.f32 %v3091, %v3092
  %v3094 = vrot.slane %v3093, 1
  %v3095 = vadd.f32 %v3093, %v3094
  %v3096 = vrot.slane %v3008, 4
  %v3097 = vadd.f32 %v3008, %v3096
  %v3098 = vrot.slane %v3097, 2
  %v3099 = vadd.f32 %v3097, %v3098
  %v3100 = vrot.slane %v3099, 1
  %v3101 = vadd.f32 %v3099, %v3100
  %v3102 = vrot.slane %v3011, 4
  %v3103 = vadd.f32 %v3011, %v3102
  %v3104 = vrot.slane %v3103, 2
  %v3105 = vadd.f32 %v3103, %v3104
  %v3106 = vrot.slane %v3105, 1
  %v3107 = vadd.f32 %v3105, %v3106
  %v3108 = vrot.slane %v3014, 4
  %v3109 = vadd.f32 %v3014, %v3108
  %v3110 = vrot.slane %v3109, 2
  %v3111 = vadd.f32 %v3109, %v3110
  %v3112 = vrot.slane %v3111, 1
  %v3113 = vadd.f32 %v3111, %v3112
  %v3114 = vrot.slane %v3017, 4
  %v3115 = vadd.f32 %v3017, %v3114
  %v3116 = vrot.slane %v3115, 2
  %v3117 = vadd.f32 %v3115, %v3116
  %v3118 = vrot.slane %v3117, 1
  %v3119 = vadd.f32 %v3117, %v3118
  %v3120 = vrot.slane %v3020, 4
  %v3121 = vadd.f32 %v3020, %v3120
  %v3122 = vrot.slane %v3121, 2
  %v3123 = vadd.f32 %v3121, %v3122
  %v3124 = vrot.slane %v3123, 1
  %v3125 = vadd.f32 %v3123, %v3124
  %v3126 = vrot.slane %v3023, 4
  %v3127 = vadd.f32 %v3023, %v3126
  %v3128 = vrot.slane %v3127, 2
  %v3129 = vadd.f32 %v3127, %v3128
  %v3130 = vrot.slane %v3129, 1
  %v3131 = vadd.f32 %v3129, %v3130
  %v3132 = vrot.slane %v3026, 4
  %v3133 = vadd.f32 %v3026, %v3132
  %v3134 = vrot.slane %v3133, 2
  %v3135 = vadd.f32 %v3133, %v3134
  %v3136 = vrot.slane %v3135, 1
  %v3137 = vadd.f32 %v3135, %v3136
  %v3138 = vrot.slane %v3029, 4
  %v3139 = vadd.f32 %v3029, %v3138
  %v3140 = vrot.slane %v3139, 2
  %v3141 = vadd.f32 %v3139, %v3140
  %v3142 = vrot.slane %v3141, 1
  %v3143 = vadd.f32 %v3141, %v3142
  %v3144 = vrot.slane %v3032, 4
  %v3145 = vadd.f32 %v3032, %v3144
  %v3146 = vrot.slane %v3145, 2
  %v3147 = vadd.f32 %v3145, %v3146
  %v3148 = vrot.slane %v3147, 1
  %v3149 = vadd.f32 %v3147, %v3148
  %v3150 = vrot.slane %v3035, 4
  %v3151 = vadd.f32 %v3035, %v3150
  %v3152 = vrot.slane %v3151, 2
  %v3153 = vadd.f32 %v3151, %v3152
  %v3154 = vrot.slane %v3153, 1
  %v3155 = vadd.f32 %v3153, %v3154
  %v3156 = vrot.slane %v3038, 4
  %v3157 = vadd.f32 %v3038, %v3156
  %v3158 = vrot.slane %v3157, 2
  %v3159 = vadd.f32 %v3157, %v3158
  %v3160 = vrot.slane %v3159, 1
  %v3161 = vadd.f32 %v3159, %v3160
  %v3162 = vrot.slane %v3041, 4
  %v3163 = vadd.f32 %v3041, %v3162
  %v3164 = vrot.slane %v3163, 2
  %v3165 = vadd.f32 %v3163, %v3164
  %v3166 = vrot.slane %v3165, 1
  %v3167 = vadd.f32 %v3165, %v3166
  %v3168 = vrot.slane %v3044, 4
  %v3169 = vadd.f32 %v3044, %v3168
  %v3170 = vrot.slane %v3169, 2
  %v3171 = vadd.f32 %v3169, %v3170
  %v3172 = vrot.slane %v3171, 1
  %v3173 = vadd.f32 %v3171, %v3172
  %v3174 = vrot.slane %v3047, 4
  %v3175 = vadd.f32 %v3047, %v3174
  %v3176 = vrot.slane %v3175, 2
  %v3177 = vadd.f32 %v3175, %v3176
  %v3178 = vrot.slane %v3177, 1
  %v3179 = vadd.f32 %v3177, %v3178
  %v3180 = vrot.slane %v3050, 4
  %v3181 = vadd.f32 %v3050, %v3180
  %v3182 = vrot.slane %v3181, 2
  %v3183 = vadd.f32 %v3181, %v3182
  %v3184 = vrot.slane %v3183, 1
  %v3185 = vadd.f32 %v3183, %v3184
  %v3186 = vrot.slane %v3053, 4
  %v3187 = vadd.f32 %v3053, %v3186
  %v3188 = vrot.slane %v3187, 2
  %v3189 = vadd.f32 %v3187, %v3188
  %v3190 = vrot.slane %v3189, 1
  %v3191 = vadd.f32 %v3189, %v3190
  %v3192 = vrot.slane %v3056, 4
  %v3193 = vadd.f32 %v3056, %v3192
  %v3194 = vrot.slane %v3193, 2
  %v3195 = vadd.f32 %v3193, %v3194
  %v3196 = vrot.slane %v3195, 1
  %v3197 = vadd.f32 %v3195, %v3196
  %v3198 = vrot.slane %v3059, 4
  %v3199 = vadd.f32 %v3059, %v3198
  %v3200 = vrot.slane %v3199, 2
  %v3201 = vadd.f32 %v3199, %v3200
  %v3202 = vrot.slane %v3201, 1
  %v3203 = vadd.f32 %v3201, %v3202
  %v3204 = vrot.slane %v3062, 4
  %v3205 = vadd.f32 %v3062, %v3204
  %v3206 = vrot.slane %v3205, 2
  %v3207 = vadd.f32 %v3205, %v3206
  %v3208 = vrot.slane %v3207, 1
  %v3209 = vadd.f32 %v3207, %v3208
  %v3210 = vrot.slane %v3065, 4
  %v3211 = vadd.f32 %v3065, %v3210
  %v3212 = vrot.slane %v3211, 2
  %v3213 = vadd.f32 %v3211, %v3212
  %v3214 = vrot.slane %v3213, 1
  %v3215 = vadd.f32 %v3213, %v3214
  %v3216 = vmul.f32 %v2966, %v2966
  %v3217 = vmul.f32 %v2967, %v2967
  %v3218 = vmul.f32 %v2968, %v2968
  %v3219 = vmul.f32 %v2969, %v2969
  %v3220 = vmul.f32 %v2970, %v2970
  %v3221 = vmul.f32 %v2971, %v2971
  %v3222 = vmul.f32 %v2972, %v2972
  %v3223 = vmul.f32 %v2973, %v2973
  %v3224 = vmul.f32 %v2974, %v2974
  %v3225 = vmul.f32 %v2975, %v2975
  %v3226 = vmul.f32 %v2976, %v2976
  %v3227 = vmul.f32 %v2977, %v2977
  %v3228 = vmul.f32 %v2978, %v2978
  %v3229 = vmul.f32 %v2979, %v2979
  %v3230 = vmul.f32 %v2980, %v2980
  %v3231 = vmul.f32 %v2981, %v2981
  %v3232 = vmul.f32 %v2982, %v2982
  %v3233 = vmul.f32 %v2983, %v2983
  %v3234 = vmul.f32 %v2984, %v2984
  %v3235 = vmul.f32 %v2985, %v2985
  %v3236 = vmul.f32 %v2986, %v2986
  %v3237 = vmul.f32 %v2987, %v2987
  %v3238 = vmul.f32 %v2988, %v2988
  %v3239 = vmul.f32 %v2989, %v2989
  %v3240 = vmul.f32 %v2990, %v2990
  %v3241 = vsel %vm110, %v3216, 0.0
  %3242 = vadd.xlane.f32.xlu0 %v3241
  %v3243 = vpop.xlane.xlu0 %3242
  %v3244 = vsel %vm110, %v3217, 0.0
  %3245 = vadd.xlane.f32.xlu0 %v3244
  %v3246 = vpop.xlane.xlu0 %3245
  %v3247 = vsel %vm110, %v3218, 0.0
  %3248 = vadd.xlane.f32.xlu0 %v3247
  %v3249 = vpop.xlane.xlu0 %3248
  %v3250 = vsel %vm110, %v3219, 0.0
  %3251 = vadd.xlane.f32.xlu0 %v3250
  %v3252 = vpop.xlane.xlu0 %3251
  %v3253 = vsel %vm110, %v3220, 0.0
  %3254 = vadd.xlane.f32.xlu0 %v3253
  %v3255 = vpop.xlane.xlu0 %3254
  %v3256 = vsel %vm110, %v3221, 0.0
  %3257 = vadd.xlane.f32.xlu0 %v3256
  %v3258 = vpop.xlane.xlu0 %3257
  %v3259 = vsel %vm110, %v3222, 0.0
  %3260 = vadd.xlane.f32.xlu0 %v3259
  %v3261 = vpop.xlane.xlu0 %3260
  %v3262 = vsel %vm110, %v3223, 0.0
  %3263 = vadd.xlane.f32.xlu0 %v3262
  %v3264 = vpop.xlane.xlu0 %3263
  %v3265 = vsel %vm110, %v3224, 0.0
  %3266 = vadd.xlane.f32.xlu0 %v3265
  %v3267 = vpop.xlane.xlu0 %3266
  %v3268 = vsel %vm110, %v3225, 0.0
  %3269 = vadd.xlane.f32.xlu0 %v3268
  %v3270 = vpop.xlane.xlu0 %3269
  %v3271 = vsel %vm110, %v3226, 0.0
  %3272 = vadd.xlane.f32.xlu0 %v3271
  %v3273 = vpop.xlane.xlu0 %3272
  %v3274 = vsel %vm110, %v3227, 0.0
  %3275 = vadd.xlane.f32.xlu0 %v3274
  %v3276 = vpop.xlane.xlu0 %3275
  %v3277 = vsel %vm110, %v3228, 0.0
  %3278 = vadd.xlane.f32.xlu0 %v3277
  %v3279 = vpop.xlane.xlu0 %3278
  %v3280 = vsel %vm110, %v3229, 0.0
  %3281 = vadd.xlane.f32.xlu0 %v3280
  %v3282 = vpop.xlane.xlu0 %3281
  %v3283 = vsel %vm110, %v3230, 0.0
  %3284 = vadd.xlane.f32.xlu0 %v3283
  %v3285 = vpop.xlane.xlu0 %3284
  %v3286 = vsel %vm110, %v3231, 0.0
  %3287 = vadd.xlane.f32.xlu0 %v3286
  %v3288 = vpop.xlane.xlu0 %3287
  %v3289 = vsel %vm110, %v3232, 0.0
  %3290 = vadd.xlane.f32.xlu0 %v3289
  %v3291 = vpop.xlane.xlu0 %3290
  %v3292 = vsel %vm110, %v3233, 0.0
  %3293 = vadd.xlane.f32.xlu0 %v3292
  %v3294 = vpop.xlane.xlu0 %3293
  %v3295 = vsel %vm110, %v3234, 0.0
  %3296 = vadd.xlane.f32.xlu0 %v3295
  %v3297 = vpop.xlane.xlu0 %3296
  %v3298 = vsel %vm110, %v3235, 0.0
  %3299 = vadd.xlane.f32.xlu0 %v3298
  %v3300 = vpop.xlane.xlu0 %3299
  %v3301 = vsel %vm110, %v3236, 0.0
  %3302 = vadd.xlane.f32.xlu0 %v3301
  %v3303 = vpop.xlane.xlu0 %3302
  %v3304 = vsel %vm110, %v3237, 0.0
  %3305 = vadd.xlane.f32.xlu0 %v3304
  %v3306 = vpop.xlane.xlu0 %3305
  %v3307 = vsel %vm110, %v3238, 0.0
  %3308 = vadd.xlane.f32.xlu0 %v3307
  %v3309 = vpop.xlane.xlu0 %3308
  %v3310 = vsel %vm110, %v3239, 0.0
  %3311 = vadd.xlane.f32.xlu0 %v3310
  %v3312 = vpop.xlane.xlu0 %3311
  %v3313 = vsel %vm110, %v3240, 0.0
  %3314 = vadd.xlane.f32.xlu0 %v3313
  %v3315 = vpop.xlane.xlu0 %3314
  %v3316 = vrot.slane %v3243, 4
  %v3317 = vadd.f32 %v3243, %v3316
  %v3318 = vrot.slane %v3317, 2
  %v3319 = vadd.f32 %v3317, %v3318
  %v3320 = vrot.slane %v3319, 1
  %v3321 = vadd.f32 %v3319, %v3320
  %v3322 = vrot.slane %v3246, 4
  %v3323 = vadd.f32 %v3246, %v3322
  %v3324 = vrot.slane %v3323, 2
  %v3325 = vadd.f32 %v3323, %v3324
  %v3326 = vrot.slane %v3325, 1
  %v3327 = vadd.f32 %v3325, %v3326
  %v3328 = vrot.slane %v3249, 4
  %v3329 = vadd.f32 %v3249, %v3328
  %v3330 = vrot.slane %v3329, 2
  %v3331 = vadd.f32 %v3329, %v3330
  %v3332 = vrot.slane %v3331, 1
  %v3333 = vadd.f32 %v3331, %v3332
  %v3334 = vrot.slane %v3252, 4
  %v3335 = vadd.f32 %v3252, %v3334
  %v3336 = vrot.slane %v3335, 2
  %v3337 = vadd.f32 %v3335, %v3336
  %v3338 = vrot.slane %v3337, 1
  %v3339 = vadd.f32 %v3337, %v3338
  %v3340 = vrot.slane %v3255, 4
  %v3341 = vadd.f32 %v3255, %v3340
  %v3342 = vrot.slane %v3341, 2
  %v3343 = vadd.f32 %v3341, %v3342
  %v3344 = vrot.slane %v3343, 1
  %v3345 = vadd.f32 %v3343, %v3344
  %v3346 = vrot.slane %v3258, 4
  %v3347 = vadd.f32 %v3258, %v3346
  %v3348 = vrot.slane %v3347, 2
  %v3349 = vadd.f32 %v3347, %v3348
  %v3350 = vrot.slane %v3349, 1
  %v3351 = vadd.f32 %v3349, %v3350
  %v3352 = vrot.slane %v3261, 4
  %v3353 = vadd.f32 %v3261, %v3352
  %v3354 = vrot.slane %v3353, 2
  %v3355 = vadd.f32 %v3353, %v3354
  %v3356 = vrot.slane %v3355, 1
  %v3357 = vadd.f32 %v3355, %v3356
  %v3358 = vrot.slane %v3264, 4
  %v3359 = vadd.f32 %v3264, %v3358
  %v3360 = vrot.slane %v3359, 2
  %v3361 = vadd.f32 %v3359, %v3360
  %v3362 = vrot.slane %v3361, 1
  %v3363 = vadd.f32 %v3361, %v3362
  %v3364 = vrot.slane %v3267, 4
  %v3365 = vadd.f32 %v3267, %v3364
  %v3366 = vrot.slane %v3365, 2
  %v3367 = vadd.f32 %v3365, %v3366
  %v3368 = vrot.slane %v3367, 1
  %v3369 = vadd.f32 %v3367, %v3368
  %v3370 = vrot.slane %v3270, 4
  %v3371 = vadd.f32 %v3270, %v3370
  %v3372 = vrot.slane %v3371, 2
  %v3373 = vadd.f32 %v3371, %v3372
  %v3374 = vrot.slane %v3373, 1
  %v3375 = vadd.f32 %v3373, %v3374
  %v3376 = vrot.slane %v3273, 4
  %v3377 = vadd.f32 %v3273, %v3376
  %v3378 = vrot.slane %v3377, 2
  %v3379 = vadd.f32 %v3377, %v3378
  %v3380 = vrot.slane %v3379, 1
  %v3381 = vadd.f32 %v3379, %v3380
  %v3382 = vrot.slane %v3276, 4
  %v3383 = vadd.f32 %v3276, %v3382
  %v3384 = vrot.slane %v3383, 2
  %v3385 = vadd.f32 %v3383, %v3384
  %v3386 = vrot.slane %v3385, 1
  %v3387 = vadd.f32 %v3385, %v3386
  %v3388 = vrot.slane %v3279, 4
  %v3389 = vadd.f32 %v3279, %v3388
  %v3390 = vrot.slane %v3389, 2
  %v3391 = vadd.f32 %v3389, %v3390
  %v3392 = vrot.slane %v3391, 1
  %v3393 = vadd.f32 %v3391, %v3392
  %v3394 = vrot.slane %v3282, 4
  %v3395 = vadd.f32 %v3282, %v3394
  %v3396 = vrot.slane %v3395, 2
  %v3397 = vadd.f32 %v3395, %v3396
  %v3398 = vrot.slane %v3397, 1
  %v3399 = vadd.f32 %v3397, %v3398
  %v3400 = vrot.slane %v3285, 4
  %v3401 = vadd.f32 %v3285, %v3400
  %v3402 = vrot.slane %v3401, 2
  %v3403 = vadd.f32 %v3401, %v3402
  %v3404 = vrot.slane %v3403, 1
  %v3405 = vadd.f32 %v3403, %v3404
  %v3406 = vrot.slane %v3288, 4
  %v3407 = vadd.f32 %v3288, %v3406
  %v3408 = vrot.slane %v3407, 2
  %v3409 = vadd.f32 %v3407, %v3408
  %v3410 = vrot.slane %v3409, 1
  %v3411 = vadd.f32 %v3409, %v3410
  %v3412 = vrot.slane %v3291, 4
  %v3413 = vadd.f32 %v3291, %v3412
  %v3414 = vrot.slane %v3413, 2
  %v3415 = vadd.f32 %v3413, %v3414
  %v3416 = vrot.slane %v3415, 1
  %v3417 = vadd.f32 %v3415, %v3416
  %v3418 = vrot.slane %v3294, 4
  %v3419 = vadd.f32 %v3294, %v3418
  %v3420 = vrot.slane %v3419, 2
  %v3421 = vadd.f32 %v3419, %v3420
  %v3422 = vrot.slane %v3421, 1
  %v3423 = vadd.f32 %v3421, %v3422
  %v3424 = vrot.slane %v3297, 4
  %v3425 = vadd.f32 %v3297, %v3424
  %v3426 = vrot.slane %v3425, 2
  %v3427 = vadd.f32 %v3425, %v3426
  %v3428 = vrot.slane %v3427, 1
  %v3429 = vadd.f32 %v3427, %v3428
  %v3430 = vrot.slane %v3300, 4
  %v3431 = vadd.f32 %v3300, %v3430
  %v3432 = vrot.slane %v3431, 2
  %v3433 = vadd.f32 %v3431, %v3432
  %v3434 = vrot.slane %v3433, 1
  %v3435 = vadd.f32 %v3433, %v3434
  %v3436 = vrot.slane %v3303, 4
  %v3437 = vadd.f32 %v3303, %v3436
  %v3438 = vrot.slane %v3437, 2
  %v3439 = vadd.f32 %v3437, %v3438
  %v3440 = vrot.slane %v3439, 1
  %v3441 = vadd.f32 %v3439, %v3440
  %v3442 = vrot.slane %v3306, 4
  %v3443 = vadd.f32 %v3306, %v3442
  %v3444 = vrot.slane %v3443, 2
  %v3445 = vadd.f32 %v3443, %v3444
  %v3446 = vrot.slane %v3445, 1
  %v3447 = vadd.f32 %v3445, %v3446
  %v3448 = vrot.slane %v3309, 4
  %v3449 = vadd.f32 %v3309, %v3448
  %v3450 = vrot.slane %v3449, 2
  %v3451 = vadd.f32 %v3449, %v3450
  %v3452 = vrot.slane %v3451, 1
  %v3453 = vadd.f32 %v3451, %v3452
  %v3454 = vrot.slane %v3312, 4
  %v3455 = vadd.f32 %v3312, %v3454
  %v3456 = vrot.slane %v3455, 2
  %v3457 = vadd.f32 %v3455, %v3456
  %v3458 = vrot.slane %v3457, 1
  %v3459 = vadd.f32 %v3457, %v3458
  %v3460 = vrot.slane %v3315, 4
  %v3461 = vadd.f32 %v3315, %v3460
  %v3462 = vrot.slane %v3461, 2
  %v3463 = vadd.f32 %v3461, %v3462
  %v3464 = vrot.slane %v3463, 1
  %v3465 = vadd.f32 %v3463, %v3464
  %v3466 = vmul.f32 %v3071, 0.00390625
  %v3467 = vmul.f32 %v3077, 0.00390625
  %v3468 = vmul.f32 %v3083, 0.00390625
  %v3469 = vmul.f32 %v3089, 0.00390625
  %v3470 = vmul.f32 %v3095, 0.00390625
  %v3471 = vmul.f32 %v3101, 0.00390625
  %v3472 = vmul.f32 %v3107, 0.00390625
  %v3473 = vmul.f32 %v3113, 0.00390625
  %v3474 = vmul.f32 %v3119, 0.00390625
  %v3475 = vmul.f32 %v3125, 0.00390625
  %v3476 = vmul.f32 %v3131, 0.00390625
  %v3477 = vmul.f32 %v3137, 0.00390625
  %v3478 = vmul.f32 %v3143, 0.00390625
  %v3479 = vmul.f32 %v3149, 0.00390625
  %v3480 = vmul.f32 %v3155, 0.00390625
  %v3481 = vmul.f32 %v3161, 0.00390625
  %v3482 = vmul.f32 %v3167, 0.00390625
  %v3483 = vmul.f32 %v3173, 0.00390625
  %v3484 = vmul.f32 %v3179, 0.00390625
  %v3485 = vmul.f32 %v3185, 0.00390625
  %v3486 = vmul.f32 %v3191, 0.00390625
  %v3487 = vmul.f32 %v3197, 0.00390625
  %v3488 = vmul.f32 %v3203, 0.00390625
  %v3489 = vmul.f32 %v3209, 0.00390625
  %v3490 = vmul.f32 %v3215, 0.00390625
  %v3491 = vmul.f32 %v3321, 0.00390625
  %v3492 = vmul.f32 %v3327, 0.00390625
  %v3493 = vmul.f32 %v3333, 0.00390625
  %v3494 = vmul.f32 %v3339, 0.00390625
  %v3495 = vmul.f32 %v3345, 0.00390625
  %v3496 = vmul.f32 %v3351, 0.00390625
  %v3497 = vmul.f32 %v3357, 0.00390625
  %v3498 = vmul.f32 %v3363, 0.00390625
  %v3499 = vmul.f32 %v3369, 0.00390625
  %v3500 = vmul.f32 %v3375, 0.00390625
  %v3501 = vmul.f32 %v3381, 0.00390625
  %v3502 = vmul.f32 %v3387, 0.00390625
  %v3503 = vmul.f32 %v3393, 0.00390625
  %v3504 = vmul.f32 %v3399, 0.00390625
  %v3505 = vmul.f32 %v3405, 0.00390625
  %v3506 = vmul.f32 %v3411, 0.00390625
  %v3507 = vmul.f32 %v3417, 0.00390625
  %v3508 = vmul.f32 %v3423, 0.00390625
  %v3509 = vmul.f32 %v3429, 0.00390625
  %v3510 = vmul.f32 %v3435, 0.00390625
  %v3511 = vmul.f32 %v3441, 0.00390625
  %v3512 = vmul.f32 %v3447, 0.00390625
  %v3513 = vmul.f32 %v3453, 0.00390625
  %v3514 = vmul.f32 %v3459, 0.00390625
  %v3515 = vmul.f32 %v3465, 0.00390625
  %v3516 = vmul.f32 %v3466, %v3466
  %v3517 = vmul.f32 %v3467, %v3467
  %v3518 = vmul.f32 %v3468, %v3468
  %v3519 = vmul.f32 %v3469, %v3469
  %v3520 = vmul.f32 %v3470, %v3470
  %v3521 = vmul.f32 %v3471, %v3471
  %v3522 = vmul.f32 %v3472, %v3472
  %v3523 = vmul.f32 %v3473, %v3473
  %v3524 = vmul.f32 %v3474, %v3474
  %v3525 = vmul.f32 %v3475, %v3475
  %v3526 = vmul.f32 %v3476, %v3476
  %v3527 = vmul.f32 %v3477, %v3477
  %v3528 = vmul.f32 %v3478, %v3478
  %v3529 = vmul.f32 %v3479, %v3479
  %v3530 = vmul.f32 %v3480, %v3480
  %v3531 = vmul.f32 %v3481, %v3481
  %v3532 = vmul.f32 %v3482, %v3482
  %v3533 = vmul.f32 %v3483, %v3483
  %v3534 = vmul.f32 %v3484, %v3484
  %v3535 = vmul.f32 %v3485, %v3485
  %v3536 = vmul.f32 %v3486, %v3486
  %v3537 = vmul.f32 %v3487, %v3487
  %v3538 = vmul.f32 %v3488, %v3488
  %v3539 = vmul.f32 %v3489, %v3489
  %v3540 = vmul.f32 %v3490, %v3490
  %v3541 = vsub.f32 %v3491, %v3516
  %v3542 = vsub.f32 %v3492, %v3517
  %v3543 = vsub.f32 %v3493, %v3518
  %v3544 = vsub.f32 %v3494, %v3519
  %v3545 = vsub.f32 %v3495, %v3520
  %v3546 = vsub.f32 %v3496, %v3521
  %v3547 = vsub.f32 %v3497, %v3522
  %v3548 = vsub.f32 %v3498, %v3523
  %v3549 = vsub.f32 %v3499, %v3524
  %v3550 = vsub.f32 %v3500, %v3525
  %v3551 = vsub.f32 %v3501, %v3526
  %v3552 = vsub.f32 %v3502, %v3527
  %v3553 = vsub.f32 %v3503, %v3528
  %v3554 = vsub.f32 %v3504, %v3529
  %v3555 = vsub.f32 %v3505, %v3530
  %v3556 = vsub.f32 %v3506, %v3531
  %v3557 = vsub.f32 %v3507, %v3532
  %v3558 = vsub.f32 %v3508, %v3533
  %v3559 = vsub.f32 %v3509, %v3534
  %v3560 = vsub.f32 %v3510, %v3535
  %v3561 = vsub.f32 %v3511, %v3536
  %v3562 = vsub.f32 %v3512, %v3537
  %v3563 = vsub.f32 %v3513, %v3538
  %v3564 = vsub.f32 %v3514, %v3539
  %v3565 = vsub.f32 %v3515, %v3540
  %v3566 = vsub.f32 %v2966, %v3466
  %v3567 = vsub.f32 %v2967, %v3467
  %v3568 = vsub.f32 %v2968, %v3468
  %v3569 = vsub.f32 %v2969, %v3469
  %v3570 = vsub.f32 %v2970, %v3470
  %v3571 = vsub.f32 %v2971, %v3471
  %v3572 = vsub.f32 %v2972, %v3472
  %v3573 = vsub.f32 %v2973, %v3473
  %v3574 = vsub.f32 %v2974, %v3474
  %v3575 = vsub.f32 %v2975, %v3475
  %v3576 = vsub.f32 %v2976, %v3476
  %v3577 = vsub.f32 %v2977, %v3477
  %v3578 = vsub.f32 %v2978, %v3478
  %v3579 = vsub.f32 %v2979, %v3479
  %v3580 = vsub.f32 %v2980, %v3480
  %v3581 = vsub.f32 %v2981, %v3481
  %v3582 = vsub.f32 %v2982, %v3482
  %v3583 = vsub.f32 %v2983, %v3483
  %v3584 = vsub.f32 %v2984, %v3484
  %v3585 = vsub.f32 %v2985, %v3485
  %v3586 = vsub.f32 %v2986, %v3486
  %v3587 = vsub.f32 %v2987, %v3487
  %v3588 = vsub.f32 %v2988, %v3488
  %v3589 = vsub.f32 %v2989, %v3489
  %v3590 = vsub.f32 %v2990, %v3490
  %v3591 = vadd.f32 %v3541, 1e-05
  %v3592 = vadd.f32 %v3542, 1e-05
  %v3593 = vadd.f32 %v3543, 1e-05
  %v3594 = vadd.f32 %v3544, 1e-05
  %v3595 = vadd.f32 %v3545, 1e-05
  %v3596 = vadd.f32 %v3546, 1e-05
  %v3597 = vadd.f32 %v3547, 1e-05
  %v3598 = vadd.f32 %v3548, 1e-05
  %v3599 = vadd.f32 %v3549, 1e-05
  %v3600 = vadd.f32 %v3550, 1e-05
  %v3601 = vadd.f32 %v3551, 1e-05
  %v3602 = vadd.f32 %v3552, 1e-05
  %v3603 = vadd.f32 %v3553, 1e-05
  %v3604 = vadd.f32 %v3554, 1e-05
  %v3605 = vadd.f32 %v3555, 1e-05
  %v3606 = vadd.f32 %v3556, 1e-05
  %v3607 = vadd.f32 %v3557, 1e-05
  %v3608 = vadd.f32 %v3558, 1e-05
  %v3609 = vadd.f32 %v3559, 1e-05
  %v3610 = vadd.f32 %v3560, 1e-05
  %v3611 = vadd.f32 %v3561, 1e-05
  %v3612 = vadd.f32 %v3562, 1e-05
  %v3613 = vadd.f32 %v3563, 1e-05
  %v3614 = vadd.f32 %v3564, 1e-05
  %v3615 = vadd.f32 %v3565, 1e-05
  %v3616 = vrsqrt.pop %v3591
  %v3617 = vrsqrt.pop %v3592
  %v3618 = vrsqrt.pop %v3593
  %v3619 = vrsqrt.pop %v3594
  %v3620 = vrsqrt.pop %v3595
  %v3621 = vrsqrt.pop %v3596
  %v3622 = vrsqrt.pop %v3597
  %v3623 = vrsqrt.pop %v3598
  %v3624 = vrsqrt.pop %v3599
  %v3625 = vrsqrt.pop %v3600
  %v3626 = vrsqrt.pop %v3601
  %v3627 = vrsqrt.pop %v3602
  %v3628 = vrsqrt.pop %v3603
  %v3629 = vrsqrt.pop %v3604
  %v3630 = vrsqrt.pop %v3605
  %v3631 = vrsqrt.pop %v3606
  %v3632 = vrsqrt.pop %v3607
  %v3633 = vrsqrt.pop %v3608
  %v3634 = vrsqrt.pop %v3609
  %v3635 = vrsqrt.pop %v3610
  %v3636 = vrsqrt.pop %v3611
  %v3637 = vrsqrt.pop %v3612
  %v3638 = vrsqrt.pop %v3613
  %v3639 = vrsqrt.pop %v3614
  %v3640 = vrsqrt.pop %v3615
  %v3641 = vmul.f32 %v3566, %v3616
  %v3642 = vmul.f32 %v3567, %v3617
  %v3643 = vmul.f32 %v3568, %v3618
  %v3644 = vmul.f32 %v3569, %v3619
  %v3645 = vmul.f32 %v3570, %v3620
  %v3646 = vmul.f32 %v3571, %v3621
  %v3647 = vmul.f32 %v3572, %v3622
  %v3648 = vmul.f32 %v3573, %v3623
  %v3649 = vmul.f32 %v3574, %v3624
  %v3650 = vmul.f32 %v3575, %v3625
  %v3651 = vmul.f32 %v3576, %v3626
  %v3652 = vmul.f32 %v3577, %v3627
  %v3653 = vmul.f32 %v3578, %v3628
  %v3654 = vmul.f32 %v3579, %v3629
  %v3655 = vmul.f32 %v3580, %v3630
  %v3656 = vmul.f32 %v3581, %v3631
  %v3657 = vmul.f32 %v3582, %v3632
  %v3658 = vmul.f32 %v3583, %v3633
  %v3659 = vmul.f32 %v3584, %v3634
  %v3660 = vmul.f32 %v3585, %v3635
  %v3661 = vmul.f32 %v3586, %v3636
  %v3662 = vmul.f32 %v3587, %v3637
  %v3663 = vmul.f32 %v3588, %v3638
  %v3664 = vmul.f32 %v3589, %v3639
  %v3665 = vmul.f32 %v3590, %v3640
  %vm3666 = vcmp.ne.f32.partialorder %v3641, %v3641
  %vm3667 = vcmp.ne.f32.partialorder %v3642, %v3642
  %vm3668 = vcmp.ne.f32.partialorder %v3643, %v3643
  %vm3669 = vcmp.ne.f32.partialorder %v3644, %v3644
  %vm3670 = vcmp.ne.f32.partialorder %v3645, %v3645
  %vm3671 = vcmp.ne.f32.partialorder %v3646, %v3646
  %vm3672 = vcmp.ne.f32.partialorder %v3647, %v3647
  %vm3673 = vcmp.ne.f32.partialorder %v3648, %v3648
  %vm3674 = vcmp.ne.f32.partialorder %v3649, %v3649
  %vm3675 = vcmp.ne.f32.partialorder %v3650, %v3650
  %vm3676 = vcmp.ne.f32.partialorder %v3651, %v3651
  %vm3677 = vcmp.ne.f32.partialorder %v3652, %v3652
  %vm3678 = vcmp.ne.f32.partialorder %v3653, %v3653
  %vm3679 = vcmp.ne.f32.partialorder %v3654, %v3654
  %vm3680 = vcmp.ne.f32.partialorder %v3655, %v3655
  %vm3681 = vcmp.ne.f32.partialorder %v3656, %v3656
  %vm3682 = vcmp.ne.f32.partialorder %v3657, %v3657
  %vm3683 = vcmp.ne.f32.partialorder %v3658, %v3658
  %vm3684 = vcmp.ne.f32.partialorder %v3659, %v3659
  %vm3685 = vcmp.ne.f32.partialorder %v3660, %v3660
  %vm3686 = vcmp.ne.f32.partialorder %v3661, %v3661
  %vm3687 = vcmp.ne.f32.partialorder %v3662, %v3662
  %vm3688 = vcmp.ne.f32.partialorder %v3663, %v3663
  %vm3689 = vcmp.ne.f32.partialorder %v3664, %v3664
  %vm3690 = vcmp.ne.f32.partialorder %v3665, %v3665
  %v3691 = vsel %vm3666, 0.0, %v3641
  %v3692 = vsel %vm3667, 0.0, %v3642
  %v3693 = vsel %vm3668, 0.0, %v3643
  %v3694 = vsel %vm3669, 0.0, %v3644
  %v3695 = vsel %vm3670, 0.0, %v3645
  %v3696 = vsel %vm3671, 0.0, %v3646
  %v3697 = vsel %vm3672, 0.0, %v3647
  %v3698 = vsel %vm3673, 0.0, %v3648
  %v3699 = vsel %vm3674, 0.0, %v3649
  %v3700 = vsel %vm3675, 0.0, %v3650
  %v3701 = vsel %vm3676, 0.0, %v3651
  %v3702 = vsel %vm3677, 0.0, %v3652
  %v3703 = vsel %vm3678, 0.0, %v3653
  %v3704 = vsel %vm3679, 0.0, %v3654
  %v3705 = vsel %vm3680, 0.0, %v3655
  %v3706 = vsel %vm3681, 0.0, %v3656
  %v3707 = vsel %vm3682, 0.0, %v3657
  %v3708 = vsel %vm3683, 0.0, %v3658
  %v3709 = vsel %vm3684, 0.0, %v3659
  %v3710 = vsel %vm3685, 0.0, %v3660
  %v3711 = vsel %vm3686, 0.0, %v3661
  %v3712 = vsel %vm3687, 0.0, %v3662
  %v3713 = vsel %vm3688, 0.0, %v3663
  %v3714 = vsel %vm3689, 0.0, %v3664
  %v3715 = vsel %vm3690, 0.0, %v3665
  %v3716 = vmax.f32 %v3691, 0.0
  %v3717 = vmax.f32 %v3692, 0.0
  %v3718 = vmax.f32 %v3693, 0.0
  %v3719 = vmax.f32 %v3694, 0.0
  %v3720 = vmax.f32 %v3695, 0.0
  %v3721 = vmax.f32 %v3696, 0.0
  %v3722 = vmax.f32 %v3697, 0.0
  %v3723 = vmax.f32 %v3698, 0.0
  %v3724 = vmax.f32 %v3699, 0.0
  %v3725 = vmax.f32 %v3700, 0.0
  %v3726 = vmax.f32 %v3701, 0.0
  %v3727 = vmax.f32 %v3702, 0.0
  %v3728 = vmax.f32 %v3703, 0.0
  %v3729 = vmax.f32 %v3704, 0.0
  %v3730 = vmax.f32 %v3705, 0.0
  %v3731 = vmax.f32 %v3706, 0.0
  %v3732 = vmax.f32 %v3707, 0.0
  %v3733 = vmax.f32 %v3708, 0.0
  %v3734 = vmax.f32 %v3709, 0.0
  %v3735 = vmax.f32 %v3710, 0.0
  %v3736 = vmax.f32 %v3711, 0.0
  %v3737 = vmax.f32 %v3712, 0.0
  %v3738 = vmax.f32 %v3713, 0.0
  %v3739 = vmax.f32 %v3714, 0.0
  %v3740 = vmax.f32 %v3715, 0.0
  %v3741 = vadd.f32 %v1668, %v3716
  %v3742 = vadd.f32 %v1669, %v3717
  %v3743 = vadd.f32 %v1670, %v3718
  %v3744 = vadd.f32 %v1671, %v3719
  %v3745 = vadd.f32 %v1672, %v3720
  %v3746 = vadd.f32 %v1673, %v3721
  %v3747 = vadd.f32 %v1674, %v3722
  %v3748 = vadd.f32 %v1675, %v3723
  %v3749 = vadd.f32 %v1676, %v3724
  %v3750 = vadd.f32 %v1677, %v3725
  %v3751 = vadd.f32 %v1678, %v3726
  %v3752 = vadd.f32 %v1679, %v3727
  %v3753 = vadd.f32 %v1680, %v3728
  %v3754 = vadd.f32 %v1681, %v3729
  %v3755 = vadd.f32 %v1682, %v3730
  %v3756 = vadd.f32 %v1683, %v3731
  %v3757 = vadd.f32 %v1684, %v3732
  %v3758 = vadd.f32 %v1685, %v3733
  %v3759 = vadd.f32 %v1686, %v3734
  %v3760 = vadd.f32 %v1687, %v3735
  %v3761 = vadd.f32 %v1688, %v3736
  %v3762 = vadd.f32 %v1689, %v3737
  %v3763 = vadd.f32 %v1690, %v3738
  %v3764 = vadd.f32 %v1691, %v3739
  %v3765 = vadd.f32 %v1692, %v3740
  %v3766 = vsub.f32 0.0, %v3741
  %v3767 = vsub.f32 0.0, %v3742
  %v3768 = vsub.f32 0.0, %v3743
  %v3769 = vsub.f32 0.0, %v3744
  %v3770 = vsub.f32 0.0, %v3745
  %v3771 = vsub.f32 0.0, %v3746
  %v3772 = vsub.f32 0.0, %v3747
  %v3773 = vsub.f32 0.0, %v3748
  %v3774 = vsub.f32 0.0, %v3749
  %v3775 = vsub.f32 0.0, %v3750
  %v3776 = vsub.f32 0.0, %v3751
  %v3777 = vsub.f32 0.0, %v3752
  %v3778 = vsub.f32 0.0, %v3753
  %v3779 = vsub.f32 0.0, %v3754
  %v3780 = vsub.f32 0.0, %v3755
  %v3781 = vsub.f32 0.0, %v3756
  %v3782 = vsub.f32 0.0, %v3757
  %v3783 = vsub.f32 0.0, %v3758
  %v3784 = vsub.f32 0.0, %v3759
  %v3785 = vsub.f32 0.0, %v3760
  %v3786 = vsub.f32 0.0, %v3761
  %v3787 = vsub.f32 0.0, %v3762
  %v3788 = vsub.f32 0.0, %v3763
  %v3789 = vsub.f32 0.0, %v3764
  %v3790 = vsub.f32 0.0, %v3765
  %v3791 = vmul.f32 %v3766, 1.442695
  %v3792 = vpow.pop %v3791
  %v3793 = vmul.f32 %v3767, 1.442695
  %v3794 = vpow.pop %v3793
  %v3795 = vmul.f32 %v3768, 1.442695
  %v3796 = vpow.pop %v3795
  %v3797 = vmul.f32 %v3769, 1.442695
  %v3798 = vpow.pop %v3797
  %v3799 = vmul.f32 %v3770, 1.442695
  %v3800 = vpow.pop %v3799
  %v3801 = vmul.f32 %v3771, 1.442695
  %v3802 = vpow.pop %v3801
  %v3803 = vmul.f32 %v3772, 1.442695
  %v3804 = vpow.pop %v3803
  %v3805 = vmul.f32 %v3773, 1.442695
  %v3806 = vpow.pop %v3805
  %v3807 = vmul.f32 %v3774, 1.442695
  %v3808 = vpow.pop %v3807
  %v3809 = vmul.f32 %v3775, 1.442695
  %v3810 = vpow.pop %v3809
  %v3811 = vmul.f32 %v3776, 1.442695
  %v3812 = vpow.pop %v3811
  %v3813 = vmul.f32 %v3777, 1.442695
  %v3814 = vpow.pop %v3813
  %v3815 = vmul.f32 %v3778, 1.442695
  %v3816 = vpow.pop %v3815
  %v3817 = vmul.f32 %v3779, 1.442695
  %v3818 = vpow.pop %v3817
  %v3819 = vmul.f32 %v3780, 1.442695
  %v3820 = vpow.pop %v3819
  %v3821 = vmul.f32 %v3781, 1.442695
  %v3822 = vpow.pop %v3821
  %v3823 = vmul.f32 %v3782, 1.442695
  %v3824 = vpow.pop %v3823
  %v3825 = vmul.f32 %v3783, 1.442695
  %v3826 = vpow.pop %v3825
  %v3827 = vmul.f32 %v3784, 1.442695
  %v3828 = vpow.pop %v3827
  %v3829 = vmul.f32 %v3785, 1.442695
  %v3830 = vpow.pop %v3829
  %v3831 = vmul.f32 %v3786, 1.442695
  %v3832 = vpow.pop %v3831
  %v3833 = vmul.f32 %v3787, 1.442695
  %v3834 = vpow.pop %v3833
  %v3835 = vmul.f32 %v3788, 1.442695
  %v3836 = vpow.pop %v3835
  %v3837 = vmul.f32 %v3789, 1.442695
  %v3838 = vpow.pop %v3837
  %v3839 = vmul.f32 %v3790, 1.442695
  %v3840 = vpow.pop %v3839
  %v3841 = vadd.f32 %v3792, 1.0
  %v3842 = vadd.f32 %v3794, 1.0
  %v3843 = vadd.f32 %v3796, 1.0
  %v3844 = vadd.f32 %v3798, 1.0
  %v3845 = vadd.f32 %v3800, 1.0
  %v3846 = vadd.f32 %v3802, 1.0
  %v3847 = vadd.f32 %v3804, 1.0
  %v3848 = vadd.f32 %v3806, 1.0
  %v3849 = vadd.f32 %v3808, 1.0
  %v3850 = vadd.f32 %v3810, 1.0
  %v3851 = vadd.f32 %v3812, 1.0
  %v3852 = vadd.f32 %v3814, 1.0
  %v3853 = vadd.f32 %v3816, 1.0
  %v3854 = vadd.f32 %v3818, 1.0
  %v3855 = vadd.f32 %v3820, 1.0
  %v3856 = vadd.f32 %v3822, 1.0
  %v3857 = vadd.f32 %v3824, 1.0
  %v3858 = vadd.f32 %v3826, 1.0
  %v3859 = vadd.f32 %v3828, 1.0
  %v3860 = vadd.f32 %v3830, 1.0
  %v3861 = vadd.f32 %v3832, 1.0
  %v3862 = vadd.f32 %v3834, 1.0
  %v3863 = vadd.f32 %v3836, 1.0
  %v3864 = vadd.f32 %v3838, 1.0
  %v3865 = vadd.f32 %v3840, 1.0
  %v3866 = vrcp.pop %v3841
  %v3867 = vrcp.pop %v3842
  %v3868 = vrcp.pop %v3843
  %v3869 = vrcp.pop %v3844
  %v3870 = vrcp.pop %v3845
  %v3871 = vrcp.pop %v3846
  %v3872 = vrcp.pop %v3847
  %v3873 = vrcp.pop %v3848
  %v3874 = vrcp.pop %v3849
  %v3875 = vrcp.pop %v3850
  %v3876 = vrcp.pop %v3851
  %v3877 = vrcp.pop %v3852
  %v3878 = vrcp.pop %v3853
  %v3879 = vrcp.pop %v3854
  %v3880 = vrcp.pop %v3855
  %v3881 = vrcp.pop %v3856
  %v3882 = vrcp.pop %v3857
  %v3883 = vrcp.pop %v3858
  %v3884 = vrcp.pop %v3859
  %v3885 = vrcp.pop %v3860
  %v3886 = vrcp.pop %v3861
  %v3887 = vrcp.pop %v3862
  %v3888 = vrcp.pop %v3863
  %v3889 = vrcp.pop %v3864
  %v3890 = vrcp.pop %v3865
  %v3891 = vmul.f32 %v3866, 1.442695
  %v3892 = vpow.pop %v3891
  %v3893 = vmul.f32 %v3867, 1.442695
  %v3894 = vpow.pop %v3893
  %v3895 = vmul.f32 %v3868, 1.442695
  %v3896 = vpow.pop %v3895
  %v3897 = vmul.f32 %v3869, 1.442695
  %v3898 = vpow.pop %v3897
  %v3899 = vmul.f32 %v3870, 1.442695
  %v3900 = vpow.pop %v3899
  %v3901 = vmul.f32 %v3871, 1.442695
  %v3902 = vpow.pop %v3901
  %v3903 = vmul.f32 %v3872, 1.442695
  %v3904 = vpow.pop %v3903
  %v3905 = vmul.f32 %v3873, 1.442695
  %v3906 = vpow.pop %v3905
  %v3907 = vmul.f32 %v3874, 1.442695
  %v3908 = vpow.pop %v3907
  %v3909 = vmul.f32 %v3875, 1.442695
  %v3910 = vpow.pop %v3909
  %v3911 = vmul.f32 %v3876, 1.442695
  %v3912 = vpow.pop %v3911
  %v3913 = vmul.f32 %v3877, 1.442695
  %v3914 = vpow.pop %v3913
  %v3915 = vmul.f32 %v3878, 1.442695
  %v3916 = vpow.pop %v3915
  %v3917 = vmul.f32 %v3879, 1.442695
  %v3918 = vpow.pop %v3917
  %v3919 = vmul.f32 %v3880, 1.442695
  %v3920 = vpow.pop %v3919
  %v3921 = vmul.f32 %v3881, 1.442695
  %v3922 = vpow.pop %v3921
  %v3923 = vmul.f32 %v3882, 1.442695
  %v3924 = vpow.pop %v3923
  %v3925 = vmul.f32 %v3883, 1.442695
  %v3926 = vpow.pop %v3925
  %v3927 = vmul.f32 %v3884, 1.442695
  %v3928 = vpow.pop %v3927
  %v3929 = vmul.f32 %v3885, 1.442695
  %v3930 = vpow.pop %v3929
  %v3931 = vmul.f32 %v3886, 1.442695
  %v3932 = vpow.pop %v3931
  %v3933 = vmul.f32 %v3887, 1.442695
  %v3934 = vpow.pop %v3933
  %v3935 = vmul.f32 %v3888, 1.442695
  %v3936 = vpow.pop %v3935
  %v3937 = vmul.f32 %v3889, 1.442695
  %v3938 = vpow.pop %v3937
  %v3939 = vmul.f32 %v3890, 1.442695
  %v3940 = vpow.pop %v3939
  %v3941 = vsel %vm110, %v3892, 0.0
  %v3942 = vsel %vm110, %v3894, 0.0
  %v3943 = vadd.f32 %v3941, %v3942
  %v3944 = vsel %vm110, %v3896, 0.0
  %v3945 = vadd.f32 %v3943, %v3944
  %v3946 = vsel %vm110, %v3898, 0.0
  %v3947 = vadd.f32 %v3945, %v3946
  %v3948 = vsel %vm110, %v3900, 0.0
  %v3949 = vadd.f32 %v3947, %v3948
  %v3950 = vsel %vm110, %v3902, 0.0
  %v3951 = vsel %vm110, %v3904, 0.0
  %v3952 = vadd.f32 %v3950, %v3951
  %v3953 = vsel %vm110, %v3906, 0.0
  %v3954 = vadd.f32 %v3952, %v3953
  %v3955 = vsel %vm110, %v3908, 0.0
  %v3956 = vadd.f32 %v3954, %v3955
  %v3957 = vsel %vm110, %v3910, 0.0
  %v3958 = vadd.f32 %v3956, %v3957
  %v3959 = vsel %vm110, %v3912, 0.0
  %v3960 = vsel %vm110, %v3914, 0.0
  %v3961 = vadd.f32 %v3959, %v3960
  %v3962 = vsel %vm110, %v3916, 0.0
  %v3963 = vadd.f32 %v3961, %v3962
  %v3964 = vsel %vm110, %v3918, 0.0
  %v3965 = vadd.f32 %v3963, %v3964
  %v3966 = vsel %vm110, %v3920, 0.0
  %v3967 = vadd.f32 %v3965, %v3966
  %v3968 = vsel %vm110, %v3922, 0.0
  %v3969 = vsel %vm110, %v3924, 0.0
  %v3970 = vadd.f32 %v3968, %v3969
  %v3971 = vsel %vm110, %v3926, 0.0
  %v3972 = vadd.f32 %v3970, %v3971
  %v3973 = vsel %vm110, %v3928, 0.0
  %v3974 = vadd.f32 %v3972, %v3973
  %v3975 = vsel %vm110, %v3930, 0.0
  %v3976 = vadd.f32 %v3974, %v3975
  %v3977 = vsel %vm110, %v3932, 0.0
  %v3978 = vsel %vm110, %v3934, 0.0
  %v3979 = vadd.f32 %v3977, %v3978
  %v3980 = vsel %vm110, %v3936, 0.0
  %v3981 = vadd.f32 %v3979, %v3980
  %v3982 = vsel %vm110, %v3938, 0.0
  %v3983 = vadd.f32 %v3981, %v3982
  %v3984 = vsel %vm110, %v3940, 0.0
  %v3985 = vadd.f32 %v3983, %v3984
  %3986 = vrot.lane.b32.xlu0 %v2706, 32
  %v3987 = vpop.permute.xlu0 %3986
  %3988 = vrot.lane.b32.xlu0 %v2709, 32
  %v3989 = vpop.permute.xlu0 %3988
  %3990 = vrot.lane.b32.xlu0 %v2714, 32
  %v3991 = vpop.permute.xlu0 %3990
  %3992 = vrot.lane.b32.xlu0 %v2717, 32
  %v3993 = vpop.permute.xlu0 %3992
  %3994 = vrot.lane.b32.xlu0 %v2722, 32
  %v3995 = vpop.permute.xlu0 %3994
  %v4001 = vmul.f32 %v3892, %v3987
  %v4002 = vmul.f32 %v3894, %v3989
  %v4003 = vmul.f32 %v3896, %v3991
  %v4004 = vmul.f32 %v3898, %v3993
  %v4005 = vmul.f32 %v3900, %v3995
  %v4006 = vmul.f32 %v3902, %v3987
  %v4007 = vmul.f32 %v3904, %v3989
  %v4008 = vmul.f32 %v3906, %v3991
  %v4009 = vmul.f32 %v3908, %v3993
  %v4010 = vmul.f32 %v3910, %v3995
  %v4011 = vmul.f32 %v3912, %v3987
  %v4012 = vmul.f32 %v3914, %v3989
  %v4013 = vmul.f32 %v3916, %v3991
  %v4014 = vmul.f32 %v3918, %v3993
  %v4015 = vmul.f32 %v3920, %v3995
  %v4016 = vmul.f32 %v3922, %v3987
  %v4017 = vmul.f32 %v3924, %v3989
  %v4018 = vmul.f32 %v3926, %v3991
  %v4019 = vmul.f32 %v3928, %v3993
  %v4020 = vmul.f32 %v3930, %v3995
  %v4021 = vmul.f32 %v3932, %v3987
  %v4022 = vmul.f32 %v3934, %v3989
  %v4023 = vmul.f32 %v3936, %v3991
  %v4024 = vmul.f32 %v3938, %v3993
  %v4025 = vmul.f32 %v3940, %v3995
  %v4026 = vsel %vm110, %v4001, 0.0
  %v4027 = vsel %vm110, %v4002, 0.0
  %v4028 = vadd.f32 %v4026, %v4027
  %v4029 = vsel %vm110, %v4003, 0.0
  %v4030 = vadd.f32 %v4028, %v4029
  %v4031 = vsel %vm110, %v4004, 0.0
  %v4032 = vadd.f32 %v4030, %v4031
  %v4033 = vsel %vm110, %v4005, 0.0
  %v4034 = vadd.f32 %v4032, %v4033
  %v4035 = vsel %vm110, %v4006, 0.0
  %v4036 = vsel %vm110, %v4007, 0.0
  %v4037 = vadd.f32 %v4035, %v4036
  %v4038 = vsel %vm110, %v4008, 0.0
  %v4039 = vadd.f32 %v4037, %v4038
  %v4040 = vsel %vm110, %v4009, 0.0
  %v4041 = vadd.f32 %v4039, %v4040
  %v4042 = vsel %vm110, %v4010, 0.0
  %v4043 = vadd.f32 %v4041, %v4042
  %v4044 = vsel %vm110, %v4011, 0.0
  %v4045 = vsel %vm110, %v4012, 0.0
  %v4046 = vadd.f32 %v4044, %v4045
  %v4047 = vsel %vm110, %v4013, 0.0
  %v4048 = vadd.f32 %v4046, %v4047
  %v4049 = vsel %vm110, %v4014, 0.0
  %v4050 = vadd.f32 %v4048, %v4049
  %v4051 = vsel %vm110, %v4015, 0.0
  %v4052 = vadd.f32 %v4050, %v4051
  %v4053 = vsel %vm110, %v4016, 0.0
  %v4054 = vsel %vm110, %v4017, 0.0
  %v4055 = vadd.f32 %v4053, %v4054
  %v4056 = vsel %vm110, %v4018, 0.0
  %v4057 = vadd.f32 %v4055, %v4056
  %v4058 = vsel %vm110, %v4019, 0.0
  %v4059 = vadd.f32 %v4057, %v4058
  %v4060 = vsel %vm110, %v4020, 0.0
  %v4061 = vadd.f32 %v4059, %v4060
  %v4062 = vsel %vm110, %v4021, 0.0
  %v4063 = vsel %vm110, %v4022, 0.0
  %v4064 = vadd.f32 %v4062, %v4063
  %v4065 = vsel %vm110, %v4023, 0.0
  %v4066 = vadd.f32 %v4064, %v4065
  %v4067 = vsel %vm110, %v4024, 0.0
  %v4068 = vadd.f32 %v4066, %v4067
  %v4069 = vsel %vm110, %v4025, 0.0
  %v4070 = vadd.f32 %v4068, %v4069
  %v4071 = vrcp.pop %v3949
  %v4072 = vrcp.pop %v3958
  %v4073 = vrcp.pop %v3967
  %v4074 = vrcp.pop %v3976
  %v4075 = vrcp.pop %v3985
  %v4076 = vmul.f32 %v4034, %v4071
  %v4077 = vmul.f32 %v4043, %v4072
  %v4078 = vmul.f32 %v4052, %v4073
  %v4079 = vmul.f32 %v4061, %v4074
  %v4080 = vmul.f32 %v4070, %v4075
  %v4081 = vmul.f32 %v4076, 0.2
  %v4082 = vmul.f32 %v4077, 0.2
  %v4083 = vmul.f32 %v4078, 0.2
  %v4084 = vmul.f32 %v4079, 0.2
  %v4085 = vmul.f32 %v4080, 0.2
  %4091 = vrot.lane.b32.xlu0 %v4081, 64
  %v4092 = vpop.permute.xlu0 %4091
  %4093 = vrot.lane.b32.xlu0 %v4082, 64
  %v4094 = vpop.permute.xlu0 %4093
  %4095 = vrot.lane.b32.xlu0 %v4083, 64
  %v4096 = vpop.permute.xlu0 %4095
  %4097 = vrot.lane.b32.xlu0 %v4084, 64
  %v4098 = vpop.permute.xlu0 %4097
  %4099 = vrot.lane.b32.xlu0 %v4085, 64
  %v4100 = vpop.permute.xlu0 %4099
  %v4106 = vadd.f32 %v2706, %v4092
  %v4107 = vadd.f32 %v2709, %v4094
  %v4108 = vadd.f32 %v2714, %v4096
  %v4109 = vadd.f32 %v2717, %v4098
  %v4110 = vadd.f32 %v2722, %v4100
  %4116 = vrot.lane.b32.xlu0 %v4106, 64
  %v4117 = vpop.permute.xlu0 %4116
  %4118 = vrot.lane.b32.xlu0 %v4107, 64
  %v4119 = vpop.permute.xlu0 %4118
  %4120 = vrot.lane.b32.xlu0 %v4108, 64
  %v4121 = vpop.permute.xlu0 %4120
  %4122 = vrot.lane.b32.xlu0 %v4109, 64
  %v4123 = vpop.permute.xlu0 %4122
  %4124 = vrot.lane.b32.xlu0 %v4110, 64
  %v4125 = vpop.permute.xlu0 %4124
  %v4131 = vsel %vm110, %v4117, 0.0
  %4132 = vadd.xlane.f32.xlu0 %v4131
  %v4133 = vpop.xlane.xlu0 %4132
  %v4134 = vsel %vm110, %v4119, 0.0
  %4135 = vadd.xlane.f32.xlu0 %v4134
  %v4136 = vpop.xlane.xlu0 %4135
  %v4137 = vsel %vm110, %v4121, 0.0
  %4138 = vadd.xlane.f32.xlu0 %v4137
  %v4139 = vpop.xlane.xlu0 %4138
  %v4140 = vsel %vm110, %v4123, 0.0
  %4141 = vadd.xlane.f32.xlu0 %v4140
  %v4142 = vpop.xlane.xlu0 %4141
  %v4143 = vsel %vm110, %v4125, 0.0
  %4144 = vadd.xlane.f32.xlu0 %v4143
  %v4145 = vpop.xlane.xlu0 %4144
  %v4146 = vrot.slane %v4133, 4
  %v4147 = vadd.f32 %v4133, %v4146
  %v4148 = vrot.slane %v4147, 2
  %v4149 = vadd.f32 %v4147, %v4148
  %v4150 = vrot.slane %v4149, 1
  %v4151 = vadd.f32 %v4149, %v4150
  %v4152 = vrot.slane %v4136, 4
  %v4153 = vadd.f32 %v4136, %v4152
  %v4154 = vrot.slane %v4153, 2
  %v4155 = vadd.f32 %v4153, %v4154
  %v4156 = vrot.slane %v4155, 1
  %v4157 = vadd.f32 %v4155, %v4156
  %v4158 = vrot.slane %v4139, 4
  %v4159 = vadd.f32 %v4139, %v4158
  %v4160 = vrot.slane %v4159, 2
  %v4161 = vadd.f32 %v4159, %v4160
  %v4162 = vrot.slane %v4161, 1
  %v4163 = vadd.f32 %v4161, %v4162
  %v4164 = vrot.slane %v4142, 4
  %v4165 = vadd.f32 %v4142, %v4164
  %v4166 = vrot.slane %v4165, 2
  %v4167 = vadd.f32 %v4165, %v4166
  %v4168 = vrot.slane %v4167, 1
  %v4169 = vadd.f32 %v4167, %v4168
  %v4170 = vrot.slane %v4145, 4
  %v4171 = vadd.f32 %v4145, %v4170
  %v4172 = vrot.slane %v4171, 2
  %v4173 = vadd.f32 %v4171, %v4172
  %v4174 = vrot.slane %v4173, 1
  %v4175 = vadd.f32 %v4173, %v4174
  %v4176 = vmul.f32 %v4106, %v4106
  %v4177 = vmul.f32 %v4107, %v4107
  %v4178 = vmul.f32 %v4108, %v4108
  %v4179 = vmul.f32 %v4109, %v4109
  %v4180 = vmul.f32 %v4110, %v4110
  %4186 = vrot.lane.b32.xlu0 %v4176, 64
  %v4187 = vpop.permute.xlu0 %4186
  %4188 = vrot.lane.b32.xlu0 %v4177, 64
  %v4189 = vpop.permute.xlu0 %4188
  %4190 = vrot.lane.b32.xlu0 %v4178, 64
  %v4191 = vpop.permute.xlu0 %4190
  %4192 = vrot.lane.b32.xlu0 %v4179, 64
  %v4193 = vpop.permute.xlu0 %4192
  %4194 = vrot.lane.b32.xlu0 %v4180, 64
  %v4195 = vpop.permute.xlu0 %4194
  %v4201 = vsel %vm110, %v4187, 0.0
  %4202 = vadd.xlane.f32.xlu0 %v4201
  %v4203 = vpop.xlane.xlu0 %4202
  %v4204 = vsel %vm110, %v4189, 0.0
  %4205 = vadd.xlane.f32.xlu0 %v4204
  %v4206 = vpop.xlane.xlu0 %4205
  %v4207 = vsel %vm110, %v4191, 0.0
  %4208 = vadd.xlane.f32.xlu0 %v4207
  %v4209 = vpop.xlane.xlu0 %4208
  %v4210 = vsel %vm110, %v4193, 0.0
  %4211 = vadd.xlane.f32.xlu0 %v4210
  %v4212 = vpop.xlane.xlu0 %4211
  %v4213 = vsel %vm110, %v4195, 0.0
  %4214 = vadd.xlane.f32.xlu0 %v4213
  %v4215 = vpop.xlane.xlu0 %4214
  %v4216 = vrot.slane %v4203, 4
  %v4217 = vadd.f32 %v4203, %v4216
  %v4218 = vrot.slane %v4217, 2
  %v4219 = vadd.f32 %v4217, %v4218
  %v4220 = vrot.slane %v4219, 1
  %v4221 = vadd.f32 %v4219, %v4220
  %v4222 = vrot.slane %v4206, 4
  %v4223 = vadd.f32 %v4206, %v4222
  %v4224 = vrot.slane %v4223, 2
  %v4225 = vadd.f32 %v4223, %v4224
  %v4226 = vrot.slane %v4225, 1
  %v4227 = vadd.f32 %v4225, %v4226
  %v4228 = vrot.slane %v4209, 4
  %v4229 = vadd.f32 %v4209, %v4228
  %v4230 = vrot.slane %v4229, 2
  %v4231 = vadd.f32 %v4229, %v4230
  %v4232 = vrot.slane %v4231, 1
  %v4233 = vadd.f32 %v4231, %v4232
  %v4234 = vrot.slane %v4212, 4
  %v4235 = vadd.f32 %v4212, %v4234
  %v4236 = vrot.slane %v4235, 2
  %v4237 = vadd.f32 %v4235, %v4236
  %v4238 = vrot.slane %v4237, 1
  %v4239 = vadd.f32 %v4237, %v4238
  %v4240 = vrot.slane %v4215, 4
  %v4241 = vadd.f32 %v4215, %v4240
  %v4242 = vrot.slane %v4241, 2
  %v4243 = vadd.f32 %v4241, %v4242
  %v4244 = vrot.slane %v4243, 1
  %v4245 = vadd.f32 %v4243, %v4244
  %v4246 = vmul.f32 %v4151, 0.00390625
  %v4247 = vmul.f32 %v4157, 0.00390625
  %v4248 = vmul.f32 %v4163, 0.00390625
  %v4249 = vmul.f32 %v4169, 0.00390625
  %v4250 = vmul.f32 %v4175, 0.00390625
  %v4251 = vmul.f32 %v4221, 0.00390625
  %v4252 = vmul.f32 %v4227, 0.00390625
  %v4253 = vmul.f32 %v4233, 0.00390625
  %v4254 = vmul.f32 %v4239, 0.00390625
  %v4255 = vmul.f32 %v4245, 0.00390625
  %v4256 = vmul.f32 %v4246, %v4246
  %v4257 = vmul.f32 %v4247, %v4247
  %v4258 = vmul.f32 %v4248, %v4248
  %v4259 = vmul.f32 %v4249, %v4249
  %v4260 = vmul.f32 %v4250, %v4250
  %v4261 = vsub.f32 %v4251, %v4256
  %v4262 = vsub.f32 %v4252, %v4257
  %v4263 = vsub.f32 %v4253, %v4258
  %v4264 = vsub.f32 %v4254, %v4259
  %v4265 = vsub.f32 %v4255, %v4260
  %v4266 = vsub.f32 %v4106, %v4246
  %v4267 = vsub.f32 %v4107, %v4247
  %v4268 = vsub.f32 %v4108, %v4248
  %v4269 = vsub.f32 %v4109, %v4249
  %v4270 = vsub.f32 %v4110, %v4250
  %v4271 = vadd.f32 %v4261, 1e-05
  %v4272 = vadd.f32 %v4262, 1e-05
  %v4273 = vadd.f32 %v4263, 1e-05
  %v4274 = vadd.f32 %v4264, 1e-05
  %v4275 = vadd.f32 %v4265, 1e-05
  %v4276 = vrsqrt.pop %v4271
  %v4277 = vrsqrt.pop %v4272
  %v4278 = vrsqrt.pop %v4273
  %v4279 = vrsqrt.pop %v4274
  %v4280 = vrsqrt.pop %v4275
  %v4281 = vmul.f32 %v4266, %v4276
  %v4282 = vmul.f32 %v4267, %v4277
  %v4283 = vmul.f32 %v4268, %v4278
  %v4284 = vmul.f32 %v4269, %v4279
  %v4285 = vmul.f32 %v4270, %v4280
  %vm4286 = vcmp.ne.f32.partialorder %v4281, %v4281
  %vm4287 = vcmp.ne.f32.partialorder %v4282, %v4282
  %vm4288 = vcmp.ne.f32.partialorder %v4283, %v4283
  %vm4289 = vcmp.ne.f32.partialorder %v4284, %v4284
  %vm4290 = vcmp.ne.f32.partialorder %v4285, %v4285
  %v4291 = vsel %vm4286, 0.0, %v4281
  %v4292 = vsel %vm4287, 0.0, %v4282
  %v4293 = vsel %vm4288, 0.0, %v4283
  %v4294 = vsel %vm4289, 0.0, %v4284
  %v4295 = vsel %vm4290, 0.0, %v4285
  %v4301 = vrot.slane %v4291, 1
  %v4302 = vrot.slane %v4291, 2
  %v4303 = vrot.slane %v4291, 3
  %v4304 = vrot.slane %v4291, 4
  %v4305 = vrot.slane %v4291, 5
  %v4306 = vrot.slane %v4291, 6
  %v4307 = vrot.slane %v4291, 7
  %v4308 = vrot.slane %v4292, 1
  %v4309 = vrot.slane %v4292, 2
  %v4310 = vrot.slane %v4292, 3
  %v4311 = vrot.slane %v4292, 4
  %v4312 = vrot.slane %v4292, 5
  %v4313 = vrot.slane %v4292, 6
  %v4314 = vrot.slane %v4292, 7
  %v4315 = vrot.slane %v4293, 1
  %v4316 = vrot.slane %v4293, 2
  %v4317 = vrot.slane %v4293, 3
  %v4318 = vrot.slane %v4293, 4
  %v4319 = vrot.slane %v4293, 5
  %v4320 = vrot.slane %v4293, 6
  %v4321 = vrot.slane %v4293, 7
  %v4322 = vrot.slane %v4294, 1
  %v4323 = vrot.slane %v4294, 2
  %v4324 = vrot.slane %v4294, 3
  %v4325 = vrot.slane %v4294, 4
  %v4326 = vrot.slane %v4294, 5
  %v4327 = vrot.slane %v4294, 6
  %v4328 = vrot.slane %v4294, 7
  %v4329 = vrot.slane %v4295, 1
  %v4330 = vrot.slane %v4295, 2
  %v4331 = vrot.slane %v4295, 3
  %v4332 = vrot.slane %v4295, 4
  %v4333 = vrot.slane %v4295, 5
  %v4334 = vrot.slane %v4295, 6
  %v4335 = vrot.slane %v4295, 7
  %4336 = vrot.lane.b32.xlu0 %v4291, 64
  %v4337 = vpop.permute.xlu0 %4336
  %4338 = vrot.lane.b32.xlu0 %v4301, 64
  %v4339 = vpop.permute.xlu0 %4338
  %4340 = vrot.lane.b32.xlu0 %v4302, 64
  %v4341 = vpop.permute.xlu0 %4340
  %4342 = vrot.lane.b32.xlu0 %v4303, 64
  %v4343 = vpop.permute.xlu0 %4342
  %4344 = vrot.lane.b32.xlu0 %v4304, 64
  %v4345 = vpop.permute.xlu0 %4344
  %4346 = vrot.lane.b32.xlu0 %v4305, 64
  %v4347 = vpop.permute.xlu0 %4346
  %4348 = vrot.lane.b32.xlu0 %v4306, 64
  %v4349 = vpop.permute.xlu0 %4348
  %4350 = vrot.lane.b32.xlu0 %v4307, 64
  %v4351 = vpop.permute.xlu0 %4350
  %4352 = vrot.lane.b32.xlu0 %v4292, 64
  %v4353 = vpop.permute.xlu0 %4352
  %4354 = vrot.lane.b32.xlu0 %v4308, 64
  %v4355 = vpop.permute.xlu0 %4354
  %4356 = vrot.lane.b32.xlu0 %v4309, 64
  %v4357 = vpop.permute.xlu0 %4356
  %4358 = vrot.lane.b32.xlu0 %v4310, 64
  %v4359 = vpop.permute.xlu0 %4358
  %4360 = vrot.lane.b32.xlu0 %v4311, 64
  %v4361 = vpop.permute.xlu0 %4360
  %4362 = vrot.lane.b32.xlu0 %v4312, 64
  %v4363 = vpop.permute.xlu0 %4362
  %4364 = vrot.lane.b32.xlu0 %v4313, 64
  %v4365 = vpop.permute.xlu0 %4364
  %4366 = vrot.lane.b32.xlu0 %v4314, 64
  %v4367 = vpop.permute.xlu0 %4366
  %4368 = vrot.lane.b32.xlu0 %v4293, 64
  %v4369 = vpop.permute.xlu0 %4368
  %4370 = vrot.lane.b32.xlu0 %v4315, 64
  %v4371 = vpop.permute.xlu0 %4370
  %4372 = vrot.lane.b32.xlu0 %v4316, 64
  %v4373 = vpop.permute.xlu0 %4372
  %4374 = vrot.lane.b32.xlu0 %v4317, 64
  %v4375 = vpop.permute.xlu0 %4374
  %4376 = vrot.lane.b32.xlu0 %v4318, 64
  %v4377 = vpop.permute.xlu0 %4376
  %4378 = vrot.lane.b32.xlu0 %v4319, 64
  %v4379 = vpop.permute.xlu0 %4378
  %4380 = vrot.lane.b32.xlu0 %v4320, 64
  %v4381 = vpop.permute.xlu0 %4380
  %4382 = vrot.lane.b32.xlu0 %v4321, 64
  %v4383 = vpop.permute.xlu0 %4382
  %4384 = vrot.lane.b32.xlu0 %v4294, 64
  %v4385 = vpop.permute.xlu0 %4384
  %4386 = vrot.lane.b32.xlu0 %v4322, 64
  %v4387 = vpop.permute.xlu0 %4386
  %4388 = vrot.lane.b32.xlu0 %v4323, 64
  %v4389 = vpop.permute.xlu0 %4388
  %4390 = vrot.lane.b32.xlu0 %v4324, 64
  %v4391 = vpop.permute.xlu0 %4390
  %4392 = vrot.lane.b32.xlu0 %v4325, 64
  %v4393 = vpop.permute.xlu0 %4392
  %4394 = vrot.lane.b32.xlu0 %v4326, 64
  %v4395 = vpop.permute.xlu0 %4394
  %4396 = vrot.lane.b32.xlu0 %v4327, 64
  %v4397 = vpop.permute.xlu0 %4396
  %4398 = vrot.lane.b32.xlu0 %v4328, 64
  %v4399 = vpop.permute.xlu0 %4398
  %4400 = vrot.lane.b32.xlu0 %v4295, 64
  %v4401 = vpop.permute.xlu0 %4400
  %4402 = vrot.lane.b32.xlu0 %v4329, 64
  %v4403 = vpop.permute.xlu0 %4402
  %4404 = vrot.lane.b32.xlu0 %v4330, 64
  %v4405 = vpop.permute.xlu0 %4404
  %4406 = vrot.lane.b32.xlu0 %v4331, 64
  %v4407 = vpop.permute.xlu0 %4406
  %4408 = vrot.lane.b32.xlu0 %v4332, 64
  %v4409 = vpop.permute.xlu0 %4408
  %4410 = vrot.lane.b32.xlu0 %v4333, 64
  %v4411 = vpop.permute.xlu0 %4410
  %4412 = vrot.lane.b32.xlu0 %v4334, 64
  %v4413 = vpop.permute.xlu0 %4412
  %4414 = vrot.lane.b32.xlu0 %v4335, 64
  %v4415 = vpop.permute.xlu0 %4414
  %v4456 = vadd.f32 %v2423, %v4337
  %v4457 = vadd.f32 %v2424, %v4339
  %v4458 = vadd.f32 %v2425, %v4341
  %v4459 = vadd.f32 %v2426, %v4343
  %v4460 = vadd.f32 %v2427, %v4345
  %v4461 = vadd.f32 %v2428, %v4347
  %v4462 = vadd.f32 %v2429, %v4349
  %v4463 = vadd.f32 %v2430, %v4351
  %v4464 = vadd.f32 %v2431, %v4353
  %v4465 = vadd.f32 %v2432, %v4355
  %v4466 = vadd.f32 %v2433, %v4357
  %v4467 = vadd.f32 %v2434, %v4359
  %v4468 = vadd.f32 %v2435, %v4361
  %v4469 = vadd.f32 %v2436, %v4363
  %v4470 = vadd.f32 %v2437, %v4365
  %v4471 = vadd.f32 %v2438, %v4367
  %v4472 = vadd.f32 %v2439, %v4369
  %v4473 = vadd.f32 %v2440, %v4371
  %v4474 = vadd.f32 %v2441, %v4373
  %v4475 = vadd.f32 %v2442, %v4375
  %v4476 = vadd.f32 %v2443, %v4377
  %v4477 = vadd.f32 %v2444, %v4379
  %v4478 = vadd.f32 %v2445, %v4381
  %v4479 = vadd.f32 %v2446, %v4383
  %v4480 = vadd.f32 %v2447, %v4385
  %v4481 = vadd.f32 %v2448, %v4387
  %v4482 = vadd.f32 %v2449, %v4389
  %v4483 = vadd.f32 %v2450, %v4391
  %v4484 = vadd.f32 %v2451, %v4393
  %v4485 = vadd.f32 %v2452, %v4395
  %v4486 = vadd.f32 %v2453, %v4397
  %v4487 = vadd.f32 %v2454, %v4399
  %v4488 = vadd.f32 %v2455, %v4401
  %v4489 = vadd.f32 %v2456, %v4403
  %v4490 = vadd.f32 %v2457, %v4405
  %v4491 = vadd.f32 %v2458, %v4407
  %v4492 = vadd.f32 %v2459, %v4409
  %v4493 = vadd.f32 %v2460, %v4411
  %v4494 = vadd.f32 %v2461, %v4413
  %v4495 = vadd.f32 %v2462, %v4415
  %v4496 = vmax.f32 %v4456, 0.0
  %v4497 = vmax.f32 %v4457, 0.0
  %v4498 = vmax.f32 %v4458, 0.0
  %v4499 = vmax.f32 %v4459, 0.0
  %v4500 = vmax.f32 %v4460, 0.0
  %v4501 = vmax.f32 %v4461, 0.0
  %v4502 = vmax.f32 %v4462, 0.0
  %v4503 = vmax.f32 %v4463, 0.0
  %v4504 = vmax.f32 %v4464, 0.0
  %v4505 = vmax.f32 %v4465, 0.0
  %v4506 = vmax.f32 %v4466, 0.0
  %v4507 = vmax.f32 %v4467, 0.0
  %v4508 = vmax.f32 %v4468, 0.0
  %v4509 = vmax.f32 %v4469, 0.0
  %v4510 = vmax.f32 %v4470, 0.0
  %v4511 = vmax.f32 %v4471, 0.0
  %v4512 = vmax.f32 %v4472, 0.0
  %v4513 = vmax.f32 %v4473, 0.0
  %v4514 = vmax.f32 %v4474, 0.0
  %v4515 = vmax.f32 %v4475, 0.0
  %v4516 = vmax.f32 %v4476, 0.0
  %v4517 = vmax.f32 %v4477, 0.0
  %v4518 = vmax.f32 %v4478, 0.0
  %v4519 = vmax.f32 %v4479, 0.0
  %v4520 = vmax.f32 %v4480, 0.0
  %v4521 = vmax.f32 %v4481, 0.0
  %v4522 = vmax.f32 %v4482, 0.0
  %v4523 = vmax.f32 %v4483, 0.0
  %v4524 = vmax.f32 %v4484, 0.0
  %v4525 = vmax.f32 %v4485, 0.0
  %v4526 = vmax.f32 %v4486, 0.0
  %v4527 = vmax.f32 %v4487, 0.0
  %v4528 = vmax.f32 %v4488, 0.0
  %v4529 = vmax.f32 %v4489, 0.0
  %v4530 = vmax.f32 %v4490, 0.0
  %v4531 = vmax.f32 %v4491, 0.0
  %v4532 = vmax.f32 %v4492, 0.0
  %v4533 = vmax.f32 %v4493, 0.0
  %v4534 = vmax.f32 %v4494, 0.0
  %v4535 = vmax.f32 %v4495, 0.0
  %v4536 = vmul.f32 %v4496, %v4496
  %v4537 = vmul.f32 %v4497, %v4497
  %v4538 = vmul.f32 %v4498, %v4498
  %v4539 = vmul.f32 %v4499, %v4499
  %v4540 = vmul.f32 %v4500, %v4500
  %v4541 = vmul.f32 %v4501, %v4501
  %v4542 = vmul.f32 %v4502, %v4502
  %v4543 = vmul.f32 %v4503, %v4503
  %v4544 = vmul.f32 %v4504, %v4504
  %v4545 = vmul.f32 %v4505, %v4505
  %v4546 = vmul.f32 %v4506, %v4506
  %v4547 = vmul.f32 %v4507, %v4507
  %v4548 = vmul.f32 %v4508, %v4508
  %v4549 = vmul.f32 %v4509, %v4509
  %v4550 = vmul.f32 %v4510, %v4510
  %v4551 = vmul.f32 %v4511, %v4511
  %v4552 = vmul.f32 %v4512, %v4512
  %v4553 = vmul.f32 %v4513, %v4513
  %v4554 = vmul.f32 %v4514, %v4514
  %v4555 = vmul.f32 %v4515, %v4515
  %v4556 = vmul.f32 %v4516, %v4516
  %v4557 = vmul.f32 %v4517, %v4517
  %v4558 = vmul.f32 %v4518, %v4518
  %v4559 = vmul.f32 %v4519, %v4519
  %v4560 = vmul.f32 %v4520, %v4520
  %v4561 = vmul.f32 %v4521, %v4521
  %v4562 = vmul.f32 %v4522, %v4522
  %v4563 = vmul.f32 %v4523, %v4523
  %v4564 = vmul.f32 %v4524, %v4524
  %v4565 = vmul.f32 %v4525, %v4525
  %v4566 = vmul.f32 %v4526, %v4526
  %v4567 = vmul.f32 %v4527, %v4527
  %v4568 = vmul.f32 %v4528, %v4528
  %v4569 = vmul.f32 %v4529, %v4529
  %v4570 = vmul.f32 %v4530, %v4530
  %v4571 = vmul.f32 %v4531, %v4531
  %v4572 = vmul.f32 %v4532, %v4532
  %v4573 = vmul.f32 %v4533, %v4533
  %v4574 = vmul.f32 %v4534, %v4534
  %v4575 = vmul.f32 %v4535, %v4535
  %v4616 = vrot.slane %v4537, 7
  %v4617 = vsel %vm643, %v4616, %v4536
  %v4618 = vrot.slane %v4538, 6
  %v4619 = vsel %vm645, %v4618, %v4617
  %v4620 = vrot.slane %v4539, 5
  %v4621 = vsel %vm647, %v4620, %v4619
  %v4622 = vrot.slane %v4540, 4
  %v4623 = vsel %vm649, %v4622, %v4621
  %v4624 = vrot.slane %v4541, 3
  %v4625 = vsel %vm651, %v4624, %v4623
  %v4626 = vrot.slane %v4542, 2
  %v4627 = vsel %vm653, %v4626, %v4625
  %v4628 = vrot.slane %v4543, 1
  %v4629 = vsel %vm655, %v4628, %v4627
  %v4630 = vrot.slane %v4545, 7
  %v4631 = vsel %vm643, %v4630, %v4544
  %v4632 = vrot.slane %v4546, 6
  %v4633 = vsel %vm645, %v4632, %v4631
  %v4634 = vrot.slane %v4547, 5
  %v4635 = vsel %vm647, %v4634, %v4633
  %v4636 = vrot.slane %v4548, 4
  %v4637 = vsel %vm649, %v4636, %v4635
  %v4638 = vrot.slane %v4549, 3
  %v4639 = vsel %vm651, %v4638, %v4637
  %v4640 = vrot.slane %v4550, 2
  %v4641 = vsel %vm653, %v4640, %v4639
  %v4642 = vrot.slane %v4551, 1
  %v4643 = vsel %vm655, %v4642, %v4641
  %v4644 = vrot.slane %v4553, 7
  %v4645 = vsel %vm643, %v4644, %v4552
  %v4646 = vrot.slane %v4554, 6
  %v4647 = vsel %vm645, %v4646, %v4645
  %v4648 = vrot.slane %v4555, 5
  %v4649 = vsel %vm647, %v4648, %v4647
  %v4650 = vrot.slane %v4556, 4
  %v4651 = vsel %vm649, %v4650, %v4649
  %v4652 = vrot.slane %v4557, 3
  %v4653 = vsel %vm651, %v4652, %v4651
  %v4654 = vrot.slane %v4558, 2
  %v4655 = vsel %vm653, %v4654, %v4653
  %v4656 = vrot.slane %v4559, 1
  %v4657 = vsel %vm655, %v4656, %v4655
  %v4658 = vrot.slane %v4561, 7
  %v4659 = vsel %vm643, %v4658, %v4560
  %v4660 = vrot.slane %v4562, 6
  %v4661 = vsel %vm645, %v4660, %v4659
  %v4662 = vrot.slane %v4563, 5
  %v4663 = vsel %vm647, %v4662, %v4661
  %v4664 = vrot.slane %v4564, 4
  %v4665 = vsel %vm649, %v4664, %v4663
  %v4666 = vrot.slane %v4565, 3
  %v4667 = vsel %vm651, %v4666, %v4665
  %v4668 = vrot.slane %v4566, 2
  %v4669 = vsel %vm653, %v4668, %v4667
  %v4670 = vrot.slane %v4567, 1
  %v4671 = vsel %vm655, %v4670, %v4669
  %v4672 = vrot.slane %v4569, 7
  %v4673 = vsel %vm643, %v4672, %v4568
  %v4674 = vrot.slane %v4570, 6
  %v4675 = vsel %vm645, %v4674, %v4673
  %v4676 = vrot.slane %v4571, 5
  %v4677 = vsel %vm647, %v4676, %v4675
  %v4678 = vrot.slane %v4572, 4
  %v4679 = vsel %vm649, %v4678, %v4677
  %v4680 = vrot.slane %v4573, 3
  %v4681 = vsel %vm651, %v4680, %v4679
  %v4682 = vrot.slane %v4574, 2
  %v4683 = vsel %vm653, %v4682, %v4681
  %v4684 = vrot.slane %v4575, 1
  %v4685 = vsel %vm655, %v4684, %v4683
  %v4691 = vsel %vm110, %v4629, 0.0
  %4692 = vadd.xlane.f32.xlu0 %v4691
  %v4693 = vpop.xlane.xlu0 %4692
  %v4694 = vsel %vm110, %v4643, 0.0
  %4695 = vadd.xlane.f32.xlu0 %v4694
  %v4696 = vpop.xlane.xlu0 %4695
  %v4697 = vsel %vm110, %v4657, 0.0
  %4698 = vadd.xlane.f32.xlu0 %v4697
  %v4699 = vpop.xlane.xlu0 %4698
  %v4700 = vsel %vm110, %v4671, 0.0
  %4701 = vadd.xlane.f32.xlu0 %v4700
  %v4702 = vpop.xlane.xlu0 %4701
  %v4703 = vsel %vm110, %v4685, 0.0
  %4704 = vadd.xlane.f32.xlu0 %v4703
  %v4705 = vpop.xlane.xlu0 %4704
  %v4706 = vmax.f32 %v4693, 1e-24
  %v4707 = vmax.f32 %v4696, 1e-24
  %v4708 = vmax.f32 %v4699, 1e-24
  %v4709 = vmax.f32 %v4702, 1e-24
  %v4710 = vmax.f32 %v4705, 1e-24
  %v4711 = vrsqrt.pop %v4706
  %v4712 = vrsqrt.pop %v4707
  %v4713 = vrsqrt.pop %v4708
  %v4714 = vrsqrt.pop %v4709
  %v4715 = vrsqrt.pop %v4710
  %v4721 = vrot.slane %v4711, 1
  %v4722 = vrot.slane %v4711, 2
  %v4723 = vrot.slane %v4711, 3
  %v4724 = vrot.slane %v4711, 4
  %v4725 = vrot.slane %v4711, 5
  %v4726 = vrot.slane %v4711, 6
  %v4727 = vrot.slane %v4711, 7
  %v4728 = vrot.slane %v4712, 1
  %v4729 = vrot.slane %v4712, 2
  %v4730 = vrot.slane %v4712, 3
  %v4731 = vrot.slane %v4712, 4
  %v4732 = vrot.slane %v4712, 5
  %v4733 = vrot.slane %v4712, 6
  %v4734 = vrot.slane %v4712, 7
  %v4735 = vrot.slane %v4713, 1
  %v4736 = vrot.slane %v4713, 2
  %v4737 = vrot.slane %v4713, 3
  %v4738 = vrot.slane %v4713, 4
  %v4739 = vrot.slane %v4713, 5
  %v4740 = vrot.slane %v4713, 6
  %v4741 = vrot.slane %v4713, 7
  %v4742 = vrot.slane %v4714, 1
  %v4743 = vrot.slane %v4714, 2
  %v4744 = vrot.slane %v4714, 3
  %v4745 = vrot.slane %v4714, 4
  %v4746 = vrot.slane %v4714, 5
  %v4747 = vrot.slane %v4714, 6
  %v4748 = vrot.slane %v4714, 7
  %v4749 = vrot.slane %v4715, 1
  %v4750 = vrot.slane %v4715, 2
  %v4751 = vrot.slane %v4715, 3
  %v4752 = vrot.slane %v4715, 4
  %v4753 = vrot.slane %v4715, 5
  %v4754 = vrot.slane %v4715, 6
  %v4755 = vrot.slane %v4715, 7
  %v4796 = vmul.f32 %v4496, %v4711
  %v4797 = vmul.f32 %v4497, %v4721
  %v4798 = vmul.f32 %v4498, %v4722
  %v4799 = vmul.f32 %v4499, %v4723
  %v4800 = vmul.f32 %v4500, %v4724
  %v4801 = vmul.f32 %v4501, %v4725
  %v4802 = vmul.f32 %v4502, %v4726
  %v4803 = vmul.f32 %v4503, %v4727
  %v4804 = vmul.f32 %v4504, %v4712
  %v4805 = vmul.f32 %v4505, %v4728
  %v4806 = vmul.f32 %v4506, %v4729
  %v4807 = vmul.f32 %v4507, %v4730
  %v4808 = vmul.f32 %v4508, %v4731
  %v4809 = vmul.f32 %v4509, %v4732
  %v4810 = vmul.f32 %v4510, %v4733
  %v4811 = vmul.f32 %v4511, %v4734
  %v4812 = vmul.f32 %v4512, %v4713
  %v4813 = vmul.f32 %v4513, %v4735
  %v4814 = vmul.f32 %v4514, %v4736
  %v4815 = vmul.f32 %v4515, %v4737
  %v4816 = vmul.f32 %v4516, %v4738
  %v4817 = vmul.f32 %v4517, %v4739
  %v4818 = vmul.f32 %v4518, %v4740
  %v4819 = vmul.f32 %v4519, %v4741
  %v4820 = vmul.f32 %v4520, %v4714
  %v4821 = vmul.f32 %v4521, %v4742
  %v4822 = vmul.f32 %v4522, %v4743
  %v4823 = vmul.f32 %v4523, %v4744
  %v4824 = vmul.f32 %v4524, %v4745
  %v4825 = vmul.f32 %v4525, %v4746
  %v4826 = vmul.f32 %v4526, %v4747
  %v4827 = vmul.f32 %v4527, %v4748
  %v4828 = vmul.f32 %v4528, %v4715
  %v4829 = vmul.f32 %v4529, %v4749
  %v4830 = vmul.f32 %v4530, %v4750
  %v4831 = vmul.f32 %v4531, %v4751
  %v4832 = vmul.f32 %v4532, %v4752
  %v4833 = vmul.f32 %v4533, %v4753
  %v4834 = vmul.f32 %v4534, %v4754
  %v4835 = vmul.f32 %v4535, %v4755
  %v4836 = vld [vmem:[%s4] sm:$0x1f]
  %v4837 = vmax.f32 %v4836, 0.0
  %v4838 = vmul.f32 %v4837, %v4837
  %vm4839 = vcmask 258048
  %v4840 = vsel %vm4839, %v4838, 0.0
  %4841 = vadd.xlane.f32.xlu0 %v4840
  %v4842 = vpop.xlane.xlu0 %4841
  %v4843 = vmax.f32 %v4842, 1e-24
  %v4844 = vrsqrt.pop %v4843
  %v4845 = vmul.f32 %v4837, %v4844
  %v4847 = vcombine.high %v4845, %v4845
  %v4849 = vunpack.c.l.s4 1966171168
  %v4850 = vunpack.c.0.s8 %v4849
  %v4851 = vlaneseq
  %v4852 = vshrl.u32 %v4851, 7
  %v4853 = vsub.s32 %v4850, %v4852
  %v4854 = vrot.slane %v4845, %v4853
  %v4856 = vunpack.c.l.s4 1966171168
  %v4857 = vunpack.c.0.s8 %v4856
  %v4858 = vlaneseq
  %v4859 = vshrl.u32 %v4858, 7
  %v4860 = vsub.s32 %v4857, %v4859
  %v4861 = vrot.slane %v4847, %v4860
  %v4862 = vcombine.high %v4854, %v4854
  %v4864 = vunpack.c.l.s4 1966171168
  %v4865 = vunpack.c.0.s8 %v4864
  %v4866 = vlaneseq
  %v4867 = vshrl.u32 %v4866, 7
  %v4868 = vsub.s32 %v4865, %v4867
  %v4869 = vrot.slane %v4854, %v4868
  %v4871 = vunpack.c.l.s4 1966171168
  %v4872 = vunpack.c.0.s8 %v4871
  %v4873 = vlaneseq
  %v4874 = vshrl.u32 %v4873, 7
  %v4875 = vsub.s32 %v4872, %v4874
  %v4876 = vrot.slane %v4861, %v4875
  %v4878 = vunpack.c.l.s4 1966171168
  %v4879 = vunpack.c.0.s8 %v4878
  %v4880 = vlaneseq
  %v4881 = vshrl.u32 %v4880, 7
  %v4882 = vsub.s32 %v4879, %v4881
  %v4883 = vrot.slane %v4862, %v4882
  %v4884 = vcombine.high %v4869, %v4869
  %v4885 = vcombine.high %v4883, %v4883
  %v4886 = vlaneseq
  %v4887 = vshrl.u32 %v4886, 7
  %v4888 = vsub.s32 0, %v4887
  %v4889 = vrot.slane %v4869, %v4888
  %v4890 = vlaneseq
  %v4891 = vshrl.u32 %v4890, 7
  %v4892 = vsub.s32 0, %v4891
  %v4893 = vrot.slane %v4883, %v4892
  %v4894 = vlaneseq
  %v4895 = vshrl.u32 %v4894, 7
  %v4896 = vsub.s32 0, %v4895
  %v4897 = vrot.slane %v4884, %v4896
  %v4898 = vlaneseq
  %v4899 = vshrl.u32 %v4898, 7
  %v4900 = vsub.s32 0, %v4899
  %v4901 = vrot.slane %v4885, %v4900
  %v4902 = vlaneseq
  %v4903 = vshrl.u32 %v4902, 7
  %v4904 = vsub.s32 0, %v4903
  %v4905 = vrot.slane %v4876, %v4904
  %v4911 = vmul.f32 %v4796, %v4889
  %v4912 = vmul.f32 %v4797, %v4889
  %v4913 = vmul.f32 %v4798, %v4889
  %v4914 = vmul.f32 %v4799, %v4889
  %v4915 = vmul.f32 %v4800, %v4889
  %v4916 = vmul.f32 %v4801, %v4889
  %v4917 = vmul.f32 %v4802, %v4889
  %v4918 = vmul.f32 %v4803, %v4889
  %v4919 = vmul.f32 %v4804, %v4893
  %v4920 = vmul.f32 %v4805, %v4893
  %v4921 = vmul.f32 %v4806, %v4893
  %v4922 = vmul.f32 %v4807, %v4893
  %v4923 = vmul.f32 %v4808, %v4893
  %v4924 = vmul.f32 %v4809, %v4893
  %v4925 = vmul.f32 %v4810, %v4893
  %v4926 = vmul.f32 %v4811, %v4893
  %v4927 = vmul.f32 %v4812, %v4897
  %v4928 = vmul.f32 %v4813, %v4897
  %v4929 = vmul.f32 %v4814, %v4897
  %v4930 = vmul.f32 %v4815, %v4897
  %v4931 = vmul.f32 %v4816, %v4897
  %v4932 = vmul.f32 %v4817, %v4897
  %v4933 = vmul.f32 %v4818, %v4897
  %v4934 = vmul.f32 %v4819, %v4897
  %v4935 = vmul.f32 %v4820, %v4901
  %v4936 = vmul.f32 %v4821, %v4901
  %v4937 = vmul.f32 %v4822, %v4901
  %v4938 = vmul.f32 %v4823, %v4901
  %v4939 = vmul.f32 %v4824, %v4901
  %v4940 = vmul.f32 %v4825, %v4901
  %v4941 = vmul.f32 %v4826, %v4901
  %v4942 = vmul.f32 %v4827, %v4901
  %v4943 = vmul.f32 %v4828, %v4905
  %v4944 = vmul.f32 %v4829, %v4905
  %v4945 = vmul.f32 %v4830, %v4905
  %v4946 = vmul.f32 %v4831, %v4905
  %v4947 = vmul.f32 %v4832, %v4905
  %v4948 = vmul.f32 %v4833, %v4905
  %v4949 = vmul.f32 %v4834, %v4905
  %v4950 = vmul.f32 %v4835, %v4905
  %v4991 = vrot.slane %v4912, 7
  %v4992 = vsel %vm643, %v4991, %v4911
  %v4993 = vrot.slane %v4913, 6
  %v4994 = vsel %vm645, %v4993, %v4992
  %v4995 = vrot.slane %v4914, 5
  %v4996 = vsel %vm647, %v4995, %v4994
  %v4997 = vrot.slane %v4915, 4
  %v4998 = vsel %vm649, %v4997, %v4996
  %v4999 = vrot.slane %v4916, 3
  %v5000 = vsel %vm651, %v4999, %v4998
  %v5001 = vrot.slane %v4917, 2
  %v5002 = vsel %vm653, %v5001, %v5000
  %v5003 = vrot.slane %v4918, 1
  %v5004 = vsel %vm655, %v5003, %v5002
  %v5005 = vrot.slane %v4920, 7
  %v5006 = vsel %vm643, %v5005, %v4919
  %v5007 = vrot.slane %v4921, 6
  %v5008 = vsel %vm645, %v5007, %v5006
  %v5009 = vrot.slane %v4922, 5
  %v5010 = vsel %vm647, %v5009, %v5008
  %v5011 = vrot.slane %v4923, 4
  %v5012 = vsel %vm649, %v5011, %v5010
  %v5013 = vrot.slane %v4924, 3
  %v5014 = vsel %vm651, %v5013, %v5012
  %v5015 = vrot.slane %v4925, 2
  %v5016 = vsel %vm653, %v5015, %v5014
  %v5017 = vrot.slane %v4926, 1
  %v5018 = vsel %vm655, %v5017, %v5016
  %v5019 = vrot.slane %v4928, 7
  %v5020 = vsel %vm643, %v5019, %v4927
  %v5021 = vrot.slane %v4929, 6
  %v5022 = vsel %vm645, %v5021, %v5020
  %v5023 = vrot.slane %v4930, 5
  %v5024 = vsel %vm647, %v5023, %v5022
  %v5025 = vrot.slane %v4931, 4
  %v5026 = vsel %vm649, %v5025, %v5024
  %v5027 = vrot.slane %v4932, 3
  %v5028 = vsel %vm651, %v5027, %v5026
  %v5029 = vrot.slane %v4933, 2
  %v5030 = vsel %vm653, %v5029, %v5028
  %v5031 = vrot.slane %v4934, 1
  %v5032 = vsel %vm655, %v5031, %v5030
  %v5033 = vrot.slane %v4936, 7
  %v5034 = vsel %vm643, %v5033, %v4935
  %v5035 = vrot.slane %v4937, 6
  %v5036 = vsel %vm645, %v5035, %v5034
  %v5037 = vrot.slane %v4938, 5
  %v5038 = vsel %vm647, %v5037, %v5036
  %v5039 = vrot.slane %v4939, 4
  %v5040 = vsel %vm649, %v5039, %v5038
  %v5041 = vrot.slane %v4940, 3
  %v5042 = vsel %vm651, %v5041, %v5040
  %v5043 = vrot.slane %v4941, 2
  %v5044 = vsel %vm653, %v5043, %v5042
  %v5045 = vrot.slane %v4942, 1
  %v5046 = vsel %vm655, %v5045, %v5044
  %v5047 = vrot.slane %v4944, 7
  %v5048 = vsel %vm643, %v5047, %v4943
  %v5049 = vrot.slane %v4945, 6
  %v5050 = vsel %vm645, %v5049, %v5048
  %v5051 = vrot.slane %v4946, 5
  %v5052 = vsel %vm647, %v5051, %v5050
  %v5053 = vrot.slane %v4947, 4
  %v5054 = vsel %vm649, %v5053, %v5052
  %v5055 = vrot.slane %v4948, 3
  %v5056 = vsel %vm651, %v5055, %v5054
  %v5057 = vrot.slane %v4949, 2
  %v5058 = vsel %vm653, %v5057, %v5056
  %v5059 = vrot.slane %v4950, 1
  %v5060 = vsel %vm655, %v5059, %v5058
  %v5066 = vsel %vm110, %v5004, 0.0
  %5067 = vadd.xlane.f32.xlu0 %v5066
  %v5068 = vpop.xlane.xlu0 %5067
  %v5069 = vsel %vm110, %v5018, 0.0
  %5070 = vadd.xlane.f32.xlu0 %v5069
  %v5071 = vpop.xlane.xlu0 %5070
  %v5072 = vsel %vm110, %v5032, 0.0
  %5073 = vadd.xlane.f32.xlu0 %v5072
  %v5074 = vpop.xlane.xlu0 %5073
  %v5075 = vsel %vm110, %v5046, 0.0
  %5076 = vadd.xlane.f32.xlu0 %v5075
  %v5077 = vpop.xlane.xlu0 %5076
  %v5078 = vsel %vm110, %v5060, 0.0
  %5079 = vadd.xlane.f32.xlu0 %v5078
  %v5080 = vpop.xlane.xlu0 %5079
  %v5086 = vlaneseq
  %v5087 = vand.u32 %v5086, 127
  %v5088 = vlaneseq
  %v5089 = vshrl.u32 %v5088, 7
  %v5090 = vsub.s32 %v5087, %v5089
  %v5091 = vrot.slane %v5068, %v5090
  %v5092 = vlaneseq
  %v5093 = vshrl.u32 %v5092, 7
  %v5094 = vsub.s32 %v5087, %v5093
  %v5095 = vrot.slane %v5071, %v5094
  %v5096 = vlaneseq
  %v5097 = vshrl.u32 %v5096, 7
  %v5098 = vsub.s32 %v5087, %v5097
  %v5099 = vrot.slane %v5074, %v5098
  %v5100 = vlaneseq
  %v5101 = vshrl.u32 %v5100, 7
  %v5102 = vsub.s32 %v5087, %v5101
  %v5103 = vrot.slane %v5077, %v5102
  %v5104 = vlaneseq
  %v5105 = vshrl.u32 %v5104, 7
  %v5106 = vsub.s32 %v5087, %v5105
  %v5107 = vrot.slane %v5080, %v5106
  %v5108 = vsel %vm643, %v5095, %v5091
  %v5109 = vsel %vm645, %v5099, %v5108
  %v5110 = vsel %vm647, %v5103, %v5109
  %v5111 = vsel %vm649, %v5107, %v5110
  %vm5113 = vcmask 61440
  %5114 = vst.msk [vmem:[%s7] sm:$0x1f] %vm5113, %v5111
  %v5115 = vld [vmem:[%s5] sm:$0x1]
  %s5116 = sld [smem:[#allocation2]]
  %v5118 = vlaneseq
  %v5119 = vshrl.u32 %v5118, 7
  %v5120 = vsub.s32 0, %v5119
  %v5121 = vrot.slane %v5115, %v5120
  %v5123 = vmul.f32 %v3741, %v5121
  %v5124 = vmul.f32 %v3742, %v5121
  %v5125 = vmul.f32 %v3743, %v5121
  %v5126 = vmul.f32 %v3744, %v5121
  %v5127 = vmul.f32 %v3745, %v5121
  %v5128 = vmul.f32 %v3746, %v5121
  %v5129 = vmul.f32 %v3747, %v5121
  %v5130 = vmul.f32 %v3748, %v5121
  %v5131 = vmul.f32 %v3749, %v5121
  %v5132 = vmul.f32 %v3750, %v5121
  %v5133 = vmul.f32 %v3751, %v5121
  %v5134 = vmul.f32 %v3752, %v5121
  %v5135 = vmul.f32 %v3753, %v5121
  %v5136 = vmul.f32 %v3754, %v5121
  %v5137 = vmul.f32 %v3755, %v5121
  %v5138 = vmul.f32 %v3756, %v5121
  %v5139 = vmul.f32 %v3757, %v5121
  %v5140 = vmul.f32 %v3758, %v5121
  %v5141 = vmul.f32 %v3759, %v5121
  %v5142 = vmul.f32 %v3760, %v5121
  %v5143 = vmul.f32 %v3761, %v5121
  %v5144 = vmul.f32 %v3762, %v5121
  %v5145 = vmul.f32 %v3763, %v5121
  %v5146 = vmul.f32 %v3764, %v5121
  %v5147 = vmul.f32 %v3765, %v5121
  %v5148 = vsel %vm110, %v5123, 0.0
  %5149 = vadd.xlane.f32.xlu0 %v5148
  %v5150 = vpop.xlane.xlu0 %5149
  %v5151 = vsel %vm110, %v5124, 0.0
  %5152 = vadd.xlane.f32.xlu0 %v5151
  %v5153 = vpop.xlane.xlu0 %5152
  %v5154 = vsel %vm110, %v5125, 0.0
  %5155 = vadd.xlane.f32.xlu0 %v5154
  %v5156 = vpop.xlane.xlu0 %5155
  %v5157 = vsel %vm110, %v5126, 0.0
  %5158 = vadd.xlane.f32.xlu0 %v5157
  %v5159 = vpop.xlane.xlu0 %5158
  %v5160 = vsel %vm110, %v5127, 0.0
  %5161 = vadd.xlane.f32.xlu0 %v5160
  %v5162 = vpop.xlane.xlu0 %5161
  %v5163 = vsel %vm110, %v5128, 0.0
  %5164 = vadd.xlane.f32.xlu0 %v5163
  %v5165 = vpop.xlane.xlu0 %5164
  %v5166 = vsel %vm110, %v5129, 0.0
  %5167 = vadd.xlane.f32.xlu0 %v5166
  %v5168 = vpop.xlane.xlu0 %5167
  %v5169 = vsel %vm110, %v5130, 0.0
  %5170 = vadd.xlane.f32.xlu0 %v5169
  %v5171 = vpop.xlane.xlu0 %5170
  %v5172 = vsel %vm110, %v5131, 0.0
  %5173 = vadd.xlane.f32.xlu0 %v5172
  %v5174 = vpop.xlane.xlu0 %5173
  %v5175 = vsel %vm110, %v5132, 0.0
  %5176 = vadd.xlane.f32.xlu0 %v5175
  %v5177 = vpop.xlane.xlu0 %5176
  %v5178 = vsel %vm110, %v5133, 0.0
  %5179 = vadd.xlane.f32.xlu0 %v5178
  %v5180 = vpop.xlane.xlu0 %5179
  %v5181 = vsel %vm110, %v5134, 0.0
  %5182 = vadd.xlane.f32.xlu0 %v5181
  %v5183 = vpop.xlane.xlu0 %5182
  %v5184 = vsel %vm110, %v5135, 0.0
  %5185 = vadd.xlane.f32.xlu0 %v5184
  %v5186 = vpop.xlane.xlu0 %5185
  %v5187 = vsel %vm110, %v5136, 0.0
  %5188 = vadd.xlane.f32.xlu0 %v5187
  %v5189 = vpop.xlane.xlu0 %5188
  %v5190 = vsel %vm110, %v5137, 0.0
  %5191 = vadd.xlane.f32.xlu0 %v5190
  %v5192 = vpop.xlane.xlu0 %5191
  %v5193 = vsel %vm110, %v5138, 0.0
  %5194 = vadd.xlane.f32.xlu0 %v5193
  %v5195 = vpop.xlane.xlu0 %5194
  %v5196 = vsel %vm110, %v5139, 0.0
  %5197 = vadd.xlane.f32.xlu0 %v5196
  %v5198 = vpop.xlane.xlu0 %5197
  %v5199 = vsel %vm110, %v5140, 0.0
  %5200 = vadd.xlane.f32.xlu0 %v5199
  %v5201 = vpop.xlane.xlu0 %5200
  %v5202 = vsel %vm110, %v5141, 0.0
  %5203 = vadd.xlane.f32.xlu0 %v5202
  %v5204 = vpop.xlane.xlu0 %5203
  %v5205 = vsel %vm110, %v5142, 0.0
  %5206 = vadd.xlane.f32.xlu0 %v5205
  %v5207 = vpop.xlane.xlu0 %5206
  %v5208 = vsel %vm110, %v5143, 0.0
  %5209 = vadd.xlane.f32.xlu0 %v5208
  %v5210 = vpop.xlane.xlu0 %5209
  %v5211 = vsel %vm110, %v5144, 0.0
  %5212 = vadd.xlane.f32.xlu0 %v5211
  %v5213 = vpop.xlane.xlu0 %5212
  %v5214 = vsel %vm110, %v5145, 0.0
  %5215 = vadd.xlane.f32.xlu0 %v5214
  %v5216 = vpop.xlane.xlu0 %5215
  %v5217 = vsel %vm110, %v5146, 0.0
  %5218 = vadd.xlane.f32.xlu0 %v5217
  %v5219 = vpop.xlane.xlu0 %5218
  %v5220 = vsel %vm110, %v5147, 0.0
  %5221 = vadd.xlane.f32.xlu0 %v5220
  %v5222 = vpop.xlane.xlu0 %5221
  %v5223 = vstv %s5116
  %v5224 = vadd.f32 %v5150, %v5223
  %v5225 = vadd.f32 %v5153, %v5223
  %v5226 = vadd.f32 %v5156, %v5223
  %v5227 = vadd.f32 %v5159, %v5223
  %v5228 = vadd.f32 %v5162, %v5223
  %v5229 = vadd.f32 %v5165, %v5223
  %v5230 = vadd.f32 %v5168, %v5223
  %v5231 = vadd.f32 %v5171, %v5223
  %v5232 = vadd.f32 %v5174, %v5223
  %v5233 = vadd.f32 %v5177, %v5223
  %v5234 = vadd.f32 %v5180, %v5223
  %v5235 = vadd.f32 %v5183, %v5223
  %v5236 = vadd.f32 %v5186, %v5223
  %v5237 = vadd.f32 %v5189, %v5223
  %v5238 = vadd.f32 %v5192, %v5223
  %v5239 = vadd.f32 %v5195, %v5223
  %v5240 = vadd.f32 %v5198, %v5223
  %v5241 = vadd.f32 %v5201, %v5223
  %v5242 = vadd.f32 %v5204, %v5223
  %v5243 = vadd.f32 %v5207, %v5223
  %v5244 = vadd.f32 %v5210, %v5223
  %v5245 = vadd.f32 %v5213, %v5223
  %v5246 = vadd.f32 %v5216, %v5223
  %v5247 = vadd.f32 %v5219, %v5223
  %v5248 = vadd.f32 %v5222, %v5223
  %v5274 = vlaneseq
  %v5275 = vshrl.u32 %v5274, 7
  %v5276 = vsub.s32 %v5087, %v5275
  %v5277 = vrot.slane %v5224, %v5276
  %v5278 = vlaneseq
  %v5279 = vshrl.u32 %v5278, 7
  %v5280 = vsub.s32 %v5087, %v5279
  %v5281 = vrot.slane %v5225, %v5280
  %v5282 = vlaneseq
  %v5283 = vshrl.u32 %v5282, 7
  %v5284 = vsub.s32 %v5087, %v5283
  %v5285 = vrot.slane %v5226, %v5284
  %v5286 = vlaneseq
  %v5287 = vshrl.u32 %v5286, 7
  %v5288 = vsub.s32 %v5087, %v5287
  %v5289 = vrot.slane %v5227, %v5288
  %v5290 = vlaneseq
  %v5291 = vshrl.u32 %v5290, 7
  %v5292 = vsub.s32 %v5087, %v5291
  %v5293 = vrot.slane %v5228, %v5292
  %v5294 = vlaneseq
  %v5295 = vshrl.u32 %v5294, 7
  %v5296 = vsub.s32 %v5087, %v5295
  %v5297 = vrot.slane %v5229, %v5296
  %v5298 = vlaneseq
  %v5299 = vshrl.u32 %v5298, 7
  %v5300 = vsub.s32 %v5087, %v5299
  %v5301 = vrot.slane %v5230, %v5300
  %v5302 = vlaneseq
  %v5303 = vshrl.u32 %v5302, 7
  %v5304 = vsub.s32 %v5087, %v5303
  %v5305 = vrot.slane %v5231, %v5304
  %v5306 = vlaneseq
  %v5307 = vshrl.u32 %v5306, 7
  %v5308 = vsub.s32 %v5087, %v5307
  %v5309 = vrot.slane %v5232, %v5308
  %v5310 = vlaneseq
  %v5311 = vshrl.u32 %v5310, 7
  %v5312 = vsub.s32 %v5087, %v5311
  %v5313 = vrot.slane %v5233, %v5312
  %v5314 = vlaneseq
  %v5315 = vshrl.u32 %v5314, 7
  %v5316 = vsub.s32 %v5087, %v5315
  %v5317 = vrot.slane %v5234, %v5316
  %v5318 = vlaneseq
  %v5319 = vshrl.u32 %v5318, 7
  %v5320 = vsub.s32 %v5087, %v5319
  %v5321 = vrot.slane %v5235, %v5320
  %v5322 = vlaneseq
  %v5323 = vshrl.u32 %v5322, 7
  %v5324 = vsub.s32 %v5087, %v5323
  %v5325 = vrot.slane %v5236, %v5324
  %v5326 = vlaneseq
  %v5327 = vshrl.u32 %v5326, 7
  %v5328 = vsub.s32 %v5087, %v5327
  %v5329 = vrot.slane %v5237, %v5328
  %v5330 = vlaneseq
  %v5331 = vshrl.u32 %v5330, 7
  %v5332 = vsub.s32 %v5087, %v5331
  %v5333 = vrot.slane %v5238, %v5332
  %v5334 = vlaneseq
  %v5335 = vshrl.u32 %v5334, 7
  %v5336 = vsub.s32 %v5087, %v5335
  %v5337 = vrot.slane %v5239, %v5336
  %v5338 = vlaneseq
  %v5339 = vshrl.u32 %v5338, 7
  %v5340 = vsub.s32 %v5087, %v5339
  %v5341 = vrot.slane %v5240, %v5340
  %v5342 = vlaneseq
  %v5343 = vshrl.u32 %v5342, 7
  %v5344 = vsub.s32 %v5087, %v5343
  %v5345 = vrot.slane %v5241, %v5344
  %v5346 = vlaneseq
  %v5347 = vshrl.u32 %v5346, 7
  %v5348 = vsub.s32 %v5087, %v5347
  %v5349 = vrot.slane %v5242, %v5348
  %v5350 = vlaneseq
  %v5351 = vshrl.u32 %v5350, 7
  %v5352 = vsub.s32 %v5087, %v5351
  %v5353 = vrot.slane %v5243, %v5352
  %v5354 = vlaneseq
  %v5355 = vshrl.u32 %v5354, 7
  %v5356 = vsub.s32 %v5087, %v5355
  %v5357 = vrot.slane %v5244, %v5356
  %v5358 = vlaneseq
  %v5359 = vshrl.u32 %v5358, 7
  %v5360 = vsub.s32 %v5087, %v5359
  %v5361 = vrot.slane %v5245, %v5360
  %v5362 = vlaneseq
  %v5363 = vshrl.u32 %v5362, 7
  %v5364 = vsub.s32 %v5087, %v5363
  %v5365 = vrot.slane %v5246, %v5364
  %v5366 = vlaneseq
  %v5367 = vshrl.u32 %v5366, 7
  %v5368 = vsub.s32 %v5087, %v5367
  %v5369 = vrot.slane %v5247, %v5368
  %v5370 = vlaneseq
  %v5371 = vshrl.u32 %v5370, 7
  %v5372 = vsub.s32 %v5087, %v5371
  %v5373 = vrot.slane %v5248, %v5372
  %v5374 = vsel %vm643, %v5281, %v5277
  %v5375 = vsel %vm645, %v5285, %v5374
  %v5376 = vsel %vm647, %v5289, %v5375
  %v5377 = vsel %vm649, %v5293, %v5376
  %v5378 = vsel %vm643, %v5301, %v5297
  %v5379 = vsel %vm645, %v5305, %v5378
  %v5380 = vsel %vm647, %v5309, %v5379
  %v5381 = vsel %vm649, %v5313, %v5380
  %v5382 = vsel %vm643, %v5321, %v5317
  %v5383 = vsel %vm645, %v5325, %v5382
  %v5384 = vsel %vm647, %v5329, %v5383
  %v5385 = vsel %vm649, %v5333, %v5384
  %v5386 = vsel %vm643, %v5341, %v5337
  %v5387 = vsel %vm645, %v5345, %v5386
  %v5388 = vsel %vm647, %v5349, %v5387
  %v5389 = vsel %vm649, %v5353, %v5388
  %v5390 = vsel %vm643, %v5361, %v5357
  %v5391 = vsel %vm645, %v5365, %v5390
  %v5392 = vsel %vm647, %v5369, %v5391
  %v5393 = vsel %vm649, %v5373, %v5392
  %5399 = vst.msk [vmem:[%s8] sm:$0x1f] %vm5113, %v5377
  %5400 = vst.msk [vmem:[%s8 + $0x8] sm:$0x1f] %vm5113, %v5381
  %5401 = vst.msk [vmem:[%s8 + $0x10] sm:$0x1f] %vm5113, %v5385
  %5402 = vst.msk [vmem:[%s8 + $0x18] sm:$0x1f] %vm5113, %v5389
  %5403 = vst.msk [vmem:[%s8 + $0x20] sm:$0x1f] %vm5113, %v5393
  // Predicated region
  $region30: #{action_forward.1} parent=0 // pred_check
    _
  $region31: #{action_forward.1} parent=0 // pred_check_branch
    %5405 = sbr.rel (0) target = $region33
  $region32: #{action_forward.1} parent=0 // pred_region
    _
  $region33: #{action_forward.1} parent=0 // pred_fallthru
    _
  // Predicated region
  $region34: #{action_forward.1} parent=0 // pred_check
    _
  $region35: #{action_forward.1} parent=0 // pred_check_branch
    %5407 = sbr.rel (0) target = $region37
  $region36: #{action_forward.1} parent=0 // pred_region
    _
  $region37: #{action_forward.1} parent=0 // pred_fallthru
    _
  // Predicated region
  $region38: #{action_forward.1} parent=0 // pred_check
    _
  $region39: #{action_forward.1} parent=0 // pred_check_branch
    %5409 = sbr.rel (0) target = $region41
  $region40: #{action_forward.1} parent=0 // pred_region
    _
  $region41: #{action_forward.1} parent=0 // pred_fallthru
    _
  // Predicated region
  $region42: #{action_forward.1} parent=0 // pred_check
    _
  $region43: #{action_forward.1} parent=0 // pred_check_branch
    %5411 = sbr.rel (0) target = $region45
  $region44: #{action_forward.1} parent=0 // pred_region
    _
  $region45: #{action_forward.1} parent=0 // pred_fallthru
    _

</llo_original>
